<compile_context>
chip_gen: v7x
topology: tpu7x:2x2x1
jax: 0.10.0
libtpu: 0.0.40
codegen_flags: <defaults>
</compile_context>

<pallas_src>
import functools

import numpy as np
import jax
import jax.numpy as jnp
from jax import lax
from jax.experimental import pallas as pl
from jax.experimental.pallas import tpu as pltpu


# ----------------------------- in-kernel helpers -----------------------------

def _layernorm_channels(x, w, b):
    """Torch LayerNorm over the channel dim (WithBias). x: (C, HW); w, b: (C, 1)."""
    mu = jnp.mean(x, axis=0, keepdims=True)
    xc = x - mu
    var = jnp.mean(xc * xc, axis=0, keepdims=True)
    return xc * lax.rsqrt(var + 1e-5) * w + b


def _dwconv3x3_flat(x, taps, mask_rows, H, W):
    """Depthwise 3x3, stride 1, pad 1, no bias, on flattened spatial layout.

    x:         (Cg, H*W)   channels on sublanes, spatial lane-dense
    taps:      list of 9 (Cg, 1) per-channel tap weights (tap index = kh*3 + kw)
    mask_rows: list of 9 (1, H*W) precomputed boundary masks (1=in-image, 0=padding)
    """
    Cg, HW = x.shape
    acc = taps[4] * x                       # center tap: no shift, never masked
    for kh in range(3):
        for kw in range(3):
            idx = kh * 3 + kw
            if idx == 4:
                continue
            total = (kh - 1) * W + (kw - 1)
            # shifted[c, p] = x[c, (p + total) mod HW]  (XLU lane rotate)
            shifted = pltpu.roll(x, shift=(-total) % HW, axis=1)
            acc = acc + taps[idx] * (mask_rows[idx] * shifted)
    return acc


def _transformer_block_kernel(x_ref, masks_ref, cvec_ref, head_bias_ref,
                              w_qkv_ref, w_dw_ref, w_attn_po_ref,
                              w_ffn_pi_ref, w_ffn_po_ref,
                              o_ref, *, H, W):
    Nb, C, HW = x_ref.shape
    Hf = w_ffn_po_ref.shape[1]

    # ---- hoisted once per grid step (shared by both dwconvs and all Nb images) ----
    mask_rows = [masks_ref[i:i + 1, :] for i in range(9)]          # 9 x (1, HW)
    cvec = cvec_ref[...]                                            # (C, 8)
    ln1_w, ln1_b = cvec[:, 0:1], cvec[:, 1:2]
    ln2_w, ln2_b = cvec[:, 2:3], cvec[:, 3:4]
    temp_pc = cvec[:, 4:5]                                          # per-channel temperature
    head_bias = head_bias_ref[...]                                  # (C, C), 0 / -1e30
    w_qkv = w_qkv_ref[...]                                          # (3C, C)
    w_dw = w_dw_ref[...]                                            # (3C + 2Hf, 9)
    attn_taps = [w_dw[0:3 * C, i:i + 1] for i in range(9)]
    ffn_taps = [w_dw[3 * C:3 * C + 2 * Hf, i:i + 1] for i in range(9)]
    w_attn_po = w_attn_po_ref[...]                                  # (C, C)
    w_ffn_pi = w_ffn_pi_ref[...]                                    # (2Hf, C)
    w_ffn_po = w_ffn_po_ref[...]                                    # (C, Hf)

    def per_image(i, carry):
        x = x_ref[i].astype(jnp.float32)                            # (C, HW)

        # ---------------- x = x + Attention(LayerNorm1(x)) ----------------
        xn = _layernorm_channels(x, ln1_w, ln1_b)
        qkv = jnp.dot(w_qkv, xn, preferred_element_type=jnp.float32)       # (3C, HW)
        qkv = _dwconv3x3_flat(qkv, attn_taps, mask_rows, H, W)
        q = qkv[0:C]
        k = qkv[C:2 * C]
        v = qkv[2 * C:3 * C]
        # L2-normalize rows (F.normalize(dim=-1)) via EUP rsqrt; fold per-head
        # temperature into q rows (equivalent to scaling attention rows per head).
        qn = q * lax.rsqrt(jnp.maximum(jnp.sum(q * q, axis=-1, keepdims=True), 1e-24)) * temp_pc
        kn = k * lax.rsqrt(jnp.maximum(jnp.sum(k * k, axis=-1, keepdims=True), 1e-24))
        # Full-C gram + block-diagonal head bias => exact per-head softmax.
        s = jnp.dot(qn, kn.T, preferred_element_type=jnp.float32) + head_bias   # (C, C)
        s = s - jnp.max(s, axis=-1, keepdims=True)
        e = jnp.exp(s)
        p = e * pl.reciprocal(jnp.sum(e, axis=-1, keepdims=True), approx=True)
        attn_out = jnp.dot(p, v, preferred_element_type=jnp.float32)            # (C, HW)
        x = x + jnp.dot(w_attn_po, attn_out, preferred_element_type=jnp.float32)

        # ---------------- x = x + FeedForward(LayerNorm2(x)) ----------------
        xn = _layernorm_channels(x, ln2_w, ln2_b)
        h2 = jnp.dot(w_ffn_pi, xn, preferred_element_type=jnp.float32)          # (2Hf, HW)
        h2 = _dwconv3x3_flat(h2, ffn_taps, mask_rows, H, W)
        # TODO(synk): PyTorch F.gelu default is erf-exact; using the tanh approximation
        # here (erf lowering in Mosaic is not guaranteed). Reference below matches.
        g = jax.nn.gelu(h2[0:Hf], approximate=True) * h2[Hf:2 * Hf]
        x = x + jnp.dot(w_ffn_po, g, preferred_element_type=jnp.float32)

        o_ref[i] = x.astype(o_ref.dtype)
        return carry

    lax.fori_loop(0, Nb, per_image, 0, unroll=True)


# --------------------------------- wrapper -----------------------------------

def _make_boundary_masks(H, W):
    """(9, H*W) f32; masks[kh*3+kw, p] = 1 iff the (kh,kw) tap at flat position p is in-image."""
    pos = np.arange(H * W)
    row = pos // W
    col = pos % W
    masks = np.empty((9, H * W), np.float32)
    for kh in range(3):
        for kw in range(3):
            dh, dw = kh - 1, kw - 1
            ok = np.ones(H * W, bool)
            if dh == -1:
                ok &= row >= 1
            elif dh == 1:
                ok &= row <= H - 2
            if dw == -1:
                ok &= col >= 1
            elif dw == 1:
                ok &= col <= W - 2
            masks[kh * 3 + kw] = ok.astype(np.float32)
    return jnp.asarray(masks)


def _pick_block_batch(N, max_nb=8):
    """Largest divisor of N (<= max_nb), preferring an even grid length for v7x megacore."""
    divisors = [d for d in range(1, min(N, max_nb) + 1) if N % d == 0]
    even_grid = [d for d in divisors if (N // d) % 2 == 0]
    pool = even_grid if even_grid else divisors
    return max(pool)


def transformer_block_pallas(x_nchw, params, *, num_heads, block_batch=None):
    """x_nchw: (N, C, H, W). params: PyTorch-layout weights (see __main__)."""
    N, C, H, W = x_nchw.shape
    HW = H * W
    ch = C // num_heads
    Nb = block_batch if block_batch is not None else _pick_block_batch(N)
    assert N % Nb == 0, (N, Nb)

    x_flat = x_nchw.reshape(N, C, HW)
    masks = _make_boundary_masks(H, W)

    # Pack the five per-channel vectors into one (C, 8) operand.
    temp_pc = jnp.repeat(params['attn_temperature'].reshape(num_heads), ch)
    cvec = jnp.zeros((C, 8), jnp.float32)
    cvec = cvec.at[:, 0].set(params['ln1_w'].astype(jnp.float32))
    cvec = cvec.at[:, 1].set(params['ln1_b'].astype(jnp.float32))
    cvec = cvec.at[:, 2].set(params['ln2_w'].astype(jnp.float32))
    cvec = cvec.at[:, 3].set(params['ln2_b'].astype(jnp.float32))
    cvec = cvec.at[:, 4].set(temp_pc.astype(jnp.float32))

    # Block-diagonal additive head bias: 0 within a head, -1e30 across heads.
    head_ids = np.repeat(np.arange(num_heads), ch)
    head_bias = jnp.asarray(
        np.where(head_ids[:, None] == head_ids[None, :], 0.0, -1e30).astype(np.float32))

    Hf = params['ffn_po_w'].shape[1]
    w_qkv = params['attn_qkv_w'].reshape(3 * C, C).astype(jnp.float32)
    w_dw_all = jnp.concatenate(
        [params['attn_dw_w'].reshape(3 * C, 9).astype(jnp.float32),
         params['ffn_dw_w'].reshape(2 * Hf, 9).astype(jnp.float32)], axis=0)   # (3C+2Hf, 9)
    w_attn_po = params['attn_po_w'].reshape(C, C).astype(jnp.float32)
    w_ffn_pi = params['ffn_pi_w'].reshape(2 * Hf, C).astype(jnp.float32)
    w_ffn_po = params['ffn_po_w'].reshape(C, Hf).astype(jnp.float32)

    kernel = functools.partial(_transformer_block_kernel, H=H, W=W)

    def w_spec(a):
        assert a.ndim == 2
        return pl.BlockSpec(a.shape, lambda n: (0, 0))

    out_flat = pl.pallas_call(
        kernel,
        out_shape=jax.ShapeDtypeStruct((N, C, HW), x_nchw.dtype),
        grid_spec=pltpu.PrefetchScalarGridSpec(
            num_scalar_prefetch=0,
            grid=(N // Nb,),
            in_specs=[
                pl.BlockSpec((Nb, C, HW), lambda n: (n, 0, 0)),
                w_spec(masks), w_spec(cvec), w_spec(head_bias),
                w_spec(w_qkv), w_spec(w_dw_all), w_spec(w_attn_po),
                w_spec(w_ffn_pi), w_spec(w_ffn_po),
            ],
            out_specs=pl.BlockSpec((Nb, C, HW), lambda n: (n, 0, 0)),
        ),
        compiler_params=pltpu.CompilerParams(
            dimension_semantics=("parallel",),
        ),
    )(x_flat, masks, cvec, head_bias, w_qkv, w_dw_all, w_attn_po, w_ffn_pi, w_ffn_po)

    return out_flat.reshape(N, C, H, W)


# ---------------------- pure-JAX reference (for checking) --------------------

def _ref_layernorm(x, w, b):
    mu = jnp.mean(x, axis=1, keepdims=True)
    var = jnp.mean((x - mu) ** 2, axis=1, keepdims=True)
    return (x - mu) / jnp.sqrt(var + 1e-5) * w[None, :, None, None] + b[None, :, None, None]


def _ref_conv1x1(x, w2d):
    return jnp.einsum('oc,nchw->nohw', w2d, x, precision=lax.Precision.HIGHEST)


def _ref_dwconv3x3(x, w):
    Cg = x.shape[1]
    return lax.conv_general_dilated(
        x, w, window_strides=(1, 1), padding=((1, 1), (1, 1)),
        dimension_numbers=("NCHW", "OIHW", "NCHW"), feature_group_count=Cg,
        precision=lax.Precision.HIGHEST)


def _ref_attention(x, p, num_heads):
    N, C, H, W = x.shape
    qkv = _ref_dwconv3x3(_ref_conv1x1(x, p['attn_qkv_w'].reshape(3 * C, C)), p['attn_dw_w'])
    q, k, v = jnp.split(qkv, 3, axis=1)
    r = lambda t: t.reshape(N, num_heads, C // num_heads, H * W)
    q, k, v = r(q), r(k), r(v)
    qn = q / jnp.maximum(jnp.sqrt(jnp.sum(q * q, -1, keepdims=True)), 1e-12)
    kn = k / jnp.maximum(jnp.sqrt(jnp.sum(k * k, -1, keepdims=True)), 1e-12)
    attn = jnp.einsum('nhcp,nhdp->nhcd', qn, kn, precision=lax.Precision.HIGHEST)
    attn = attn * p['attn_temperature'][None]
    attn = jax.nn.softmax(attn, axis=-1)
    out = jnp.einsum('nhcd,nhdp->nhcp', attn, v, precision=lax.Precision.HIGHEST)
    out = out.reshape(N, C, H, W)
    return _ref_conv1x1(out, p['attn_po_w'].reshape(C, C))


def _ref_ffn(x, p):
    N, C, H, W = x.shape
    Hf = p['ffn_po_w'].shape[1]
    h2 = _ref_dwconv3x3(_ref_conv1x1(x, p['ffn_pi_w'].reshape(2 * Hf, C)), p['ffn_dw_w'])
    x1, x2 = jnp.split(h2, 2, axis=1)
    g = jax.nn.gelu(x1, approximate=True) * x2
    return _ref_conv1x1(g, p['ffn_po_w'].reshape(C, Hf))


def transformer_block_reference(x, p, *, num_heads):
    x = x + _ref_attention(_ref_layernorm(x, p['ln1_w'], p['ln1_b']), p, num_heads)
    x = x + _ref_ffn(_ref_layernorm(x, p['ln2_w'], p['ln2_b']), p)
    return x


# ----------------------------------- demo ------------------------------------

if __name__ == "__main__":
    key = jax.random.PRNGKey(0)
    N, dim, H, W = 4, 16, 16, 16          # N=4 -> Nb=2 images per grid step, grid=(2,)
    num_heads = 2
    ffn_expansion_factor = 2.0
    hidden = int(dim * ffn_expansion_factor)
    # bias=False for all convs, LayerNorm_type='WithBias' (typical PromptIR config).

    keys = jax.random.split(key, 12)
    s = 0.1
    params = {
        'ln1_w': jnp.ones((dim,), jnp.float32) + 0.1 * jax.random.normal(keys[0], (dim,), jnp.float32),
        'ln1_b': 0.1 * jax.random.normal(keys[1], (dim,), jnp.float32),
        'attn_qkv_w': s * jax.random.normal(keys[2], (3 * dim, dim, 1, 1), jnp.float32),
        'attn_dw_w': s * jax.random.normal(keys[3], (3 * dim, 1, 3, 3), jnp.float32),
        'attn_temperature': jnp.ones((num_heads, 1, 1), jnp.float32)
                            + 0.1 * jax.random.normal(keys[4], (num_heads, 1, 1), jnp.float32),
        'attn_po_w': s * jax.random.normal(keys[5], (dim, dim, 1, 1), jnp.float32),
        'ln2_w': jnp.ones((dim,), jnp.float32) + 0.1 * jax.random.normal(keys[6], (dim,), jnp.float32),
        'ln2_b': 0.1 * jax.random.normal(keys[7], (dim,), jnp.float32),
        'ffn_pi_w': s * jax.random.normal(keys[8], (2 * hidden, dim, 1, 1), jnp.float32),
        'ffn_dw_w': s * jax.random.normal(keys[9], (2 * hidden, 1, 3, 3), jnp.float32),
        'ffn_po_w': s * jax.random.normal(keys[10], (dim, hidden, 1, 1), jnp.float32),
    }
    x = jax.random.normal(keys[11], (N, dim, H, W), jnp.float32)

    out = transformer_block_pallas(x, params, num_heads=num_heads)
    out = jax.block_until_ready(out)

    ref = transformer_block_reference(x, params, num_heads=num_heads)
    ref = jax.block_until_ready(ref)

    assert out.shape == x.shape, out.shape
    max_err = float(jnp.max(jnp.abs(out - ref)))
    assert jnp.allclose(out, ref, atol=2e-3, rtol=2e-3), f"mismatch vs reference (max abs err {max_err})"

    print("KERNEL_OK")
</pallas_src>

<mosaic_0001>
module attributes {stable_mosaic.version = 11 : i64} {
  func.func @_transformer_block_kernel(%arg0: i32, %arg1: memref<2x16x256xf32, #tpu.memory_space<vmem>>, %arg2: memref<9x256xf32, #tpu.memory_space<vmem>>, %arg3: memref<16x8xf32, #tpu.memory_space<vmem>>, %arg4: memref<16x16xf32, #tpu.memory_space<vmem>>, %arg5: memref<48x16xf32, #tpu.memory_space<vmem>>, %arg6: memref<112x9xf32, #tpu.memory_space<vmem>>, %arg7: memref<16x16xf32, #tpu.memory_space<vmem>>, %arg8: memref<64x16xf32, #tpu.memory_space<vmem>>, %arg9: memref<16x32xf32, #tpu.memory_space<vmem>>, %arg10: memref<2x16x256xf32, #tpu.memory_space<vmem>>) attributes {dimension_semantics = [#tpu.dimension_semantics<parallel>], iteration_bounds = array<i64: 2>, scalar_prefetch = 0 : i64, scratch_operands = 0 : i64, tpu.core_type = #tpu.core_type<tc>, window_params = [{transform_indices = @transform_0, window_bounds = array<i64: 2, 16, 256>}, {pipeline_mode = #tpu.pipeline_mode<synchronous>, transform_indices = @transform_1, window_bounds = array<i64: 9, 256>}, {pipeline_mode = #tpu.pipeline_mode<synchronous>, transform_indices = @transform_2, window_bounds = array<i64: 16, 8>}, {pipeline_mode = #tpu.pipeline_mode<synchronous>, transform_indices = @transform_3, window_bounds = array<i64: 16, 16>}, {pipeline_mode = #tpu.pipeline_mode<synchronous>, transform_indices = @transform_4, window_bounds = array<i64: 48, 16>}, {pipeline_mode = #tpu.pipeline_mode<synchronous>, transform_indices = @transform_5, window_bounds = array<i64: 112, 9>}, {pipeline_mode = #tpu.pipeline_mode<synchronous>, transform_indices = @transform_6, window_bounds = array<i64: 16, 16>}, {pipeline_mode = #tpu.pipeline_mode<synchronous>, transform_indices = @transform_7, window_bounds = array<i64: 64, 16>}, {pipeline_mode = #tpu.pipeline_mode<synchronous>, transform_indices = @transform_8, window_bounds = array<i64: 16, 32>}, {transform_indices = @transform_9, window_bounds = array<i64: 2, 16, 256>}]} {
    %c0 = arith.constant 0 : index
    %c0_0 = arith.constant 0 : index
    %0 = vector.load %arg2[%c0, %c0_0] : memref<9x256xf32, #tpu.memory_space<vmem>>, vector<1x256xf32>
    %c1 = arith.constant 1 : index
    %c0_1 = arith.constant 0 : index
    %1 = vector.load %arg2[%c1, %c0_1] : memref<9x256xf32, #tpu.memory_space<vmem>>, vector<1x256xf32>
    %c2 = arith.constant 2 : index
    %c0_2 = arith.constant 0 : index
    %2 = vector.load %arg2[%c2, %c0_2] : memref<9x256xf32, #tpu.memory_space<vmem>>, vector<1x256xf32>
    %c3 = arith.constant 3 : index
    %c0_3 = arith.constant 0 : index
    %3 = vector.load %arg2[%c3, %c0_3] : memref<9x256xf32, #tpu.memory_space<vmem>>, vector<1x256xf32>
    %c5 = arith.constant 5 : index
    %c0_4 = arith.constant 0 : index
    %4 = vector.load %arg2[%c5, %c0_4] : memref<9x256xf32, #tpu.memory_space<vmem>>, vector<1x256xf32>
    %c6 = arith.constant 6 : index
    %c0_5 = arith.constant 0 : index
    %5 = vector.load %arg2[%c6, %c0_5] : memref<9x256xf32, #tpu.memory_space<vmem>>, vector<1x256xf32>
    %c7 = arith.constant 7 : index
    %c0_6 = arith.constant 0 : index
    %6 = vector.load %arg2[%c7, %c0_6] : memref<9x256xf32, #tpu.memory_space<vmem>>, vector<1x256xf32>
    %c8 = arith.constant 8 : index
    %c0_7 = arith.constant 0 : index
    %7 = vector.load %arg2[%c8, %c0_7] : memref<9x256xf32, #tpu.memory_space<vmem>>, vector<1x256xf32>
    %c0_8 = arith.constant 0 : index
    %c0_9 = arith.constant 0 : index
    %8 = vector.load %arg3[%c0_8, %c0_9] : memref<16x8xf32, #tpu.memory_space<vmem>>, vector<16x8xf32>
    %9 = vector.extract_strided_slice %8 {offsets = [0, 0], sizes = [16, 1], strides = [1, 1]} : vector<16x8xf32> to vector<16x1xf32>
    %10 = vector.extract_strided_slice %8 {offsets = [0, 1], sizes = [16, 1], strides = [1, 1]} : vector<16x8xf32> to vector<16x1xf32>
    %11 = vector.extract_strided_slice %8 {offsets = [0, 2], sizes = [16, 1], strides = [1, 1]} : vector<16x8xf32> to vector<16x1xf32>
    %12 = vector.extract_strided_slice %8 {offsets = [0, 3], sizes = [16, 1], strides = [1, 1]} : vector<16x8xf32> to vector<16x1xf32>
    %13 = vector.extract_strided_slice %8 {offsets = [0, 4], sizes = [16, 1], strides = [1, 1]} : vector<16x8xf32> to vector<16x1xf32>
    %c0_10 = arith.constant 0 : index
    %c0_11 = arith.constant 0 : index
    %14 = vector.load %arg4[%c0_10, %c0_11] : memref<16x16xf32, #tpu.memory_space<vmem>>, vector<16x16xf32>
    %c0_12 = arith.constant 0 : index
    %c0_13 = arith.constant 0 : index
    %15 = vector.load %arg5[%c0_12, %c0_13] : memref<48x16xf32, #tpu.memory_space<vmem>>, vector<48x16xf32>
    %c0_14 = arith.constant 0 : index
    %c0_15 = arith.constant 0 : index
    %16 = vector.load %arg6[%c0_14, %c0_15] : memref<112x9xf32, #tpu.memory_space<vmem>>, vector<112x9xf32>
    %17 = vector.extract_strided_slice %16 {offsets = [0, 0], sizes = [48, 1], strides = [1, 1]} : vector<112x9xf32> to vector<48x1xf32>
    %18 = vector.extract_strided_slice %16 {offsets = [0, 1], sizes = [48, 1], strides = [1, 1]} : vector<112x9xf32> to vector<48x1xf32>
    %19 = vector.extract_strided_slice %16 {offsets = [0, 2], sizes = [48, 1], strides = [1, 1]} : vector<112x9xf32> to vector<48x1xf32>
    %20 = vector.extract_strided_slice %16 {offsets = [0, 3], sizes = [48, 1], strides = [1, 1]} : vector<112x9xf32> to vector<48x1xf32>
    %21 = vector.extract_strided_slice %16 {offsets = [0, 4], sizes = [48, 1], strides = [1, 1]} : vector<112x9xf32> to vector<48x1xf32>
    %22 = vector.extract_strided_slice %16 {offsets = [0, 5], sizes = [48, 1], strides = [1, 1]} : vector<112x9xf32> to vector<48x1xf32>
    %23 = vector.extract_strided_slice %16 {offsets = [0, 6], sizes = [48, 1], strides = [1, 1]} : vector<112x9xf32> to vector<48x1xf32>
    %24 = vector.extract_strided_slice %16 {offsets = [0, 7], sizes = [48, 1], strides = [1, 1]} : vector<112x9xf32> to vector<48x1xf32>
    %25 = vector.extract_strided_slice %16 {offsets = [0, 8], sizes = [48, 1], strides = [1, 1]} : vector<112x9xf32> to vector<48x1xf32>
    %26 = vector.extract_strided_slice %16 {offsets = [48, 0], sizes = [64, 1], strides = [1, 1]} : vector<112x9xf32> to vector<64x1xf32>
    %27 = vector.extract_strided_slice %16 {offsets = [48, 1], sizes = [64, 1], strides = [1, 1]} : vector<112x9xf32> to vector<64x1xf32>
    %28 = vector.extract_strided_slice %16 {offsets = [48, 2], sizes = [64, 1], strides = [1, 1]} : vector<112x9xf32> to vector<64x1xf32>
    %29 = vector.extract_strided_slice %16 {offsets = [48, 3], sizes = [64, 1], strides = [1, 1]} : vector<112x9xf32> to vector<64x1xf32>
    %30 = vector.extract_strided_slice %16 {offsets = [48, 4], sizes = [64, 1], strides = [1, 1]} : vector<112x9xf32> to vector<64x1xf32>
    %31 = vector.extract_strided_slice %16 {offsets = [48, 5], sizes = [64, 1], strides = [1, 1]} : vector<112x9xf32> to vector<64x1xf32>
    %32 = vector.extract_strided_slice %16 {offsets = [48, 6], sizes = [64, 1], strides = [1, 1]} : vector<112x9xf32> to vector<64x1xf32>
    %33 = vector.extract_strided_slice %16 {offsets = [48, 7], sizes = [64, 1], strides = [1, 1]} : vector<112x9xf32> to vector<64x1xf32>
    %34 = vector.extract_strided_slice %16 {offsets = [48, 8], sizes = [64, 1], strides = [1, 1]} : vector<112x9xf32> to vector<64x1xf32>
    %c0_16 = arith.constant 0 : index
    %c0_17 = arith.constant 0 : index
    %35 = vector.load %arg7[%c0_16, %c0_17] : memref<16x16xf32, #tpu.memory_space<vmem>>, vector<16x16xf32>
    %c0_18 = arith.constant 0 : index
    %c0_19 = arith.constant 0 : index
    %36 = vector.load %arg8[%c0_18, %c0_19] : memref<64x16xf32, #tpu.memory_space<vmem>>, vector<64x16xf32>
    %c0_20 = arith.constant 0 : index
    %c0_21 = arith.constant 0 : index
    %37 = vector.load %arg9[%c0_20, %c0_21] : memref<16x32xf32, #tpu.memory_space<vmem>>, vector<16x32xf32>
    %c0_i32 = arith.constant 0 : i32
    %38 = arith.index_cast %c0_i32 : i32 to index
    %c0_22 = arith.constant 0 : index
    %c0_23 = arith.constant 0 : index
    %39 = vector.load %arg1[%38, %c0_22, %c0_23] : memref<2x16x256xf32, #tpu.memory_space<vmem>>, vector<1x16x256xf32>
    %40 = vector.shape_cast %39 : vector<1x16x256xf32> to vector<16x256xf32>
    %cst = arith.constant dense<0.000000e+00> : vector<256xf32>
    %41 = vector.multi_reduction <add>, %40, %cst [0] : vector<16x256xf32> to vector<256xf32>
    %42 = vector.shape_cast %41 : vector<256xf32> to vector<1x256xf32>
    %cst_24 = arith.constant 1.600000e+01 : f32
    %43 = vector.broadcast %cst_24 : f32 to vector<1x256xf32>
    %44 = arith.divf %42, %43 : vector<1x256xf32>
    %45 = vector.broadcast %44 : vector<1x256xf32> to vector<16x256xf32>
    %46 = arith.subf %40, %45 : vector<16x256xf32>
    %47 = arith.mulf %46, %46 : vector<16x256xf32>
    %cst_25 = arith.constant dense<0.000000e+00> : vector<256xf32>
    %48 = vector.multi_reduction <add>, %47, %cst_25 [0] : vector<16x256xf32> to vector<256xf32>
    %49 = vector.shape_cast %48 : vector<256xf32> to vector<1x256xf32>
    %cst_26 = arith.constant 1.600000e+01 : f32
    %50 = vector.broadcast %cst_26 : f32 to vector<1x256xf32>
    %51 = arith.divf %49, %50 : vector<1x256xf32>
    %cst_27 = arith.constant 9.99999974E-6 : f32
    %52 = vector.broadcast %cst_27 : f32 to vector<1x256xf32>
    %53 = arith.addf %51, %52 : vector<1x256xf32>
    %54 = math.rsqrt %53 : vector<1x256xf32>
    %55 = vector.broadcast %54 : vector<1x256xf32> to vector<16x256xf32>
    %56 = arith.mulf %46, %55 : vector<16x256xf32>
    %57 = vector.broadcast %9 : vector<16x1xf32> to vector<16x256xf32>
    %58 = arith.mulf %56, %57 : vector<16x256xf32>
    %59 = vector.broadcast %10 : vector<16x1xf32> to vector<16x256xf32>
    %60 = arith.addf %58, %59 : vector<16x256xf32>
    %cst_28 = arith.constant dense<0.000000e+00> : vector<48x256xf32>
    %61 = tpu.matmul %15, %60, %cst_28 {dimension_numbers = #tpu.dot_dimension_numbers<[1], [0], [0], [1], [0, 0, 1, 1], [], []>} : vector<48x16xf32>, vector<16x256xf32>, vector<48x256xf32> -> vector<48x256xf32>
    %62 = vector.broadcast %21 : vector<48x1xf32> to vector<48x256xf32>
    %63 = arith.mulf %62, %61 : vector<48x256xf32>
    %c17_i32 = arith.constant 17 : i32
    %64 = tpu.dynamic_rotate %61 by %c17_i32 dim 1 : vector<48x256xf32>, i32 -> vector<48x256xf32>
    %65 = vector.broadcast %0 : vector<1x256xf32> to vector<48x256xf32>
    %66 = arith.mulf %65, %64 : vector<48x256xf32>
    %67 = vector.broadcast %17 : vector<48x1xf32> to vector<48x256xf32>
    %68 = arith.mulf %67, %66 : vector<48x256xf32>
    %69 = arith.addf %63, %68 : vector<48x256xf32>
    %c16_i32 = arith.constant 16 : i32
    %70 = tpu.dynamic_rotate %61 by %c16_i32 dim 1 : vector<48x256xf32>, i32 -> vector<48x256xf32>
    %71 = vector.broadcast %1 : vector<1x256xf32> to vector<48x256xf32>
    %72 = arith.mulf %71, %70 : vector<48x256xf32>
    %73 = vector.broadcast %18 : vector<48x1xf32> to vector<48x256xf32>
    %74 = arith.mulf %73, %72 : vector<48x256xf32>
    %75 = arith.addf %69, %74 : vector<48x256xf32>
    %c15_i32 = arith.constant 15 : i32
    %76 = tpu.dynamic_rotate %61 by %c15_i32 dim 1 : vector<48x256xf32>, i32 -> vector<48x256xf32>
    %77 = vector.broadcast %2 : vector<1x256xf32> to vector<48x256xf32>
    %78 = arith.mulf %77, %76 : vector<48x256xf32>
    %79 = vector.broadcast %19 : vector<48x1xf32> to vector<48x256xf32>
    %80 = arith.mulf %79, %78 : vector<48x256xf32>
    %81 = arith.addf %75, %80 : vector<48x256xf32>
    %c1_i32 = arith.constant 1 : i32
    %82 = tpu.dynamic_rotate %61 by %c1_i32 dim 1 : vector<48x256xf32>, i32 -> vector<48x256xf32>
    %83 = vector.broadcast %3 : vector<1x256xf32> to vector<48x256xf32>
    %84 = arith.mulf %83, %82 : vector<48x256xf32>
    %85 = vector.broadcast %20 : vector<48x1xf32> to vector<48x256xf32>
    %86 = arith.mulf %85, %84 : vector<48x256xf32>
    %87 = arith.addf %81, %86 : vector<48x256xf32>
    %c255_i32 = arith.constant 255 : i32
    %88 = tpu.dynamic_rotate %61 by %c255_i32 dim 1 : vector<48x256xf32>, i32 -> vector<48x256xf32>
    %89 = vector.broadcast %4 : vector<1x256xf32> to vector<48x256xf32>
    %90 = arith.mulf %89, %88 : vector<48x256xf32>
    %91 = vector.broadcast %22 : vector<48x1xf32> to vector<48x256xf32>
    %92 = arith.mulf %91, %90 : vector<48x256xf32>
    %93 = arith.addf %87, %92 : vector<48x256xf32>
    %c241_i32 = arith.constant 241 : i32
    %94 = tpu.dynamic_rotate %61 by %c241_i32 dim 1 : vector<48x256xf32>, i32 -> vector<48x256xf32>
    %95 = vector.broadcast %5 : vector<1x256xf32> to vector<48x256xf32>
    %96 = arith.mulf %95, %94 : vector<48x256xf32>
    %97 = vector.broadcast %23 : vector<48x1xf32> to vector<48x256xf32>
    %98 = arith.mulf %97, %96 : vector<48x256xf32>
    %99 = arith.addf %93, %98 : vector<48x256xf32>
    %c240_i32 = arith.constant 240 : i32
    %100 = tpu.dynamic_rotate %61 by %c240_i32 dim 1 : vector<48x256xf32>, i32 -> vector<48x256xf32>
    %101 = vector.broadcast %6 : vector<1x256xf32> to vector<48x256xf32>
    %102 = arith.mulf %101, %100 : vector<48x256xf32>
    %103 = vector.broadcast %24 : vector<48x1xf32> to vector<48x256xf32>
    %104 = arith.mulf %103, %102 : vector<48x256xf32>
    %105 = arith.addf %99, %104 : vector<48x256xf32>
    %c239_i32 = arith.constant 239 : i32
    %106 = tpu.dynamic_rotate %61 by %c239_i32 dim 1 : vector<48x256xf32>, i32 -> vector<48x256xf32>
    %107 = vector.broadcast %7 : vector<1x256xf32> to vector<48x256xf32>
    %108 = arith.mulf %107, %106 : vector<48x256xf32>
    %109 = vector.broadcast %25 : vector<48x1xf32> to vector<48x256xf32>
    %110 = arith.mulf %109, %108 : vector<48x256xf32>
    %111 = arith.addf %105, %110 : vector<48x256xf32>
    %112 = vector.extract_strided_slice %111 {offsets = [0, 0], sizes = [16, 256], strides = [1, 1]} : vector<48x256xf32> to vector<16x256xf32>
    %113 = vector.extract_strided_slice %111 {offsets = [16, 0], sizes = [16, 256], strides = [1, 1]} : vector<48x256xf32> to vector<16x256xf32>
    %114 = vector.extract_strided_slice %111 {offsets = [32, 0], sizes = [16, 256], strides = [1, 1]} : vector<48x256xf32> to vector<16x256xf32>
    %115 = arith.mulf %112, %112 : vector<16x256xf32>
    %cst_29 = arith.constant dense<0.000000e+00> : vector<16xf32>
    %116 = vector.multi_reduction <add>, %115, %cst_29 [1] : vector<16x256xf32> to vector<16xf32>
    %117 = vector.shape_cast %116 : vector<16xf32> to vector<16x1xf32>
    %cst_30 = arith.constant 1.000000e-24 : f32
    %118 = vector.broadcast %cst_30 : f32 to vector<16x1xf32>
    %119 = arith.maximumf %117, %118 : vector<16x1xf32>
    %120 = math.rsqrt %119 : vector<16x1xf32>
    %121 = vector.broadcast %120 : vector<16x1xf32> to vector<16x256xf32>
    %122 = arith.mulf %112, %121 : vector<16x256xf32>
    %123 = vector.broadcast %13 : vector<16x1xf32> to vector<16x256xf32>
    %124 = arith.mulf %122, %123 : vector<16x256xf32>
    %125 = arith.mulf %113, %113 : vector<16x256xf32>
    %cst_31 = arith.constant dense<0.000000e+00> : vector<16xf32>
    %126 = vector.multi_reduction <add>, %125, %cst_31 [1] : vector<16x256xf32> to vector<16xf32>
    %127 = vector.shape_cast %126 : vector<16xf32> to vector<16x1xf32>
    %cst_32 = arith.constant 1.000000e-24 : f32
    %128 = vector.broadcast %cst_32 : f32 to vector<16x1xf32>
    %129 = arith.maximumf %127, %128 : vector<16x1xf32>
    %130 = math.rsqrt %129 : vector<16x1xf32>
    %131 = vector.broadcast %130 : vector<16x1xf32> to vector<16x256xf32>
    %132 = arith.mulf %113, %131 : vector<16x256xf32>
    %133 = tpu.transpose %132, [1, 0] : vector<16x256xf32> -> vector<256x16xf32>
    %cst_33 = arith.constant dense<0.000000e+00> : vector<16x16xf32>
    %134 = tpu.matmul %124, %133, %cst_33 {dimension_numbers = #tpu.dot_dimension_numbers<[1], [0], [0], [1], [0, 0, 1, 1], [], []>} : vector<16x256xf32>, vector<256x16xf32>, vector<16x16xf32> -> vector<16x16xf32>
    %135 = arith.addf %134, %14 : vector<16x16xf32>
    %cst_34 = arith.constant dense<0xFF800000> : vector<16xf32>
    %136 = vector.multi_reduction <maximumf>, %135, %cst_34 [1] : vector<16x16xf32> to vector<16xf32>
    %137 = vector.shape_cast %136 : vector<16xf32> to vector<16x1xf32>
    %138 = vector.broadcast %137 : vector<16x1xf32> to vector<16x16xf32>
    %139 = arith.subf %135, %138 : vector<16x16xf32>
    %140 = math.exp %139 : vector<16x16xf32>
    %cst_35 = arith.constant dense<0.000000e+00> : vector<16xf32>
    %141 = vector.multi_reduction <add>, %140, %cst_35 [1] : vector<16x16xf32> to vector<16xf32>
    %142 = vector.shape_cast %141 : vector<16xf32> to vector<16x1xf32>
    %143 = tpu.reciprocal %142 {approx = true} : vector<16x1xf32> -> vector<16x1xf32>
    %144 = vector.broadcast %143 : vector<16x1xf32> to vector<16x16xf32>
    %145 = arith.mulf %140, %144 : vector<16x16xf32>
    %cst_36 = arith.constant dense<0.000000e+00> : vector<16x256xf32>
    %146 = tpu.matmul %145, %114, %cst_36 {dimension_numbers = #tpu.dot_dimension_numbers<[1], [0], [0], [1], [0, 0, 1, 1], [], []>} : vector<16x16xf32>, vector<16x256xf32>, vector<16x256xf32> -> vector<16x256xf32>
    %cst_37 = arith.constant dense<0.000000e+00> : vector<16x256xf32>
    %147 = tpu.matmul %35, %146, %cst_37 {dimension_numbers = #tpu.dot_dimension_numbers<[1], [0], [0], [1], [0, 0, 1, 1], [], []>} : vector<16x16xf32>, vector<16x256xf32>, vector<16x256xf32> -> vector<16x256xf32>
    %148 = arith.addf %40, %147 : vector<16x256xf32>
    %cst_38 = arith.constant dense<0.000000e+00> : vector<256xf32>
    %149 = vector.multi_reduction <add>, %148, %cst_38 [0] : vector<16x256xf32> to vector<256xf32>
    %150 = vector.shape_cast %149 : vector<256xf32> to vector<1x256xf32>
    %cst_39 = arith.constant 1.600000e+01 : f32
    %151 = vector.broadcast %cst_39 : f32 to vector<1x256xf32>
    %152 = arith.divf %150, %151 : vector<1x256xf32>
    %153 = vector.broadcast %152 : vector<1x256xf32> to vector<16x256xf32>
    %154 = arith.subf %148, %153 : vector<16x256xf32>
    %155 = arith.mulf %154, %154 : vector<16x256xf32>
    %cst_40 = arith.constant dense<0.000000e+00> : vector<256xf32>
    %156 = vector.multi_reduction <add>, %155, %cst_40 [0] : vector<16x256xf32> to vector<256xf32>
    %157 = vector.shape_cast %156 : vector<256xf32> to vector<1x256xf32>
    %cst_41 = arith.constant 1.600000e+01 : f32
    %158 = vector.broadcast %cst_41 : f32 to vector<1x256xf32>
    %159 = arith.divf %157, %158 : vector<1x256xf32>
    %cst_42 = arith.constant 9.99999974E-6 : f32
    %160 = vector.broadcast %cst_42 : f32 to vector<1x256xf32>
    %161 = arith.addf %159, %160 : vector<1x256xf32>
    %162 = math.rsqrt %161 : vector<1x256xf32>
    %163 = vector.broadcast %162 : vector<1x256xf32> to vector<16x256xf32>
    %164 = arith.mulf %154, %163 : vector<16x256xf32>
    %165 = vector.broadcast %11 : vector<16x1xf32> to vector<16x256xf32>
    %166 = arith.mulf %164, %165 : vector<16x256xf32>
    %167 = vector.broadcast %12 : vector<16x1xf32> to vector<16x256xf32>
    %168 = arith.addf %166, %167 : vector<16x256xf32>
    %cst_43 = arith.constant dense<0.000000e+00> : vector<64x256xf32>
    %169 = tpu.matmul %36, %168, %cst_43 {dimension_numbers = #tpu.dot_dimension_numbers<[1], [0], [0], [1], [0, 0, 1, 1], [], []>} : vector<64x16xf32>, vector<16x256xf32>, vector<64x256xf32> -> vector<64x256xf32>
    %170 = vector.broadcast %30 : vector<64x1xf32> to vector<64x256xf32>
    %171 = arith.mulf %170, %169 : vector<64x256xf32>
    %c17_i32_44 = arith.constant 17 : i32
    %172 = tpu.dynamic_rotate %169 by %c17_i32_44 dim 1 : vector<64x256xf32>, i32 -> vector<64x256xf32>
    %173 = vector.broadcast %0 : vector<1x256xf32> to vector<64x256xf32>
    %174 = arith.mulf %173, %172 : vector<64x256xf32>
    %175 = vector.broadcast %26 : vector<64x1xf32> to vector<64x256xf32>
    %176 = arith.mulf %175, %174 : vector<64x256xf32>
    %177 = arith.addf %171, %176 : vector<64x256xf32>
    %c16_i32_45 = arith.constant 16 : i32
    %178 = tpu.dynamic_rotate %169 by %c16_i32_45 dim 1 : vector<64x256xf32>, i32 -> vector<64x256xf32>
    %179 = vector.broadcast %1 : vector<1x256xf32> to vector<64x256xf32>
    %180 = arith.mulf %179, %178 : vector<64x256xf32>
    %181 = vector.broadcast %27 : vector<64x1xf32> to vector<64x256xf32>
    %182 = arith.mulf %181, %180 : vector<64x256xf32>
    %183 = arith.addf %177, %182 : vector<64x256xf32>
    %c15_i32_46 = arith.constant 15 : i32
    %184 = tpu.dynamic_rotate %169 by %c15_i32_46 dim 1 : vector<64x256xf32>, i32 -> vector<64x256xf32>
    %185 = vector.broadcast %2 : vector<1x256xf32> to vector<64x256xf32>
    %186 = arith.mulf %185, %184 : vector<64x256xf32>
    %187 = vector.broadcast %28 : vector<64x1xf32> to vector<64x256xf32>
    %188 = arith.mulf %187, %186 : vector<64x256xf32>
    %189 = arith.addf %183, %188 : vector<64x256xf32>
    %c1_i32_47 = arith.constant 1 : i32
    %190 = tpu.dynamic_rotate %169 by %c1_i32_47 dim 1 : vector<64x256xf32>, i32 -> vector<64x256xf32>
    %191 = vector.broadcast %3 : vector<1x256xf32> to vector<64x256xf32>
    %192 = arith.mulf %191, %190 : vector<64x256xf32>
    %193 = vector.broadcast %29 : vector<64x1xf32> to vector<64x256xf32>
    %194 = arith.mulf %193, %192 : vector<64x256xf32>
    %195 = arith.addf %189, %194 : vector<64x256xf32>
    %c255_i32_48 = arith.constant 255 : i32
    %196 = tpu.dynamic_rotate %169 by %c255_i32_48 dim 1 : vector<64x256xf32>, i32 -> vector<64x256xf32>
    %197 = vector.broadcast %4 : vector<1x256xf32> to vector<64x256xf32>
    %198 = arith.mulf %197, %196 : vector<64x256xf32>
    %199 = vector.broadcast %31 : vector<64x1xf32> to vector<64x256xf32>
    %200 = arith.mulf %199, %198 : vector<64x256xf32>
    %201 = arith.addf %195, %200 : vector<64x256xf32>
    %c241_i32_49 = arith.constant 241 : i32
    %202 = tpu.dynamic_rotate %169 by %c241_i32_49 dim 1 : vector<64x256xf32>, i32 -> vector<64x256xf32>
    %203 = vector.broadcast %5 : vector<1x256xf32> to vector<64x256xf32>
    %204 = arith.mulf %203, %202 : vector<64x256xf32>
    %205 = vector.broadcast %32 : vector<64x1xf32> to vector<64x256xf32>
    %206 = arith.mulf %205, %204 : vector<64x256xf32>
    %207 = arith.addf %201, %206 : vector<64x256xf32>
    %c240_i32_50 = arith.constant 240 : i32
    %208 = tpu.dynamic_rotate %169 by %c240_i32_50 dim 1 : vector<64x256xf32>, i32 -> vector<64x256xf32>
    %209 = vector.broadcast %6 : vector<1x256xf32> to vector<64x256xf32>
    %210 = arith.mulf %209, %208 : vector<64x256xf32>
    %211 = vector.broadcast %33 : vector<64x1xf32> to vector<64x256xf32>
    %212 = arith.mulf %211, %210 : vector<64x256xf32>
    %213 = arith.addf %207, %212 : vector<64x256xf32>
    %c239_i32_51 = arith.constant 239 : i32
    %214 = tpu.dynamic_rotate %169 by %c239_i32_51 dim 1 : vector<64x256xf32>, i32 -> vector<64x256xf32>
    %215 = vector.broadcast %7 : vector<1x256xf32> to vector<64x256xf32>
    %216 = arith.mulf %215, %214 : vector<64x256xf32>
    %217 = vector.broadcast %34 : vector<64x1xf32> to vector<64x256xf32>
    %218 = arith.mulf %217, %216 : vector<64x256xf32>
    %219 = arith.addf %213, %218 : vector<64x256xf32>
    %220 = vector.extract_strided_slice %219 {offsets = [0, 0], sizes = [32, 256], strides = [1, 1]} : vector<64x256xf32> to vector<32x256xf32>
    %221 = arith.mulf %220, %220 : vector<32x256xf32>
    %222 = arith.mulf %220, %221 : vector<32x256xf32>
    %cst_52 = arith.constant 4.471500e-02 : f32
    %223 = vector.broadcast %cst_52 : f32 to vector<32x256xf32>
    %224 = arith.mulf %223, %222 : vector<32x256xf32>
    %225 = arith.addf %220, %224 : vector<32x256xf32>
    %cst_53 = arith.constant 0.797884583 : f32
    %226 = vector.broadcast %cst_53 : f32 to vector<32x256xf32>
    %227 = arith.mulf %226, %225 : vector<32x256xf32>
    %228 = math.tanh %227 : vector<32x256xf32>
    %cst_54 = arith.constant 1.000000e+00 : f32
    %229 = vector.broadcast %cst_54 : f32 to vector<32x256xf32>
    %230 = arith.addf %229, %228 : vector<32x256xf32>
    %cst_55 = arith.constant 5.000000e-01 : f32
    %231 = vector.broadcast %cst_55 : f32 to vector<32x256xf32>
    %232 = arith.mulf %231, %230 : vector<32x256xf32>
    %233 = arith.mulf %220, %232 : vector<32x256xf32>
    %234 = vector.extract_strided_slice %219 {offsets = [32, 0], sizes = [32, 256], strides = [1, 1]} : vector<64x256xf32> to vector<32x256xf32>
    %235 = arith.mulf %233, %234 : vector<32x256xf32>
    %cst_56 = arith.constant dense<0.000000e+00> : vector<16x256xf32>
    %236 = tpu.matmul %37, %235, %cst_56 {dimension_numbers = #tpu.dot_dimension_numbers<[1], [0], [0], [1], [0, 0, 1, 1], [], []>} : vector<16x32xf32>, vector<32x256xf32>, vector<16x256xf32> -> vector<16x256xf32>
    %237 = arith.addf %148, %236 : vector<16x256xf32>
    %238 = arith.index_cast %c0_i32 : i32 to index
    %c0_57 = arith.constant 0 : index
    %c0_58 = arith.constant 0 : index
    %239 = vector.load %arg10[%238, %c0_57, %c0_58] : memref<2x16x256xf32, #tpu.memory_space<vmem>>, vector<1x16x256xf32>
    %240 = vector.shape_cast %239 : vector<1x16x256xf32> to vector<16x256xf32>
    %241 = vector.shape_cast %237 : vector<16x256xf32> to vector<1x16x256xf32>
    tpu.vector_store %arg10[%238, %c0_57, %c0_58], %241 {strides = array<i32>} : memref<2x16x256xf32, #tpu.memory_space<vmem>>, vector<1x16x256xf32>,
    %c1_i32_59 = arith.constant 1 : i32
    %242 = arith.index_cast %c1_i32_59 : i32 to index
    %c0_60 = arith.constant 0 : index
    %c0_61 = arith.constant 0 : index
    %243 = vector.load %arg1[%242, %c0_60, %c0_61] : memref<2x16x256xf32, #tpu.memory_space<vmem>>, vector<1x16x256xf32>
    %244 = vector.shape_cast %243 : vector<1x16x256xf32> to vector<16x256xf32>
    %cst_62 = arith.constant dense<0.000000e+00> : vector<256xf32>
    %245 = vector.multi_reduction <add>, %244, %cst_62 [0] : vector<16x256xf32> to vector<256xf32>
    %246 = vector.shape_cast %245 : vector<256xf32> to vector<1x256xf32>
    %cst_63 = arith.constant 1.600000e+01 : f32
    %247 = vector.broadcast %cst_63 : f32 to vector<1x256xf32>
    %248 = arith.divf %246, %247 : vector<1x256xf32>
    %249 = vector.broadcast %248 : vector<1x256xf32> to vector<16x256xf32>
    %250 = arith.subf %244, %249 : vector<16x256xf32>
    %251 = arith.mulf %250, %250 : vector<16x256xf32>
    %cst_64 = arith.constant dense<0.000000e+00> : vector<256xf32>
    %252 = vector.multi_reduction <add>, %251, %cst_64 [0] : vector<16x256xf32> to vector<256xf32>
    %253 = vector.shape_cast %252 : vector<256xf32> to vector<1x256xf32>
    %cst_65 = arith.constant 1.600000e+01 : f32
    %254 = vector.broadcast %cst_65 : f32 to vector<1x256xf32>
    %255 = arith.divf %253, %254 : vector<1x256xf32>
    %cst_66 = arith.constant 9.99999974E-6 : f32
    %256 = vector.broadcast %cst_66 : f32 to vector<1x256xf32>
    %257 = arith.addf %255, %256 : vector<1x256xf32>
    %258 = math.rsqrt %257 : vector<1x256xf32>
    %259 = vector.broadcast %258 : vector<1x256xf32> to vector<16x256xf32>
    %260 = arith.mulf %250, %259 : vector<16x256xf32>
    %261 = vector.broadcast %9 : vector<16x1xf32> to vector<16x256xf32>
    %262 = arith.mulf %260, %261 : vector<16x256xf32>
    %263 = vector.broadcast %10 : vector<16x1xf32> to vector<16x256xf32>
    %264 = arith.addf %262, %263 : vector<16x256xf32>
    %cst_67 = arith.constant dense<0.000000e+00> : vector<48x256xf32>
    %265 = tpu.matmul %15, %264, %cst_67 {dimension_numbers = #tpu.dot_dimension_numbers<[1], [0], [0], [1], [0, 0, 1, 1], [], []>} : vector<48x16xf32>, vector<16x256xf32>, vector<48x256xf32> -> vector<48x256xf32>
    %266 = vector.broadcast %21 : vector<48x1xf32> to vector<48x256xf32>
    %267 = arith.mulf %266, %265 : vector<48x256xf32>
    %c17_i32_68 = arith.constant 17 : i32
    %268 = tpu.dynamic_rotate %265 by %c17_i32_68 dim 1 : vector<48x256xf32>, i32 -> vector<48x256xf32>
    %269 = vector.broadcast %0 : vector<1x256xf32> to vector<48x256xf32>
    %270 = arith.mulf %269, %268 : vector<48x256xf32>
    %271 = vector.broadcast %17 : vector<48x1xf32> to vector<48x256xf32>
    %272 = arith.mulf %271, %270 : vector<48x256xf32>
    %273 = arith.addf %267, %272 : vector<48x256xf32>
    %c16_i32_69 = arith.constant 16 : i32
    %274 = tpu.dynamic_rotate %265 by %c16_i32_69 dim 1 : vector<48x256xf32>, i32 -> vector<48x256xf32>
    %275 = vector.broadcast %1 : vector<1x256xf32> to vector<48x256xf32>
    %276 = arith.mulf %275, %274 : vector<48x256xf32>
    %277 = vector.broadcast %18 : vector<48x1xf32> to vector<48x256xf32>
    %278 = arith.mulf %277, %276 : vector<48x256xf32>
    %279 = arith.addf %273, %278 : vector<48x256xf32>
    %c15_i32_70 = arith.constant 15 : i32
    %280 = tpu.dynamic_rotate %265 by %c15_i32_70 dim 1 : vector<48x256xf32>, i32 -> vector<48x256xf32>
    %281 = vector.broadcast %2 : vector<1x256xf32> to vector<48x256xf32>
    %282 = arith.mulf %281, %280 : vector<48x256xf32>
    %283 = vector.broadcast %19 : vector<48x1xf32> to vector<48x256xf32>
    %284 = arith.mulf %283, %282 : vector<48x256xf32>
    %285 = arith.addf %279, %284 : vector<48x256xf32>
    %c1_i32_71 = arith.constant 1 : i32
    %286 = tpu.dynamic_rotate %265 by %c1_i32_71 dim 1 : vector<48x256xf32>, i32 -> vector<48x256xf32>
    %287 = vector.broadcast %3 : vector<1x256xf32> to vector<48x256xf32>
    %288 = arith.mulf %287, %286 : vector<48x256xf32>
    %289 = vector.broadcast %20 : vector<48x1xf32> to vector<48x256xf32>
    %290 = arith.mulf %289, %288 : vector<48x256xf32>
    %291 = arith.addf %285, %290 : vector<48x256xf32>
    %c255_i32_72 = arith.constant 255 : i32
    %292 = tpu.dynamic_rotate %265 by %c255_i32_72 dim 1 : vector<48x256xf32>, i32 -> vector<48x256xf32>
    %293 = vector.broadcast %4 : vector<1x256xf32> to vector<48x256xf32>
    %294 = arith.mulf %293, %292 : vector<48x256xf32>
    %295 = vector.broadcast %22 : vector<48x1xf32> to vector<48x256xf32>
    %296 = arith.mulf %295, %294 : vector<48x256xf32>
    %297 = arith.addf %291, %296 : vector<48x256xf32>
    %c241_i32_73 = arith.constant 241 : i32
    %298 = tpu.dynamic_rotate %265 by %c241_i32_73 dim 1 : vector<48x256xf32>, i32 -> vector<48x256xf32>
    %299 = vector.broadcast %5 : vector<1x256xf32> to vector<48x256xf32>
    %300 = arith.mulf %299, %298 : vector<48x256xf32>
    %301 = vector.broadcast %23 : vector<48x1xf32> to vector<48x256xf32>
    %302 = arith.mulf %301, %300 : vector<48x256xf32>
    %303 = arith.addf %297, %302 : vector<48x256xf32>
    %c240_i32_74 = arith.constant 240 : i32
    %304 = tpu.dynamic_rotate %265 by %c240_i32_74 dim 1 : vector<48x256xf32>, i32 -> vector<48x256xf32>
    %305 = vector.broadcast %6 : vector<1x256xf32> to vector<48x256xf32>
    %306 = arith.mulf %305, %304 : vector<48x256xf32>
    %307 = vector.broadcast %24 : vector<48x1xf32> to vector<48x256xf32>
    %308 = arith.mulf %307, %306 : vector<48x256xf32>
    %309 = arith.addf %303, %308 : vector<48x256xf32>
    %c239_i32_75 = arith.constant 239 : i32
    %310 = tpu.dynamic_rotate %265 by %c239_i32_75 dim 1 : vector<48x256xf32>, i32 -> vector<48x256xf32>
    %311 = vector.broadcast %7 : vector<1x256xf32> to vector<48x256xf32>
    %312 = arith.mulf %311, %310 : vector<48x256xf32>
    %313 = vector.broadcast %25 : vector<48x1xf32> to vector<48x256xf32>
    %314 = arith.mulf %313, %312 : vector<48x256xf32>
    %315 = arith.addf %309, %314 : vector<48x256xf32>
    %316 = vector.extract_strided_slice %315 {offsets = [0, 0], sizes = [16, 256], strides = [1, 1]} : vector<48x256xf32> to vector<16x256xf32>
    %317 = vector.extract_strided_slice %315 {offsets = [16, 0], sizes = [16, 256], strides = [1, 1]} : vector<48x256xf32> to vector<16x256xf32>
    %318 = vector.extract_strided_slice %315 {offsets = [32, 0], sizes = [16, 256], strides = [1, 1]} : vector<48x256xf32> to vector<16x256xf32>
    %319 = arith.mulf %316, %316 : vector<16x256xf32>
    %cst_76 = arith.constant dense<0.000000e+00> : vector<16xf32>
    %320 = vector.multi_reduction <add>, %319, %cst_76 [1] : vector<16x256xf32> to vector<16xf32>
    %321 = vector.shape_cast %320 : vector<16xf32> to vector<16x1xf32>
    %cst_77 = arith.constant 1.000000e-24 : f32
    %322 = vector.broadcast %cst_77 : f32 to vector<16x1xf32>
    %323 = arith.maximumf %321, %322 : vector<16x1xf32>
    %324 = math.rsqrt %323 : vector<16x1xf32>
    %325 = vector.broadcast %324 : vector<16x1xf32> to vector<16x256xf32>
    %326 = arith.mulf %316, %325 : vector<16x256xf32>
    %327 = vector.broadcast %13 : vector<16x1xf32> to vector<16x256xf32>
    %328 = arith.mulf %326, %327 : vector<16x256xf32>
    %329 = arith.mulf %317, %317 : vector<16x256xf32>
    %cst_78 = arith.constant dense<0.000000e+00> : vector<16xf32>
    %330 = vector.multi_reduction <add>, %329, %cst_78 [1] : vector<16x256xf32> to vector<16xf32>
    %331 = vector.shape_cast %330 : vector<16xf32> to vector<16x1xf32>
    %cst_79 = arith.constant 1.000000e-24 : f32
    %332 = vector.broadcast %cst_79 : f32 to vector<16x1xf32>
    %333 = arith.maximumf %331, %332 : vector<16x1xf32>
    %334 = math.rsqrt %333 : vector<16x1xf32>
    %335 = vector.broadcast %334 : vector<16x1xf32> to vector<16x256xf32>
    %336 = arith.mulf %317, %335 : vector<16x256xf32>
    %337 = tpu.transpose %336, [1, 0] : vector<16x256xf32> -> vector<256x16xf32>
    %cst_80 = arith.constant dense<0.000000e+00> : vector<16x16xf32>
    %338 = tpu.matmul %328, %337, %cst_80 {dimension_numbers = #tpu.dot_dimension_numbers<[1], [0], [0], [1], [0, 0, 1, 1], [], []>} : vector<16x256xf32>, vector<256x16xf32>, vector<16x16xf32> -> vector<16x16xf32>
    %339 = arith.addf %338, %14 : vector<16x16xf32>
    %cst_81 = arith.constant dense<0xFF800000> : vector<16xf32>
    %340 = vector.multi_reduction <maximumf>, %339, %cst_81 [1] : vector<16x16xf32> to vector<16xf32>
    %341 = vector.shape_cast %340 : vector<16xf32> to vector<16x1xf32>
    %342 = vector.broadcast %341 : vector<16x1xf32> to vector<16x16xf32>
    %343 = arith.subf %339, %342 : vector<16x16xf32>
    %344 = math.exp %343 : vector<16x16xf32>
    %cst_82 = arith.constant dense<0.000000e+00> : vector<16xf32>
    %345 = vector.multi_reduction <add>, %344, %cst_82 [1] : vector<16x16xf32> to vector<16xf32>
    %346 = vector.shape_cast %345 : vector<16xf32> to vector<16x1xf32>
    %347 = tpu.reciprocal %346 {approx = true} : vector<16x1xf32> -> vector<16x1xf32>
    %348 = vector.broadcast %347 : vector<16x1xf32> to vector<16x16xf32>
    %349 = arith.mulf %344, %348 : vector<16x16xf32>
    %cst_83 = arith.constant dense<0.000000e+00> : vector<16x256xf32>
    %350 = tpu.matmul %349, %318, %cst_83 {dimension_numbers = #tpu.dot_dimension_numbers<[1], [0], [0], [1], [0, 0, 1, 1], [], []>} : vector<16x16xf32>, vector<16x256xf32>, vector<16x256xf32> -> vector<16x256xf32>
    %cst_84 = arith.constant dense<0.000000e+00> : vector<16x256xf32>
    %351 = tpu.matmul %35, %350, %cst_84 {dimension_numbers = #tpu.dot_dimension_numbers<[1], [0], [0], [1], [0, 0, 1, 1], [], []>} : vector<16x16xf32>, vector<16x256xf32>, vector<16x256xf32> -> vector<16x256xf32>
    %352 = arith.addf %244, %351 : vector<16x256xf32>
    %cst_85 = arith.constant dense<0.000000e+00> : vector<256xf32>
    %353 = vector.multi_reduction <add>, %352, %cst_85 [0] : vector<16x256xf32> to vector<256xf32>
    %354 = vector.shape_cast %353 : vector<256xf32> to vector<1x256xf32>
    %cst_86 = arith.constant 1.600000e+01 : f32
    %355 = vector.broadcast %cst_86 : f32 to vector<1x256xf32>
    %356 = arith.divf %354, %355 : vector<1x256xf32>
    %357 = vector.broadcast %356 : vector<1x256xf32> to vector<16x256xf32>
    %358 = arith.subf %352, %357 : vector<16x256xf32>
    %359 = arith.mulf %358, %358 : vector<16x256xf32>
    %cst_87 = arith.constant dense<0.000000e+00> : vector<256xf32>
    %360 = vector.multi_reduction <add>, %359, %cst_87 [0] : vector<16x256xf32> to vector<256xf32>
    %361 = vector.shape_cast %360 : vector<256xf32> to vector<1x256xf32>
    %cst_88 = arith.constant 1.600000e+01 : f32
    %362 = vector.broadcast %cst_88 : f32 to vector<1x256xf32>
    %363 = arith.divf %361, %362 : vector<1x256xf32>
    %cst_89 = arith.constant 9.99999974E-6 : f32
    %364 = vector.broadcast %cst_89 : f32 to vector<1x256xf32>
    %365 = arith.addf %363, %364 : vector<1x256xf32>
    %366 = math.rsqrt %365 : vector<1x256xf32>
    %367 = vector.broadcast %366 : vector<1x256xf32> to vector<16x256xf32>
    %368 = arith.mulf %358, %367 : vector<16x256xf32>
    %369 = vector.broadcast %11 : vector<16x1xf32> to vector<16x256xf32>
    %370 = arith.mulf %368, %369 : vector<16x256xf32>
    %371 = vector.broadcast %12 : vector<16x1xf32> to vector<16x256xf32>
    %372 = arith.addf %370, %371 : vector<16x256xf32>
    %cst_90 = arith.constant dense<0.000000e+00> : vector<64x256xf32>
    %373 = tpu.matmul %36, %372, %cst_90 {dimension_numbers = #tpu.dot_dimension_numbers<[1], [0], [0], [1], [0, 0, 1, 1], [], []>} : vector<64x16xf32>, vector<16x256xf32>, vector<64x256xf32> -> vector<64x256xf32>
    %374 = vector.broadcast %30 : vector<64x1xf32> to vector<64x256xf32>
    %375 = arith.mulf %374, %373 : vector<64x256xf32>
    %c17_i32_91 = arith.constant 17 : i32
    %376 = tpu.dynamic_rotate %373 by %c17_i32_91 dim 1 : vector<64x256xf32>, i32 -> vector<64x256xf32>
    %377 = vector.broadcast %0 : vector<1x256xf32> to vector<64x256xf32>
    %378 = arith.mulf %377, %376 : vector<64x256xf32>
    %379 = vector.broadcast %26 : vector<64x1xf32> to vector<64x256xf32>
    %380 = arith.mulf %379, %378 : vector<64x256xf32>
    %381 = arith.addf %375, %380 : vector<64x256xf32>
    %c16_i32_92 = arith.constant 16 : i32
    %382 = tpu.dynamic_rotate %373 by %c16_i32_92 dim 1 : vector<64x256xf32>, i32 -> vector<64x256xf32>
    %383 = vector.broadcast %1 : vector<1x256xf32> to vector<64x256xf32>
    %384 = arith.mulf %383, %382 : vector<64x256xf32>
    %385 = vector.broadcast %27 : vector<64x1xf32> to vector<64x256xf32>
    %386 = arith.mulf %385, %384 : vector<64x256xf32>
    %387 = arith.addf %381, %386 : vector<64x256xf32>
    %c15_i32_93 = arith.constant 15 : i32
    %388 = tpu.dynamic_rotate %373 by %c15_i32_93 dim 1 : vector<64x256xf32>, i32 -> vector<64x256xf32>
    %389 = vector.broadcast %2 : vector<1x256xf32> to vector<64x256xf32>
    %390 = arith.mulf %389, %388 : vector<64x256xf32>
    %391 = vector.broadcast %28 : vector<64x1xf32> to vector<64x256xf32>
    %392 = arith.mulf %391, %390 : vector<64x256xf32>
    %393 = arith.addf %387, %392 : vector<64x256xf32>
    %c1_i32_94 = arith.constant 1 : i32
    %394 = tpu.dynamic_rotate %373 by %c1_i32_94 dim 1 : vector<64x256xf32>, i32 -> vector<64x256xf32>
    %395 = vector.broadcast %3 : vector<1x256xf32> to vector<64x256xf32>
    %396 = arith.mulf %395, %394 : vector<64x256xf32>
    %397 = vector.broadcast %29 : vector<64x1xf32> to vector<64x256xf32>
    %398 = arith.mulf %397, %396 : vector<64x256xf32>
    %399 = arith.addf %393, %398 : vector<64x256xf32>
    %c255_i32_95 = arith.constant 255 : i32
    %400 = tpu.dynamic_rotate %373 by %c255_i32_95 dim 1 : vector<64x256xf32>, i32 -> vector<64x256xf32>
    %401 = vector.broadcast %4 : vector<1x256xf32> to vector<64x256xf32>
    %402 = arith.mulf %401, %400 : vector<64x256xf32>
    %403 = vector.broadcast %31 : vector<64x1xf32> to vector<64x256xf32>
    %404 = arith.mulf %403, %402 : vector<64x256xf32>
    %405 = arith.addf %399, %404 : vector<64x256xf32>
    %c241_i32_96 = arith.constant 241 : i32
    %406 = tpu.dynamic_rotate %373 by %c241_i32_96 dim 1 : vector<64x256xf32>, i32 -> vector<64x256xf32>
    %407 = vector.broadcast %5 : vector<1x256xf32> to vector<64x256xf32>
    %408 = arith.mulf %407, %406 : vector<64x256xf32>
    %409 = vector.broadcast %32 : vector<64x1xf32> to vector<64x256xf32>
    %410 = arith.mulf %409, %408 : vector<64x256xf32>
    %411 = arith.addf %405, %410 : vector<64x256xf32>
    %c240_i32_97 = arith.constant 240 : i32
    %412 = tpu.dynamic_rotate %373 by %c240_i32_97 dim 1 : vector<64x256xf32>, i32 -> vector<64x256xf32>
    %413 = vector.broadcast %6 : vector<1x256xf32> to vector<64x256xf32>
    %414 = arith.mulf %413, %412 : vector<64x256xf32>
    %415 = vector.broadcast %33 : vector<64x1xf32> to vector<64x256xf32>
    %416 = arith.mulf %415, %414 : vector<64x256xf32>
    %417 = arith.addf %411, %416 : vector<64x256xf32>
    %c239_i32_98 = arith.constant 239 : i32
    %418 = tpu.dynamic_rotate %373 by %c239_i32_98 dim 1 : vector<64x256xf32>, i32 -> vector<64x256xf32>
    %419 = vector.broadcast %7 : vector<1x256xf32> to vector<64x256xf32>
    %420 = arith.mulf %419, %418 : vector<64x256xf32>
    %421 = vector.broadcast %34 : vector<64x1xf32> to vector<64x256xf32>
    %422 = arith.mulf %421, %420 : vector<64x256xf32>
    %423 = arith.addf %417, %422 : vector<64x256xf32>
    %424 = vector.extract_strided_slice %423 {offsets = [0, 0], sizes = [32, 256], strides = [1, 1]} : vector<64x256xf32> to vector<32x256xf32>
    %425 = arith.mulf %424, %424 : vector<32x256xf32>
    %426 = arith.mulf %424, %425 : vector<32x256xf32>
    %cst_99 = arith.constant 4.471500e-02 : f32
    %427 = vector.broadcast %cst_99 : f32 to vector<32x256xf32>
    %428 = arith.mulf %427, %426 : vector<32x256xf32>
    %429 = arith.addf %424, %428 : vector<32x256xf32>
    %cst_100 = arith.constant 0.797884583 : f32
    %430 = vector.broadcast %cst_100 : f32 to vector<32x256xf32>
    %431 = arith.mulf %430, %429 : vector<32x256xf32>
    %432 = math.tanh %431 : vector<32x256xf32>
    %cst_101 = arith.constant 1.000000e+00 : f32
    %433 = vector.broadcast %cst_101 : f32 to vector<32x256xf32>
    %434 = arith.addf %433, %432 : vector<32x256xf32>
    %cst_102 = arith.constant 5.000000e-01 : f32
    %435 = vector.broadcast %cst_102 : f32 to vector<32x256xf32>
    %436 = arith.mulf %435, %434 : vector<32x256xf32>
    %437 = arith.mulf %424, %436 : vector<32x256xf32>
    %438 = vector.extract_strided_slice %423 {offsets = [32, 0], sizes = [32, 256], strides = [1, 1]} : vector<64x256xf32> to vector<32x256xf32>
    %439 = arith.mulf %437, %438 : vector<32x256xf32>
    %cst_103 = arith.constant dense<0.000000e+00> : vector<16x256xf32>
    %440 = tpu.matmul %37, %439, %cst_103 {dimension_numbers = #tpu.dot_dimension_numbers<[1], [0], [0], [1], [0, 0, 1, 1], [], []>} : vector<16x32xf32>, vector<32x256xf32>, vector<16x256xf32> -> vector<16x256xf32>
    %441 = arith.addf %352, %440 : vector<16x256xf32>
    %442 = arith.index_cast %c1_i32_59 : i32 to index
    %c0_104 = arith.constant 0 : index
    %c0_105 = arith.constant 0 : index
    %443 = vector.load %arg10[%442, %c0_104, %c0_105] : memref<2x16x256xf32, #tpu.memory_space<vmem>>, vector<1x16x256xf32>
    %444 = vector.shape_cast %443 : vector<1x16x256xf32> to vector<16x256xf32>
    %445 = vector.shape_cast %441 : vector<16x256xf32> to vector<1x16x256xf32>
    tpu.vector_store %arg10[%442, %c0_104, %c0_105], %445 {strides = array<i32>} : memref<2x16x256xf32, #tpu.memory_space<vmem>>, vector<1x16x256xf32>,
    %c2_i32 = arith.constant 2 : i32
    return
  }
  func.func @transform_0(%arg0: i32) -> (i32, i32, i32) {
    %c0_i32 = arith.constant 0 : i32
    %c0_i32_0 = arith.constant 0 : i32
    %c0_i32_1 = arith.constant 0 : i32
    return %arg0, %c0_i32, %c0_i32_0 : i32, i32, i32
  }
  func.func @transform_1(%arg0: i32) -> (i32, i32) {
    %c0_i32 = arith.constant 0 : i32
    %c0_i32_0 = arith.constant 0 : i32
    %c0_i32_1 = arith.constant 0 : i32
    return %c0_i32, %c0_i32_0 : i32, i32
  }
  func.func @transform_2(%arg0: i32) -> (i32, i32) {
    %c0_i32 = arith.constant 0 : i32
    %c0_i32_0 = arith.constant 0 : i32
    %c0_i32_1 = arith.constant 0 : i32
    return %c0_i32, %c0_i32_0 : i32, i32
  }
  func.func @transform_3(%arg0: i32) -> (i32, i32) {
    %c0_i32 = arith.constant 0 : i32
    %c0_i32_0 = arith.constant 0 : i32
    %c0_i32_1 = arith.constant 0 : i32
    return %c0_i32, %c0_i32_0 : i32, i32
  }
  func.func @transform_4(%arg0: i32) -> (i32, i32) {
    %c0_i32 = arith.constant 0 : i32
    %c0_i32_0 = arith.constant 0 : i32
    %c0_i32_1 = arith.constant 0 : i32
    return %c0_i32, %c0_i32_0 : i32, i32
  }
  func.func @transform_5(%arg0: i32) -> (i32, i32) {
    %c0_i32 = arith.constant 0 : i32
    %c0_i32_0 = arith.constant 0 : i32
    %c0_i32_1 = arith.constant 0 : i32
    return %c0_i32, %c0_i32_0 : i32, i32
  }
  func.func @transform_6(%arg0: i32) -> (i32, i32) {
    %c0_i32 = arith.constant 0 : i32
    %c0_i32_0 = arith.constant 0 : i32
    %c0_i32_1 = arith.constant 0 : i32
    return %c0_i32, %c0_i32_0 : i32, i32
  }
  func.func @transform_7(%arg0: i32) -> (i32, i32) {
    %c0_i32 = arith.constant 0 : i32
    %c0_i32_0 = arith.constant 0 : i32
    %c0_i32_1 = arith.constant 0 : i32
    return %c0_i32, %c0_i32_0 : i32, i32
  }
  func.func @transform_8(%arg0: i32) -> (i32, i32) {
    %c0_i32 = arith.constant 0 : i32
    %c0_i32_0 = arith.constant 0 : i32
    %c0_i32_1 = arith.constant 0 : i32
    return %c0_i32, %c0_i32_0 : i32, i32
  }
  func.func @transform_9(%arg0: i32) -> (i32, i32, i32) {
    %c0_i32 = arith.constant 0 : i32
    %c0_i32_0 = arith.constant 0 : i32
    %c0_i32_1 = arith.constant 0 : i32
    return %arg0, %c0_i32, %c0_i32_0 : i32, i32, i32
  }
}

</mosaic_0001>

<llo_original>
// kernel: tpu_custom_call.1
$region0: #{tpu_custom_call.1}
  #allocation0 [shape = 'u32[]', space=smem, size = 0x4, offset = 0x4, fixed_abs, tag = 'smem constant byte address 0x4 - core index']
  #allocation1 [shape = 'u32[144,128]{1,0:T(1,128)}', space=vmem, size = 0x12000, scoped, tag = 'internal scratch']
  %s0 = inlined_call_operand.vmem [shape: f32[4,16,256], index: 0, kind: input, shape index: {}]
  %s1 = inlined_call_operand.vmem [shape: f32[9,256], index: 1, kind: input, shape index: {}]
  %s2 = inlined_call_operand.vmem [shape: f32[16,8], index: 2, kind: input, shape index: {}]
  %s3 = inlined_call_operand.vmem [shape: f32[16,16], index: 3, kind: input, shape index: {}]
  %s4 = inlined_call_operand.vmem [shape: f32[48,16], index: 4, kind: input, shape index: {}]
  %s5 = inlined_call_operand.vmem [shape: f32[112,9], index: 5, kind: input, shape index: {}]
  %s6 = inlined_call_operand.vmem [shape: f32[16,16], index: 6, kind: input, shape index: {}]
  %s7 = inlined_call_operand.vmem [shape: f32[64,16], index: 7, kind: input, shape index: {}]
  %s8 = inlined_call_operand.vmem [shape: f32[16,32], index: 8, kind: input, shape index: {}]
  %s9 = inlined_call_operand.hbm [shape: f32[4,16,256], index: 9, kind: output, shape index: {}]
  %s10 = sld [smem:[#allocation0]]
  $region69: #{tpu_custom_call.1} parent=0
    _
  %s12 = ssub.s32 1, %s10
  %s13 = scalar_select 0, %s12, %s10
  $region1: #{tpu_custom_call.1} parent=0
    #allocation2 [shape = 'u8[65536]{0}', space=vmem, size = 0x10000, scoped, tag = 'output window, operand 0']
    #allocation3 [shape = 's32[2]{0}', space=sflag, size = 0x8, scoped, tag = 'scoped memory for tpu_custom_call.1']
    %14 = vsyncpa [#allocation3], 0
    %s15 = scalar_lea.sflag [#allocation3], 1
    %16 = vsyncpa %s15, 0
    loop: start=0, step=1, limit=4
    $region2: #{tpu_custom_call.1} parent=1 // loop_pre_header
      _
    $region3: #{tpu_custom_call.1} parent=1 // loop_header
      %s18 = sphi 0, %s22
      %p19 = scmp.ge.s32.totalorder %s18, 4
      %s28 = sphi 0, %s30
      %s31 = sphi 0, %s28
      %s32 = sphi 0, %s31
      %s48 = sphi 0, %s32
      %s52 = sphi 0, %s52
      %s54 = sphi 0, %s52
      %s55 = sphi 0, %s54
      %s69 = sphi 0, %s55
      %s73 = sphi 0, %s73
      %s75 = sphi 0, %s73
      %s76 = sphi 0, %s75
      %s90 = sphi 0, %s76
      %s94 = sphi 0, %s94
      %s96 = sphi 0, %s94
      %s97 = sphi 0, %s96
      %s111 = sphi 0, %s97
      %s115 = sphi 0, %s115
      %s117 = sphi 0, %s115
      %s118 = sphi 0, %s117
      %s132 = sphi 0, %s118
      %s136 = sphi 0, %s136
      %s138 = sphi 0, %s136
      %s139 = sphi 0, %s138
      %s153 = sphi 0, %s139
      %s157 = sphi 0, %s157
      %s159 = sphi 0, %s157
      %s160 = sphi 0, %s159
      %s174 = sphi 0, %s160
      %s178 = sphi 0, %s178
      %s180 = sphi 0, %s178
      %s181 = sphi 0, %s180
      %s195 = sphi 0, %s181
      %s199 = sphi 0, %s199
      %s201 = sphi 0, %s199
      %s202 = sphi 0, %s201
      %s216 = sphi 0, %s202
      %s222 = sphi 0, %s224
      %s225 = sphi 0, %s222
      %s226 = sphi 0, %s225
      %s242 = sphi 0, %s226
    $region4: #{tpu_custom_call.1} parent=1 // loop_header_branch
      %21 = sbr.rel (%p19) target = $region8
    $region5: #{tpu_custom_call.1} parent=1 // loop_body
      %s23 = ssub.s32 %s18, 1
      %s24 = ssub.s32 %s18, 2
      %s25 = sadd.s32 %s18, 1
      %s26 = ssub.s32 %s18, %s25
      %p27 = scmp.eq.s32.totalorder %s26, 0
      %s29 = sadd.s32 %s28, 1
      %s30 = scalar_select %p27, %s28, %s29
      %p33 = pneg %p27
      %p34 = scmp.eq.s32.totalorder %s18, 1
      %p35 = por %p33, %p34
      %p36 = scmp.ne.s32.totalorder %s28, %s31
      %p37 = scmp.eq.s32.totalorder %s18, 0
      %p38 = por %p36, %p37
      %p39 = scmp.ne.s32.totalorder %s28, %s31
      %p40 = scmp.eq.s32.totalorder %s23, 1
      %p41 = por %p39, %p40
      %p42 = scmp.ne.s32.totalorder %s31, %s32
      %p43 = scmp.eq.s32.totalorder %s23, 0
      %p44 = por %p42, %p43
      %p45 = scmp.ne.s32.totalorder %s31, %s32
      %p46 = scmp.eq.s32.totalorder %s24, 1
      %p47 = por %p45, %p46
      %p49 = scmp.ne.s32.totalorder %s32, %s48
      %p50 = scmp.eq.s32.totalorder %s24, 0
      %p51 = por %p49, %p50
      %s53 = sadd.s32 %s52, 1
      %p56 = scmp.eq.s32.totalorder %s18, 1
      %p57 = scmp.ne.s32.totalorder %s52, %s54
      %p58 = scmp.eq.s32.totalorder %s18, 0
      %p59 = por %p57, %p58
      %p60 = scmp.ne.s32.totalorder %s52, %s54
      %p61 = scmp.eq.s32.totalorder %s23, 1
      %p62 = por %p60, %p61
      %p63 = scmp.ne.s32.totalorder %s54, %s55
      %p64 = scmp.eq.s32.totalorder %s23, 0
      %p65 = por %p63, %p64
      %p66 = scmp.ne.s32.totalorder %s54, %s55
      %p67 = scmp.eq.s32.totalorder %s24, 1
      %p68 = por %p66, %p67
      %p70 = scmp.ne.s32.totalorder %s55, %s69
      %p71 = scmp.eq.s32.totalorder %s24, 0
      %p72 = por %p70, %p71
      %s74 = sadd.s32 %s73, 1
      %p77 = scmp.eq.s32.totalorder %s18, 1
      %p78 = scmp.ne.s32.totalorder %s73, %s75
      %p79 = scmp.eq.s32.totalorder %s18, 0
      %p80 = por %p78, %p79
      %p81 = scmp.ne.s32.totalorder %s73, %s75
      %p82 = scmp.eq.s32.totalorder %s23, 1
      %p83 = por %p81, %p82
      %p84 = scmp.ne.s32.totalorder %s75, %s76
      %p85 = scmp.eq.s32.totalorder %s23, 0
      %p86 = por %p84, %p85
      %p87 = scmp.ne.s32.totalorder %s75, %s76
      %p88 = scmp.eq.s32.totalorder %s24, 1
      %p89 = por %p87, %p88
      %p91 = scmp.ne.s32.totalorder %s76, %s90
      %p92 = scmp.eq.s32.totalorder %s24, 0
      %p93 = por %p91, %p92
      %s95 = sadd.s32 %s94, 1
      %p98 = scmp.eq.s32.totalorder %s18, 1
      %p99 = scmp.ne.s32.totalorder %s94, %s96
      %p100 = scmp.eq.s32.totalorder %s18, 0
      %p101 = por %p99, %p100
      %p102 = scmp.ne.s32.totalorder %s94, %s96
      %p103 = scmp.eq.s32.totalorder %s23, 1
      %p104 = por %p102, %p103
      %p105 = scmp.ne.s32.totalorder %s96, %s97
      %p106 = scmp.eq.s32.totalorder %s23, 0
      %p107 = por %p105, %p106
      %p108 = scmp.ne.s32.totalorder %s96, %s97
      %p109 = scmp.eq.s32.totalorder %s24, 1
      %p110 = por %p108, %p109
      %p112 = scmp.ne.s32.totalorder %s97, %s111
      %p113 = scmp.eq.s32.totalorder %s24, 0
      %p114 = por %p112, %p113
      %s116 = sadd.s32 %s115, 1
      %p119 = scmp.eq.s32.totalorder %s18, 1
      %p120 = scmp.ne.s32.totalorder %s115, %s117
      %p121 = scmp.eq.s32.totalorder %s18, 0
      %p122 = por %p120, %p121
      %p123 = scmp.ne.s32.totalorder %s115, %s117
      %p124 = scmp.eq.s32.totalorder %s23, 1
      %p125 = por %p123, %p124
      %p126 = scmp.ne.s32.totalorder %s117, %s118
      %p127 = scmp.eq.s32.totalorder %s23, 0
      %p128 = por %p126, %p127
      %p129 = scmp.ne.s32.totalorder %s117, %s118
      %p130 = scmp.eq.s32.totalorder %s24, 1
      %p131 = por %p129, %p130
      %p133 = scmp.ne.s32.totalorder %s118, %s132
      %p134 = scmp.eq.s32.totalorder %s24, 0
      %p135 = por %p133, %p134
      %s137 = sadd.s32 %s136, 1
      %p140 = scmp.eq.s32.totalorder %s18, 1
      %p141 = scmp.ne.s32.totalorder %s136, %s138
      %p142 = scmp.eq.s32.totalorder %s18, 0
      %p143 = por %p141, %p142
      %p144 = scmp.ne.s32.totalorder %s136, %s138
      %p145 = scmp.eq.s32.totalorder %s23, 1
      %p146 = por %p144, %p145
      %p147 = scmp.ne.s32.totalorder %s138, %s139
      %p148 = scmp.eq.s32.totalorder %s23, 0
      %p149 = por %p147, %p148
      %p150 = scmp.ne.s32.totalorder %s138, %s139
      %p151 = scmp.eq.s32.totalorder %s24, 1
      %p152 = por %p150, %p151
      %p154 = scmp.ne.s32.totalorder %s139, %s153
      %p155 = scmp.eq.s32.totalorder %s24, 0
      %p156 = por %p154, %p155
      %s158 = sadd.s32 %s157, 1
      %p161 = scmp.eq.s32.totalorder %s18, 1
      %p162 = scmp.ne.s32.totalorder %s157, %s159
      %p163 = scmp.eq.s32.totalorder %s18, 0
      %p164 = por %p162, %p163
      %p165 = scmp.ne.s32.totalorder %s157, %s159
      %p166 = scmp.eq.s32.totalorder %s23, 1
      %p167 = por %p165, %p166
      %p168 = scmp.ne.s32.totalorder %s159, %s160
      %p169 = scmp.eq.s32.totalorder %s23, 0
      %p170 = por %p168, %p169
      %p171 = scmp.ne.s32.totalorder %s159, %s160
      %p172 = scmp.eq.s32.totalorder %s24, 1
      %p173 = por %p171, %p172
      %p175 = scmp.ne.s32.totalorder %s160, %s174
      %p176 = scmp.eq.s32.totalorder %s24, 0
      %p177 = por %p175, %p176
      %s179 = sadd.s32 %s178, 1
      %p182 = scmp.eq.s32.totalorder %s18, 1
      %p183 = scmp.ne.s32.totalorder %s178, %s180
      %p184 = scmp.eq.s32.totalorder %s18, 0
      %p185 = por %p183, %p184
      %p186 = scmp.ne.s32.totalorder %s178, %s180
      %p187 = scmp.eq.s32.totalorder %s23, 1
      %p188 = por %p186, %p187
      %p189 = scmp.ne.s32.totalorder %s180, %s181
      %p190 = scmp.eq.s32.totalorder %s23, 0
      %p191 = por %p189, %p190
      %p192 = scmp.ne.s32.totalorder %s180, %s181
      %p193 = scmp.eq.s32.totalorder %s24, 1
      %p194 = por %p192, %p193
      %p196 = scmp.ne.s32.totalorder %s181, %s195
      %p197 = scmp.eq.s32.totalorder %s24, 0
      %p198 = por %p196, %p197
      %s200 = sadd.s32 %s199, 1
      %p203 = scmp.eq.s32.totalorder %s18, 1
      %p204 = scmp.ne.s32.totalorder %s199, %s201
      %p205 = scmp.eq.s32.totalorder %s18, 0
      %p206 = por %p204, %p205
      %p207 = scmp.ne.s32.totalorder %s199, %s201
      %p208 = scmp.eq.s32.totalorder %s23, 1
      %p209 = por %p207, %p208
      %p210 = scmp.ne.s32.totalorder %s201, %s202
      %p211 = scmp.eq.s32.totalorder %s23, 0
      %p212 = por %p210, %p211
      %p213 = scmp.ne.s32.totalorder %s201, %s202
      %p214 = scmp.eq.s32.totalorder %s24, 1
      %p215 = por %p213, %p214
      %p217 = scmp.ne.s32.totalorder %s202, %s216
      %p218 = scmp.eq.s32.totalorder %s24, 0
      %p219 = por %p217, %p218
      %s220 = ssub.s32 %s18, %s25
      %p221 = scmp.eq.s32.totalorder %s220, 0
      %s223 = sadd.s32 %s222, 1
      %s224 = scalar_select %p221, %s222, %s223
      %p227 = pneg %p221
      %p228 = scmp.eq.s32.totalorder %s18, 1
      %p229 = por %p227, %p228
      %p230 = scmp.ne.s32.totalorder %s222, %s225
      %p231 = scmp.eq.s32.totalorder %s18, 0
      %p232 = por %p230, %p231
      %p233 = scmp.ne.s32.totalorder %s222, %s225
      %p234 = scmp.eq.s32.totalorder %s23, 1
      %p235 = por %p233, %p234
      %p236 = scmp.ne.s32.totalorder %s225, %s226
      %p237 = scmp.eq.s32.totalorder %s23, 0
      %p238 = por %p236, %p237
      %p239 = scmp.ne.s32.totalorder %s225, %s226
      %p240 = scmp.eq.s32.totalorder %s24, 1
      %p241 = por %p239, %p240
      %p243 = scmp.ne.s32.totalorder %s226, %s242
      %p244 = scmp.eq.s32.totalorder %s24, 0
      %p245 = por %p243, %p244
      %p246 = scmp.le.s32.totalorder 1, %s18
      %p247 = scmp.lt.s32.totalorder %s18, 3
      %p248 = pnand %p246, %p247
      %p249 = pneg %p248
      // Predicated region
      $region9: #{tpu_custom_call.1} parent=5 // pred_check
        _
      $region10: #{tpu_custom_call.1} parent=5 // pred_check_branch
        %251 = sbr.rel (%p248) target = $region12
      $region11: #{tpu_custom_call.1} parent=5 // pred_region
        %s252 = ssub.s32 %s18, 1
        // Predicated region
        $region13: #{tpu_custom_call.1} parent=11 // pred_check
          %p253 = pneg %p65
        $region14: #{tpu_custom_call.1} parent=11 // pred_check_branch
          %255 = sbr.rel (%p253) target = $region16
        $region15: #{tpu_custom_call.1} parent=11 // pred_region
          _
        $region16: #{tpu_custom_call.1} parent=11 // pred_fallthru
          _
        // Predicated region
        $region17: #{tpu_custom_call.1} parent=11 // pred_check
          %p256 = pneg %p86
        $region18: #{tpu_custom_call.1} parent=11 // pred_check_branch
          %258 = sbr.rel (%p256) target = $region20
        $region19: #{tpu_custom_call.1} parent=11 // pred_region
          _
        $region20: #{tpu_custom_call.1} parent=11 // pred_fallthru
          _
        // Predicated region
        $region21: #{tpu_custom_call.1} parent=11 // pred_check
          %p259 = pneg %p107
        $region22: #{tpu_custom_call.1} parent=11 // pred_check_branch
          %261 = sbr.rel (%p259) target = $region24
        $region23: #{tpu_custom_call.1} parent=11 // pred_region
          _
        $region24: #{tpu_custom_call.1} parent=11 // pred_fallthru
          _
        // Predicated region
        $region25: #{tpu_custom_call.1} parent=11 // pred_check
          %p262 = pneg %p128
        $region26: #{tpu_custom_call.1} parent=11 // pred_check_branch
          %264 = sbr.rel (%p262) target = $region28
        $region27: #{tpu_custom_call.1} parent=11 // pred_region
          _
        $region28: #{tpu_custom_call.1} parent=11 // pred_fallthru
          _
        // Predicated region
        $region29: #{tpu_custom_call.1} parent=11 // pred_check
          %p265 = pneg %p149
        $region30: #{tpu_custom_call.1} parent=11 // pred_check_branch
          %267 = sbr.rel (%p265) target = $region32
        $region31: #{tpu_custom_call.1} parent=11 // pred_region
          _
        $region32: #{tpu_custom_call.1} parent=11 // pred_fallthru
          _
        // Predicated region
        $region33: #{tpu_custom_call.1} parent=11 // pred_check
          %p268 = pneg %p170
        $region34: #{tpu_custom_call.1} parent=11 // pred_check_branch
          %270 = sbr.rel (%p268) target = $region36
        $region35: #{tpu_custom_call.1} parent=11 // pred_region
          _
        $region36: #{tpu_custom_call.1} parent=11 // pred_fallthru
          _
        // Predicated region
        $region37: #{tpu_custom_call.1} parent=11 // pred_check
          %p271 = pneg %p191
        $region38: #{tpu_custom_call.1} parent=11 // pred_check_branch
          %273 = sbr.rel (%p271) target = $region40
        $region39: #{tpu_custom_call.1} parent=11 // pred_region
          _
        $region40: #{tpu_custom_call.1} parent=11 // pred_fallthru
          _
        // Predicated region
        $region41: #{tpu_custom_call.1} parent=11 // pred_check
          %p274 = pneg %p212
        $region42: #{tpu_custom_call.1} parent=11 // pred_check_branch
          %276 = sbr.rel (%p274) target = $region44
        $region43: #{tpu_custom_call.1} parent=11 // pred_region
          _
        $region44: #{tpu_custom_call.1} parent=11 // pred_fallthru
          _
      $region12: #{tpu_custom_call.1} parent=5 // pred_fallthru
        _
      %p277 = scmp.lt.s32.totalorder %s18, 2
      // Predicated region
      $region45: #{tpu_custom_call.1} parent=5 // pred_check
        %p278 = pneg %p277
      $region46: #{tpu_custom_call.1} parent=5 // pred_check_branch
        %280 = sbr.rel (%p278) target = $region48
      $region47: #{tpu_custom_call.1} parent=5 // pred_region
        // Predicated region
        $region49: #{tpu_custom_call.1} parent=47 // pred_check
          %p281 = pneg %p38
        $region50: #{tpu_custom_call.1} parent=47 // pred_check_branch
          %283 = sbr.rel (%p281) target = $region52
        $region51: #{tpu_custom_call.1} parent=47 // pred_region
          %s284 = smul.u32 2, %s18
          %p285 = scmp.lt.s32.totalorder %s284, 3
          %s286 = scalar_select %p285, %s284, 3
          %s287 = smul.addr %s286, 4
          %s288 = smul.addr %s287, 8
          %s289 = scalar_lea.vmem %s0, %s288
          %s290 = smul.u32 2, %s18
        $region52: #{tpu_custom_call.1} parent=47 // pred_fallthru
          _
      $region48: #{tpu_custom_call.1} parent=5 // pred_fallthru
        _
      %p291 = scmp.le.s32.totalorder 1, %s18
      %p292 = scmp.lt.s32.totalorder %s18, 3
      %p293 = pnand %p291, %p292
      %p294 = pneg %p293
      // Predicated region
      $region53: #{tpu_custom_call.1} parent=5 // pred_check
        _
      $region54: #{tpu_custom_call.1} parent=5 // pred_check_branch
        %296 = sbr.rel (%p293) target = $region56
      $region55: #{tpu_custom_call.1} parent=5 // pred_region
        %s297 = ssub.s32 %s18, 1
        %s298 = smul.u32 2, %s23
        %p299 = scmp.lt.s32.totalorder %s298, 3
        %s300 = scalar_select %p299, %s298, 3
        %s301 = smul.addr %s300, 4
        %s302 = smul.addr %s301, 8
        %s303 = scalar_lea.vmem %s0, %s302
        %p304 = pneg %p44
        %p305 = pneg %p41
        %p306 = pneg %p65
        %p307 = pneg %p62
        %p308 = pneg %p86
        %p309 = pneg %p83
        %p310 = pneg %p107
        %p311 = pneg %p104
        %p312 = pneg %p128
        %p313 = pneg %p125
        %p314 = pneg %p149
        %p315 = pneg %p146
        %p316 = pneg %p170
        %p317 = pneg %p167
        %p318 = pneg %p191
        %p319 = pneg %p188
        %p320 = pneg %p212
        %p321 = pneg %p209
        %p322 = pneg %p238
        %p323 = pneg %p235
        %s324 = sand.u32 %s225, 1
        %s325 = scalar_lea.sflag [#allocation3], %s324
        %s326 = sand.u32 %s225, 1
        %s327 = smul.addr %s326, 64
        %s328 = scalar_lea.vmem [#allocation2], %s327
        %s329 = smul.u32 2, %s23
        %p330 = scmp.lt.s32.totalorder %s329, 3
        %s331 = scalar_select %p330, %s329, 3
        %s332 = smul.addr %s331, 4
        %s333 = smul.addr %s332, 8
        %s334 = scalar_lea.vmem %s0, %s333
        %s335 = smul.u32 2, %s23
        %s336 = smul.u32 2, %s23
        %v337 = vld [vmem:[%s1] ss:$8 sm:$0x3]
        %s338 = scalar_lea.vmem %s1, 1
        %v339 = vld [vmem:[%s338] ss:$8 sm:$0x3]
        %s340 = scalar_lea.vmem %s1, 2
        %v341 = vld [vmem:[%s340] ss:$8 sm:$0x3]
        %s342 = scalar_lea.vmem %s1, 3
        %v343 = vld [vmem:[%s342] ss:$8 sm:$0x3]
        %s344 = scalar_lea.vmem %s1, 5
        %v345 = vld [vmem:[%s344] ss:$8 sm:$0x3]
        %s346 = scalar_lea.vmem %s1, 6
        %v347 = vld [vmem:[%s346] ss:$8 sm:$0x3]
        %s348 = scalar_lea.vmem %s1, 7
        %v349 = vld [vmem:[%s348] ss:$8 sm:$0x3]
        %s350 = scalar_lea.vmem %s1, 16
        %v351 = vld [vmem:[%s350] ss:$8 sm:$0x3]
        %v352 = vld [vmem:[%s2] sm:$0xff]
        %v353 = vld [vmem:[%s2 + $0x8] sm:$0xff]
        %v354 = vld [vmem:[%s3] sm:$0xff]
        %v355 = vld [vmem:[%s3 + $0x8] sm:$0xff]
        %v356 = vld [vmem:[%s4] sm:$0xff]
        %v357 = vld [vmem:[%s4 + $0x8] sm:$0xff]
        %v358 = vld [vmem:[%s4 + $0x10] sm:$0xff]
        %v359 = vld [vmem:[%s4 + $0x18] sm:$0xff]
        %v360 = vld [vmem:[%s4 + $0x20] sm:$0xff]
        %v361 = vld [vmem:[%s4 + $0x28] sm:$0xff]
        %v362 = vld [vmem:[%s5] sm:$0xff]
        %v363 = vld [vmem:[%s5 + $0x8] sm:$0xff]
        %v364 = vld [vmem:[%s5 + $0x10] sm:$0xff]
        %v365 = vld [vmem:[%s5 + $0x18] sm:$0xff]
        %v366 = vld [vmem:[%s5 + $0x20] sm:$0xff]
        %v367 = vld [vmem:[%s5 + $0x28] sm:$0xff]
        %v368 = vld [vmem:[%s5 + $0x30] sm:$0xff]
        %v369 = vld [vmem:[%s5 + $0x38] sm:$0xff]
        %v370 = vld [vmem:[%s5 + $0x40] sm:$0xff]
        %v371 = vld [vmem:[%s5 + $0x48] sm:$0xff]
        %v372 = vld [vmem:[%s5 + $0x50] sm:$0xff]
        %v373 = vld [vmem:[%s5 + $0x58] sm:$0xff]
        %v374 = vld [vmem:[%s5 + $0x60] sm:$0xff]
        %v375 = vld [vmem:[%s5 + $0x68] sm:$0xff]
        %v376 = vld [vmem:[%s6] sm:$0xff]
        %v377 = vld [vmem:[%s6 + $0x8] sm:$0xff]
        %v378 = vld [vmem:[%s7] sm:$0xff]
        %v379 = vld [vmem:[%s7 + $0x8] sm:$0xff]
        %v380 = vld [vmem:[%s7 + $0x10] sm:$0xff]
        %v381 = vld [vmem:[%s7 + $0x18] sm:$0xff]
        %v382 = vld [vmem:[%s7 + $0x20] sm:$0xff]
        %v383 = vld [vmem:[%s7 + $0x28] sm:$0xff]
        %v384 = vld [vmem:[%s7 + $0x30] sm:$0xff]
        %v385 = vld [vmem:[%s7 + $0x38] sm:$0xff]
        %v386 = vld [vmem:[%s8] sm:$0xff]
        %v387 = vld [vmem:[%s8 + $0x8] sm:$0xff]
        %v388 = vld [vmem:[%s334] sm:$0xff]
        %v389 = vld [vmem:[%s334 + $0x8] sm:$0xff]
        %v390 = vld [vmem:[%s334 + $0x10] sm:$0xff]
        %v391 = vld [vmem:[%s334 + $0x18] sm:$0xff]
        %v392 = vadd.f32 %v388, %v390
        %v393 = vrot.slane %v392, 4
        %v394 = vadd.f32 %v392, %v393
        %v395 = vrot.slane %v394, 2
        %v396 = vadd.f32 %v394, %v395
        %v397 = vrot.slane %v396, 1
        %v398 = vadd.f32 %v396, %v397
        %v399 = vadd.f32 %v389, %v391
        %v400 = vrot.slane %v399, 4
        %v401 = vadd.f32 %v399, %v400
        %v402 = vrot.slane %v401, 2
        %v403 = vadd.f32 %v401, %v402
        %v404 = vrot.slane %v403, 1
        %v405 = vadd.f32 %v403, %v404
        %v406 = vrcp.pop 16.0
        %v407 = vmul.f32 %v398, %v406
        %v408 = vmul.f32 %v405, %v406
        %v409 = vsub.f32 %v388, %v407
        %v410 = vsub.f32 %v389, %v408
        %v411 = vsub.f32 %v390, %v407
        %v412 = vsub.f32 %v391, %v408
        %v413 = vmul.f32 %v409, %v409
        %v414 = vmul.f32 %v410, %v410
        %v415 = vmul.f32 %v411, %v411
        %v416 = vmul.f32 %v412, %v412
        %v417 = vadd.f32 %v413, %v415
        %v418 = vrot.slane %v417, 4
        %v419 = vadd.f32 %v417, %v418
        %v420 = vrot.slane %v419, 2
        %v421 = vadd.f32 %v419, %v420
        %v422 = vrot.slane %v421, 1
        %v423 = vadd.f32 %v421, %v422
        %v424 = vadd.f32 %v414, %v416
        %v425 = vrot.slane %v424, 4
        %v426 = vadd.f32 %v424, %v425
        %v427 = vrot.slane %v426, 2
        %v428 = vadd.f32 %v426, %v427
        %v429 = vrot.slane %v428, 1
        %v430 = vadd.f32 %v428, %v429
        %v431 = vmul.f32 %v423, %v406
        %v432 = vmul.f32 %v430, %v406
        %v433 = vadd.f32 %v431, 1e-05
        %v434 = vadd.f32 %v432, 1e-05
        %v435 = vrsqrt.pop %v433
        %v436 = vrsqrt.pop %v434
        %v437 = vmul.f32 %v409, %v435
        %v438 = vmul.f32 %v410, %v436
        %v439 = vmul.f32 %v411, %v435
        %v440 = vmul.f32 %v412, %v436
        %442 = vset.pattern.permute.xlu0 0
        %443 = vperm.xlu0 %442, %v352
        %v444 = vpop.permute.xlu0 %443
        %447 = vset.pattern.permute.xlu0 0
        %448 = vperm.xlu0 %447, %v353
        %v449 = vpop.permute.xlu0 %448
        %v451 = vmul.f32 %v437, %v444
        %v452 = vmul.f32 %v438, %v444
        %v453 = vmul.f32 %v439, %v449
        %v454 = vmul.f32 %v440, %v449
        %455 = vset.pattern.permute.xlu0 1
        %456 = vperm.xlu0 %455, %v352
        %v457 = vpop.permute.xlu0 %456
        %459 = vset.pattern.permute.xlu0 1
        %460 = vperm.xlu0 %459, %v353
        %v461 = vpop.permute.xlu0 %460
        %v463 = vadd.f32 %v451, %v457
        %v464 = vadd.f32 %v452, %v457
        %v465 = vadd.f32 %v453, %v461
        %v466 = vadd.f32 %v454, %v461
        %vm467 = vcmask 130048
        %v469 = vsel %vm467, %v356, 0
        %v472 = vsel %vm467, %v357, 0
        %v475 = vsel %vm467, %v358, 0
        %v478 = vsel %vm467, %v359, 0
        %v481 = vsel %vm467, %v360, 0
        %v484 = vsel %vm467, %v361, 0
        %486 = vmatprep.subr.mxu0 %v464
        %487 = vmatpush1.msra.mxu0 %v463
        %488 = vmatprep.subr.mxu0 %v466
        %489 = vmatpush1.msra.mxu0 %v465
        %490 = vmatprep.subr.mxu0 0.0
        %491 = vmatpush1.msra.mxu0 0.0
        %492 = vmatprep.subr.mxu0 0.0
        %493 = vmatpush1.msra.mxu0 0.0
        %494 = vmatprep.subr.mxu0 0.0
        %495 = vmatpush1.msra.mxu0 0.0
        %496 = vmatprep.subr.mxu0 0.0
        %497 = vmatpush1.msra.mxu0 0.0
        %498 = vmatprep.subr.mxu0 0.0
        %499 = vmatpush1.msra.mxu0 0.0
        %500 = vmatprep.subr.mxu0 0.0
        %501 = vmatpush1.msra.mxu0 0.0
        %502 = vmatprep.subr.mxu0 0.0
        %503 = vmatpush1.msra.mxu0 0.0
        %504 = vmatprep.subr.mxu0 0.0
        %505 = vmatpush1.msra.mxu0 0.0
        %506 = vmatprep.subr.mxu0 0.0
        %507 = vmatpush1.msra.mxu0 0.0
        %508 = vmatprep.subr.mxu0 0.0
        %509 = vmatpush1.msra.mxu0 0.0
        %510 = vmatprep.subr.mxu0 0.0
        %511 = vmatpush1.msra.mxu0 0.0
        %512 = vmatprep.subr.mxu0 0.0
        %513 = vmatpush1.msra.mxu0 0.0
        %514 = vmatprep.subr.mxu0 0.0
        %515 = vmatpush1.msra.mxu0 0.0
        %516 = vmatprep.subr.mxu0 0.0
        %517 = vmatpush1.msra.mxu0 0.0
        %518 = vmatprep.subr.mxu0 0.0
        %519 = vmatpush1.msra.mxu0 0.0
        %520 = vmatprep.subr.mxu0 0.0
        %521 = vmatpush1.msra.mxu0 0.0
        %522 = vmatprep.subr.mxu0 0.0
        %523 = vmatpush1.msra.mxu0 0.0
        %524 = vmatprep.subr.mxu0 0.0
        %525 = vmatpush1.msra.mxu0 0.0
        %526 = vmatprep.subr.mxu0 0.0
        %527 = vmatpush1.msra.mxu0 0.0
        %528 = vmatprep.subr.mxu0 0.0
        %529 = vmatpush1.msra.mxu0 0.0
        %530 = vmatprep.subr.mxu0 0.0
        %531 = vmatpush1.msra.mxu0 0.0
        %532 = vmatprep.subr.mxu0 0.0
        %533 = vmatpush1.msra.mxu0 0.0
        %534 = vmatprep.subr.mxu0 0.0
        %535 = vmatpush1.msra.mxu0 0.0
        %536 = vmatprep.subr.mxu0 0.0
        %537 = vmatpush1.msra.mxu0 0.0
        %538 = vmatprep.subr.mxu0 0.0
        %539 = vmatpush1.msra.mxu0 0.0
        %540 = vmatprep.subr.mxu0 0.0
        %541 = vmatpush1.msra.mxu0 0.0
        %542 = vmatprep.subr.mxu0 0.0
        %543 = vmatpush1.msra.mxu0 0.0
        %544 = vmatprep.subr.mxu0 0.0
        %545 = vmatpush1.msra.mxu0 0.0
        %546 = vmatprep.subr.mxu0 0.0
        %547 = vmatpush1.msra.mxu0 0.0
        %548 = vmatprep.subr.mxu0 0.0
        %549 = vmatpush1.msra.mxu0 0.0
        %550 = vmatprep.mubr.f32.mxu0 0.0
        %551 = vmatmul.mubr.f32.gmra.mrb[0].mxu0 %v469
        %v552 = vpop.f32.mrb[0].mxu0
        %v553 = vadd.f32 0.0, %v552
        %v554 = vpop.f32.mrb[0].mxu0
        %v555 = vadd.f32 0.0, %v554
        %556 = vmatprep.mubr.f32.mxu0 0.0
        %557 = vmatmul.mubr.f32.gmra.mrb[0].mxu0 %v472
        %v558 = vpop.f32.mrb[0].mxu0
        %v559 = vadd.f32 0.0, %v558
        %v560 = vpop.f32.mrb[0].mxu0
        %v561 = vadd.f32 0.0, %v560
        %562 = vmatprep.mubr.f32.mxu0 0.0
        %563 = vmatmul.mubr.f32.gmra.mrb[0].mxu0 %v475
        %v564 = vpop.f32.mrb[0].mxu0
        %v565 = vadd.f32 0.0, %v564
        %v566 = vpop.f32.mrb[0].mxu0
        %v567 = vadd.f32 0.0, %v566
        %568 = vmatprep.mubr.f32.mxu0 0.0
        %569 = vmatmul.mubr.f32.gmra.mrb[0].mxu0 %v478
        %v570 = vpop.f32.mrb[0].mxu0
        %v571 = vadd.f32 0.0, %v570
        %v572 = vpop.f32.mrb[0].mxu0
        %v573 = vadd.f32 0.0, %v572
        %574 = vmatprep.mubr.f32.mxu0 0.0
        %575 = vmatmul.mubr.f32.gmra.mrb[0].mxu0 %v481
        %v576 = vpop.f32.mrb[0].mxu0
        %v577 = vadd.f32 0.0, %v576
        %v578 = vpop.f32.mrb[0].mxu0
        %v579 = vadd.f32 0.0, %v578
        %580 = vmatprep.mubr.f32.mxu0 0.0
        %581 = vmatmul.mubr.f32.gmra.mrb[0].mxu0 %v484
        %v582 = vpop.f32.mrb[0].mxu0
        %v583 = vadd.f32 0.0, %v582
        %v584 = vpop.f32.mrb[0].mxu0
        %v585 = vadd.f32 0.0, %v584
        %586 = vdwg.mxu0
        %588 = vset.pattern.permute.xlu0 4
        %589 = vperm.xlu0 %588, %v362
        %v590 = vpop.permute.xlu0 %589
        %593 = vset.pattern.permute.xlu0 4
        %594 = vperm.xlu0 %593, %v363
        %v595 = vpop.permute.xlu0 %594
        %598 = vset.pattern.permute.xlu0 4
        %599 = vperm.xlu0 %598, %v364
        %v600 = vpop.permute.xlu0 %599
        %603 = vset.pattern.permute.xlu0 4
        %604 = vperm.xlu0 %603, %v365
        %v605 = vpop.permute.xlu0 %604
        %608 = vset.pattern.permute.xlu0 4
        %609 = vperm.xlu0 %608, %v366
        %v610 = vpop.permute.xlu0 %609
        %613 = vset.pattern.permute.xlu0 4
        %614 = vperm.xlu0 %613, %v367
        %v615 = vpop.permute.xlu0 %614
        %v617 = vmul.f32 %v590, %v553
        %v618 = vmul.f32 %v590, %v555
        %v619 = vmul.f32 %v595, %v559
        %v620 = vmul.f32 %v595, %v561
        %v621 = vmul.f32 %v600, %v565
        %v622 = vmul.f32 %v600, %v567
        %v623 = vmul.f32 %v605, %v571
        %v624 = vmul.f32 %v605, %v573
        %v625 = vmul.f32 %v610, %v577
        %v626 = vmul.f32 %v610, %v579
        %v627 = vmul.f32 %v615, %v583
        %v628 = vmul.f32 %v615, %v585
        %629 = vrot.lane.b32.xlu0 %v553, 17
        %v630 = vpop.permute.xlu0 %629
        %631 = vrot.lane.b32.xlu0 %v559, 17
        %v632 = vpop.permute.xlu0 %631
        %633 = vrot.lane.b32.xlu0 %v565, 17
        %v634 = vpop.permute.xlu0 %633
        %635 = vrot.lane.b32.xlu0 %v571, 17
        %v636 = vpop.permute.xlu0 %635
        %637 = vrot.lane.b32.xlu0 %v577, 17
        %v638 = vpop.permute.xlu0 %637
        %639 = vrot.lane.b32.xlu0 %v583, 17
        %v640 = vpop.permute.xlu0 %639
        %641 = vrot.lane.b32.xlu0 %v555, 17
        %v642 = vpop.permute.xlu0 %641
        %643 = vrot.lane.b32.xlu0 %v561, 17
        %v644 = vpop.permute.xlu0 %643
        %645 = vrot.lane.b32.xlu0 %v567, 17
        %v646 = vpop.permute.xlu0 %645
        %647 = vrot.lane.b32.xlu0 %v573, 17
        %v648 = vpop.permute.xlu0 %647
        %649 = vrot.lane.b32.xlu0 %v579, 17
        %v650 = vpop.permute.xlu0 %649
        %651 = vrot.lane.b32.xlu0 %v585, 17
        %v652 = vpop.permute.xlu0 %651
        %v653 = vlaneseq
        %v654 = vand.u32 %v653, 127
        %vm655 = vcmp.lt.s32.totalorder %v654, 17
        %v656 = vsel %vm655, %v630, %v642
        %v657 = vsel %vm655, %v632, %v644
        %v658 = vsel %vm655, %v634, %v646
        %v659 = vsel %vm655, %v636, %v648
        %v660 = vsel %vm655, %v638, %v650
        %v661 = vsel %vm655, %v640, %v652
        %v662 = vsel %vm655, %v642, %v630
        %v663 = vsel %vm655, %v644, %v632
        %v664 = vsel %vm655, %v646, %v634
        %v665 = vsel %vm655, %v648, %v636
        %v666 = vsel %vm655, %v650, %v638
        %v667 = vsel %vm655, %v652, %v640
        %v669 = vlaneseq
        %v670 = vshrl.u32 %v669, 7
        %v671 = vsub.s32 0, %v670
        %v672 = vrot.slane %v337, %v671
        %v673 = vlaneseq
        %v674 = vshrl.u32 %v673, 7
        %v675 = vsub.s32 1, %v674
        %v676 = vrot.slane %v337, %v675
        %v679 = vmul.f32 %v672, %v662
        %v680 = vmul.f32 %v676, %v656
        %v681 = vmul.f32 %v672, %v663
        %v682 = vmul.f32 %v676, %v657
        %v683 = vmul.f32 %v672, %v664
        %v684 = vmul.f32 %v676, %v658
        %v685 = vmul.f32 %v672, %v665
        %v686 = vmul.f32 %v676, %v659
        %v687 = vmul.f32 %v672, %v666
        %v688 = vmul.f32 %v676, %v660
        %v689 = vmul.f32 %v672, %v667
        %v690 = vmul.f32 %v676, %v661
        %691 = vset.pattern.permute.xlu0 0
        %692 = vperm.xlu0 %691, %v362
        %v693 = vpop.permute.xlu0 %692
        %695 = vset.pattern.permute.xlu0 0
        %696 = vperm.xlu0 %695, %v363
        %v697 = vpop.permute.xlu0 %696
        %699 = vset.pattern.permute.xlu0 0
        %700 = vperm.xlu0 %699, %v364
        %v701 = vpop.permute.xlu0 %700
        %703 = vset.pattern.permute.xlu0 0
        %704 = vperm.xlu0 %703, %v365
        %v705 = vpop.permute.xlu0 %704
        %707 = vset.pattern.permute.xlu0 0
        %708 = vperm.xlu0 %707, %v366
        %v709 = vpop.permute.xlu0 %708
        %711 = vset.pattern.permute.xlu0 0
        %712 = vperm.xlu0 %711, %v367
        %v713 = vpop.permute.xlu0 %712
        %v715 = vmul.f32 %v693, %v679
        %v716 = vmul.f32 %v693, %v680
        %v717 = vmul.f32 %v697, %v681
        %v718 = vmul.f32 %v697, %v682
        %v719 = vmul.f32 %v701, %v683
        %v720 = vmul.f32 %v701, %v684
        %v721 = vmul.f32 %v705, %v685
        %v722 = vmul.f32 %v705, %v686
        %v723 = vmul.f32 %v709, %v687
        %v724 = vmul.f32 %v709, %v688
        %v725 = vmul.f32 %v713, %v689
        %v726 = vmul.f32 %v713, %v690
        %v727 = vadd.f32 %v617, %v715
        %v728 = vadd.f32 %v618, %v716
        %v729 = vadd.f32 %v619, %v717
        %v730 = vadd.f32 %v620, %v718
        %v731 = vadd.f32 %v621, %v719
        %v732 = vadd.f32 %v622, %v720
        %v733 = vadd.f32 %v623, %v721
        %v734 = vadd.f32 %v624, %v722
        %v735 = vadd.f32 %v625, %v723
        %v736 = vadd.f32 %v626, %v724
        %v737 = vadd.f32 %v627, %v725
        %v738 = vadd.f32 %v628, %v726
        %739 = vrot.lane.b32.xlu0 %v553, 16
        %v740 = vpop.permute.xlu0 %739
        %741 = vrot.lane.b32.xlu0 %v559, 16
        %v742 = vpop.permute.xlu0 %741
        %743 = vrot.lane.b32.xlu0 %v565, 16
        %v744 = vpop.permute.xlu0 %743
        %745 = vrot.lane.b32.xlu0 %v571, 16
        %v746 = vpop.permute.xlu0 %745
        %747 = vrot.lane.b32.xlu0 %v577, 16
        %v748 = vpop.permute.xlu0 %747
        %749 = vrot.lane.b32.xlu0 %v583, 16
        %v750 = vpop.permute.xlu0 %749
        %751 = vrot.lane.b32.xlu0 %v555, 16
        %v752 = vpop.permute.xlu0 %751
        %753 = vrot.lane.b32.xlu0 %v561, 16
        %v754 = vpop.permute.xlu0 %753
        %755 = vrot.lane.b32.xlu0 %v567, 16
        %v756 = vpop.permute.xlu0 %755
        %757 = vrot.lane.b32.xlu0 %v573, 16
        %v758 = vpop.permute.xlu0 %757
        %759 = vrot.lane.b32.xlu0 %v579, 16
        %v760 = vpop.permute.xlu0 %759
        %761 = vrot.lane.b32.xlu0 %v585, 16
        %v762 = vpop.permute.xlu0 %761
        %vm763 = vcmp.lt.s32.totalorder %v654, 16
        %v764 = vsel %vm763, %v740, %v752
        %v765 = vsel %vm763, %v742, %v754
        %v766 = vsel %vm763, %v744, %v756
        %v767 = vsel %vm763, %v746, %v758
        %v768 = vsel %vm763, %v748, %v760
        %v769 = vsel %vm763, %v750, %v762
        %v770 = vsel %vm763, %v752, %v740
        %v771 = vsel %vm763, %v754, %v742
        %v772 = vsel %vm763, %v756, %v744
        %v773 = vsel %vm763, %v758, %v746
        %v774 = vsel %vm763, %v760, %v748
        %v775 = vsel %vm763, %v762, %v750
        %v777 = vlaneseq
        %v778 = vshrl.u32 %v777, 7
        %v779 = vsub.s32 0, %v778
        %v780 = vrot.slane %v339, %v779
        %v781 = vlaneseq
        %v782 = vshrl.u32 %v781, 7
        %v783 = vsub.s32 1, %v782
        %v784 = vrot.slane %v339, %v783
        %v787 = vmul.f32 %v780, %v770
        %v788 = vmul.f32 %v784, %v764
        %v789 = vmul.f32 %v780, %v771
        %v790 = vmul.f32 %v784, %v765
        %v791 = vmul.f32 %v780, %v772
        %v792 = vmul.f32 %v784, %v766
        %v793 = vmul.f32 %v780, %v773
        %v794 = vmul.f32 %v784, %v767
        %v795 = vmul.f32 %v780, %v774
        %v796 = vmul.f32 %v784, %v768
        %v797 = vmul.f32 %v780, %v775
        %v798 = vmul.f32 %v784, %v769
        %799 = vset.pattern.permute.xlu0 1
        %800 = vperm.xlu0 %799, %v362
        %v801 = vpop.permute.xlu0 %800
        %803 = vset.pattern.permute.xlu0 1
        %804 = vperm.xlu0 %803, %v363
        %v805 = vpop.permute.xlu0 %804
        %807 = vset.pattern.permute.xlu0 1
        %808 = vperm.xlu0 %807, %v364
        %v809 = vpop.permute.xlu0 %808
        %811 = vset.pattern.permute.xlu0 1
        %812 = vperm.xlu0 %811, %v365
        %v813 = vpop.permute.xlu0 %812
        %815 = vset.pattern.permute.xlu0 1
        %816 = vperm.xlu0 %815, %v366
        %v817 = vpop.permute.xlu0 %816
        %819 = vset.pattern.permute.xlu0 1
        %820 = vperm.xlu0 %819, %v367
        %v821 = vpop.permute.xlu0 %820
        %v823 = vmul.f32 %v801, %v787
        %v824 = vmul.f32 %v801, %v788
        %v825 = vmul.f32 %v805, %v789
        %v826 = vmul.f32 %v805, %v790
        %v827 = vmul.f32 %v809, %v791
        %v828 = vmul.f32 %v809, %v792
        %v829 = vmul.f32 %v813, %v793
        %v830 = vmul.f32 %v813, %v794
        %v831 = vmul.f32 %v817, %v795
        %v832 = vmul.f32 %v817, %v796
        %v833 = vmul.f32 %v821, %v797
        %v834 = vmul.f32 %v821, %v798
        %v835 = vadd.f32 %v727, %v823
        %v836 = vadd.f32 %v728, %v824
        %v837 = vadd.f32 %v729, %v825
        %v838 = vadd.f32 %v730, %v826
        %v839 = vadd.f32 %v731, %v827
        %v840 = vadd.f32 %v732, %v828
        %v841 = vadd.f32 %v733, %v829
        %v842 = vadd.f32 %v734, %v830
        %v843 = vadd.f32 %v735, %v831
        %v844 = vadd.f32 %v736, %v832
        %v845 = vadd.f32 %v737, %v833
        %v846 = vadd.f32 %v738, %v834
        %847 = vrot.lane.b32.xlu0 %v553, 15
        %v848 = vpop.permute.xlu0 %847
        %849 = vrot.lane.b32.xlu0 %v559, 15
        %v850 = vpop.permute.xlu0 %849
        %851 = vrot.lane.b32.xlu0 %v565, 15
        %v852 = vpop.permute.xlu0 %851
        %853 = vrot.lane.b32.xlu0 %v571, 15
        %v854 = vpop.permute.xlu0 %853
        %855 = vrot.lane.b32.xlu0 %v577, 15
        %v856 = vpop.permute.xlu0 %855
        %857 = vrot.lane.b32.xlu0 %v583, 15
        %v858 = vpop.permute.xlu0 %857
        %859 = vrot.lane.b32.xlu0 %v555, 15
        %v860 = vpop.permute.xlu0 %859
        %861 = vrot.lane.b32.xlu0 %v561, 15
        %v862 = vpop.permute.xlu0 %861
        %863 = vrot.lane.b32.xlu0 %v567, 15
        %v864 = vpop.permute.xlu0 %863
        %865 = vrot.lane.b32.xlu0 %v573, 15
        %v866 = vpop.permute.xlu0 %865
        %867 = vrot.lane.b32.xlu0 %v579, 15
        %v868 = vpop.permute.xlu0 %867
        %869 = vrot.lane.b32.xlu0 %v585, 15
        %v870 = vpop.permute.xlu0 %869
        %vm871 = vcmp.lt.s32.totalorder %v654, 15
        %v872 = vsel %vm871, %v848, %v860
        %v873 = vsel %vm871, %v850, %v862
        %v874 = vsel %vm871, %v852, %v864
        %v875 = vsel %vm871, %v854, %v866
        %v876 = vsel %vm871, %v856, %v868
        %v877 = vsel %vm871, %v858, %v870
        %v878 = vsel %vm871, %v860, %v848
        %v879 = vsel %vm871, %v862, %v850
        %v880 = vsel %vm871, %v864, %v852
        %v881 = vsel %vm871, %v866, %v854
        %v882 = vsel %vm871, %v868, %v856
        %v883 = vsel %vm871, %v870, %v858
        %v885 = vlaneseq
        %v886 = vshrl.u32 %v885, 7
        %v887 = vsub.s32 0, %v886
        %v888 = vrot.slane %v341, %v887
        %v889 = vlaneseq
        %v890 = vshrl.u32 %v889, 7
        %v891 = vsub.s32 1, %v890
        %v892 = vrot.slane %v341, %v891
        %v895 = vmul.f32 %v888, %v878
        %v896 = vmul.f32 %v892, %v872
        %v897 = vmul.f32 %v888, %v879
        %v898 = vmul.f32 %v892, %v873
        %v899 = vmul.f32 %v888, %v880
        %v900 = vmul.f32 %v892, %v874
        %v901 = vmul.f32 %v888, %v881
        %v902 = vmul.f32 %v892, %v875
        %v903 = vmul.f32 %v888, %v882
        %v904 = vmul.f32 %v892, %v876
        %v905 = vmul.f32 %v888, %v883
        %v906 = vmul.f32 %v892, %v877
        %907 = vset.pattern.permute.xlu0 2
        %908 = vperm.xlu0 %907, %v362
        %v909 = vpop.permute.xlu0 %908
        %911 = vset.pattern.permute.xlu0 2
        %912 = vperm.xlu0 %911, %v363
        %v913 = vpop.permute.xlu0 %912
        %915 = vset.pattern.permute.xlu0 2
        %916 = vperm.xlu0 %915, %v364
        %v917 = vpop.permute.xlu0 %916
        %919 = vset.pattern.permute.xlu0 2
        %920 = vperm.xlu0 %919, %v365
        %v921 = vpop.permute.xlu0 %920
        %923 = vset.pattern.permute.xlu0 2
        %924 = vperm.xlu0 %923, %v366
        %v925 = vpop.permute.xlu0 %924
        %927 = vset.pattern.permute.xlu0 2
        %928 = vperm.xlu0 %927, %v367
        %v929 = vpop.permute.xlu0 %928
        %v931 = vmul.f32 %v909, %v895
        %v932 = vmul.f32 %v909, %v896
        %v933 = vmul.f32 %v913, %v897
        %v934 = vmul.f32 %v913, %v898
        %v935 = vmul.f32 %v917, %v899
        %v936 = vmul.f32 %v917, %v900
        %v937 = vmul.f32 %v921, %v901
        %v938 = vmul.f32 %v921, %v902
        %v939 = vmul.f32 %v925, %v903
        %v940 = vmul.f32 %v925, %v904
        %v941 = vmul.f32 %v929, %v905
        %v942 = vmul.f32 %v929, %v906
        %v943 = vadd.f32 %v835, %v931
        %v944 = vadd.f32 %v836, %v932
        %v945 = vadd.f32 %v837, %v933
        %v946 = vadd.f32 %v838, %v934
        %v947 = vadd.f32 %v839, %v935
        %v948 = vadd.f32 %v840, %v936
        %v949 = vadd.f32 %v841, %v937
        %v950 = vadd.f32 %v842, %v938
        %v951 = vadd.f32 %v843, %v939
        %v952 = vadd.f32 %v844, %v940
        %v953 = vadd.f32 %v845, %v941
        %v954 = vadd.f32 %v846, %v942
        %955 = vrot.lane.b32.xlu0 %v553, 1
        %v956 = vpop.permute.xlu0 %955
        %957 = vrot.lane.b32.xlu0 %v559, 1
        %v958 = vpop.permute.xlu0 %957
        %959 = vrot.lane.b32.xlu0 %v565, 1
        %v960 = vpop.permute.xlu0 %959
        %961 = vrot.lane.b32.xlu0 %v571, 1
        %v962 = vpop.permute.xlu0 %961
        %963 = vrot.lane.b32.xlu0 %v577, 1
        %v964 = vpop.permute.xlu0 %963
        %965 = vrot.lane.b32.xlu0 %v583, 1
        %v966 = vpop.permute.xlu0 %965
        %967 = vrot.lane.b32.xlu0 %v555, 1
        %v968 = vpop.permute.xlu0 %967
        %969 = vrot.lane.b32.xlu0 %v561, 1
        %v970 = vpop.permute.xlu0 %969
        %971 = vrot.lane.b32.xlu0 %v567, 1
        %v972 = vpop.permute.xlu0 %971
        %973 = vrot.lane.b32.xlu0 %v573, 1
        %v974 = vpop.permute.xlu0 %973
        %975 = vrot.lane.b32.xlu0 %v579, 1
        %v976 = vpop.permute.xlu0 %975
        %977 = vrot.lane.b32.xlu0 %v585, 1
        %v978 = vpop.permute.xlu0 %977
        %vm979 = vcmp.lt.s32.totalorder %v654, 1
        %v980 = vsel %vm979, %v956, %v968
        %v981 = vsel %vm979, %v958, %v970
        %v982 = vsel %vm979, %v960, %v972
        %v983 = vsel %vm979, %v962, %v974
        %v984 = vsel %vm979, %v964, %v976
        %v985 = vsel %vm979, %v966, %v978
        %v986 = vsel %vm979, %v968, %v956
        %v987 = vsel %vm979, %v970, %v958
        %v988 = vsel %vm979, %v972, %v960
        %v989 = vsel %vm979, %v974, %v962
        %v990 = vsel %vm979, %v976, %v964
        %v991 = vsel %vm979, %v978, %v966
        %v993 = vlaneseq
        %v994 = vshrl.u32 %v993, 7
        %v995 = vsub.s32 0, %v994
        %v996 = vrot.slane %v343, %v995
        %v997 = vlaneseq
        %v998 = vshrl.u32 %v997, 7
        %v999 = vsub.s32 1, %v998
        %v1000 = vrot.slane %v343, %v999
        %v1003 = vmul.f32 %v996, %v986
        %v1004 = vmul.f32 %v1000, %v980
        %v1005 = vmul.f32 %v996, %v987
        %v1006 = vmul.f32 %v1000, %v981
        %v1007 = vmul.f32 %v996, %v988
        %v1008 = vmul.f32 %v1000, %v982
        %v1009 = vmul.f32 %v996, %v989
        %v1010 = vmul.f32 %v1000, %v983
        %v1011 = vmul.f32 %v996, %v990
        %v1012 = vmul.f32 %v1000, %v984
        %v1013 = vmul.f32 %v996, %v991
        %v1014 = vmul.f32 %v1000, %v985
        %1015 = vset.pattern.permute.xlu0 3
        %1016 = vperm.xlu0 %1015, %v362
        %v1017 = vpop.permute.xlu0 %1016
        %1019 = vset.pattern.permute.xlu0 3
        %1020 = vperm.xlu0 %1019, %v363
        %v1021 = vpop.permute.xlu0 %1020
        %1023 = vset.pattern.permute.xlu0 3
        %1024 = vperm.xlu0 %1023, %v364
        %v1025 = vpop.permute.xlu0 %1024
        %1027 = vset.pattern.permute.xlu0 3
        %1028 = vperm.xlu0 %1027, %v365
        %v1029 = vpop.permute.xlu0 %1028
        %1031 = vset.pattern.permute.xlu0 3
        %1032 = vperm.xlu0 %1031, %v366
        %v1033 = vpop.permute.xlu0 %1032
        %1035 = vset.pattern.permute.xlu0 3
        %1036 = vperm.xlu0 %1035, %v367
        %v1037 = vpop.permute.xlu0 %1036
        %v1039 = vmul.f32 %v1017, %v1003
        %v1040 = vmul.f32 %v1017, %v1004
        %v1041 = vmul.f32 %v1021, %v1005
        %v1042 = vmul.f32 %v1021, %v1006
        %v1043 = vmul.f32 %v1025, %v1007
        %v1044 = vmul.f32 %v1025, %v1008
        %v1045 = vmul.f32 %v1029, %v1009
        %v1046 = vmul.f32 %v1029, %v1010
        %v1047 = vmul.f32 %v1033, %v1011
        %v1048 = vmul.f32 %v1033, %v1012
        %v1049 = vmul.f32 %v1037, %v1013
        %v1050 = vmul.f32 %v1037, %v1014
        %v1051 = vadd.f32 %v943, %v1039
        %v1052 = vadd.f32 %v944, %v1040
        %v1053 = vadd.f32 %v945, %v1041
        %v1054 = vadd.f32 %v946, %v1042
        %v1055 = vadd.f32 %v947, %v1043
        %v1056 = vadd.f32 %v948, %v1044
        %v1057 = vadd.f32 %v949, %v1045
        %v1058 = vadd.f32 %v950, %v1046
        %v1059 = vadd.f32 %v951, %v1047
        %v1060 = vadd.f32 %v952, %v1048
        %v1061 = vadd.f32 %v953, %v1049
        %v1062 = vadd.f32 %v954, %v1050
        %1063 = vrot.lane.b32.xlu0 %v553, 127
        %v1064 = vpop.permute.xlu0 %1063
        %1065 = vrot.lane.b32.xlu0 %v559, 127
        %v1066 = vpop.permute.xlu0 %1065
        %1067 = vrot.lane.b32.xlu0 %v565, 127
        %v1068 = vpop.permute.xlu0 %1067
        %1069 = vrot.lane.b32.xlu0 %v571, 127
        %v1070 = vpop.permute.xlu0 %1069
        %1071 = vrot.lane.b32.xlu0 %v577, 127
        %v1072 = vpop.permute.xlu0 %1071
        %1073 = vrot.lane.b32.xlu0 %v583, 127
        %v1074 = vpop.permute.xlu0 %1073
        %1075 = vrot.lane.b32.xlu0 %v555, 127
        %v1076 = vpop.permute.xlu0 %1075
        %1077 = vrot.lane.b32.xlu0 %v561, 127
        %v1078 = vpop.permute.xlu0 %1077
        %1079 = vrot.lane.b32.xlu0 %v567, 127
        %v1080 = vpop.permute.xlu0 %1079
        %1081 = vrot.lane.b32.xlu0 %v573, 127
        %v1082 = vpop.permute.xlu0 %1081
        %1083 = vrot.lane.b32.xlu0 %v579, 127
        %v1084 = vpop.permute.xlu0 %1083
        %1085 = vrot.lane.b32.xlu0 %v585, 127
        %v1086 = vpop.permute.xlu0 %1085
        %vm1087 = vcmp.lt.s32.totalorder %v654, 127
        %v1088 = vsel %vm1087, %v1064, %v1076
        %v1089 = vsel %vm1087, %v1066, %v1078
        %v1090 = vsel %vm1087, %v1068, %v1080
        %v1091 = vsel %vm1087, %v1070, %v1082
        %v1092 = vsel %vm1087, %v1072, %v1084
        %v1093 = vsel %vm1087, %v1074, %v1086
        %v1094 = vsel %vm1087, %v1076, %v1064
        %v1095 = vsel %vm1087, %v1078, %v1066
        %v1096 = vsel %vm1087, %v1080, %v1068
        %v1097 = vsel %vm1087, %v1082, %v1070
        %v1098 = vsel %vm1087, %v1084, %v1072
        %v1099 = vsel %vm1087, %v1086, %v1074
        %v1101 = vlaneseq
        %v1102 = vshrl.u32 %v1101, 7
        %v1103 = vsub.s32 0, %v1102
        %v1104 = vrot.slane %v345, %v1103
        %v1105 = vlaneseq
        %v1106 = vshrl.u32 %v1105, 7
        %v1107 = vsub.s32 1, %v1106
        %v1108 = vrot.slane %v345, %v1107
        %v1111 = vmul.f32 %v1104, %v1088
        %v1112 = vmul.f32 %v1108, %v1094
        %v1113 = vmul.f32 %v1104, %v1089
        %v1114 = vmul.f32 %v1108, %v1095
        %v1115 = vmul.f32 %v1104, %v1090
        %v1116 = vmul.f32 %v1108, %v1096
        %v1117 = vmul.f32 %v1104, %v1091
        %v1118 = vmul.f32 %v1108, %v1097
        %v1119 = vmul.f32 %v1104, %v1092
        %v1120 = vmul.f32 %v1108, %v1098
        %v1121 = vmul.f32 %v1104, %v1093
        %v1122 = vmul.f32 %v1108, %v1099
        %1123 = vset.pattern.permute.xlu0 5
        %1124 = vperm.xlu0 %1123, %v362
        %v1125 = vpop.permute.xlu0 %1124
        %1127 = vset.pattern.permute.xlu0 5
        %1128 = vperm.xlu0 %1127, %v363
        %v1129 = vpop.permute.xlu0 %1128
        %1131 = vset.pattern.permute.xlu0 5
        %1132 = vperm.xlu0 %1131, %v364
        %v1133 = vpop.permute.xlu0 %1132
        %1135 = vset.pattern.permute.xlu0 5
        %1136 = vperm.xlu0 %1135, %v365
        %v1137 = vpop.permute.xlu0 %1136
        %1139 = vset.pattern.permute.xlu0 5
        %1140 = vperm.xlu0 %1139, %v366
        %v1141 = vpop.permute.xlu0 %1140
        %1143 = vset.pattern.permute.xlu0 5
        %1144 = vperm.xlu0 %1143, %v367
        %v1145 = vpop.permute.xlu0 %1144
        %v1147 = vmul.f32 %v1125, %v1111
        %v1148 = vmul.f32 %v1125, %v1112
        %v1149 = vmul.f32 %v1129, %v1113
        %v1150 = vmul.f32 %v1129, %v1114
        %v1151 = vmul.f32 %v1133, %v1115
        %v1152 = vmul.f32 %v1133, %v1116
        %v1153 = vmul.f32 %v1137, %v1117
        %v1154 = vmul.f32 %v1137, %v1118
        %v1155 = vmul.f32 %v1141, %v1119
        %v1156 = vmul.f32 %v1141, %v1120
        %v1157 = vmul.f32 %v1145, %v1121
        %v1158 = vmul.f32 %v1145, %v1122
        %v1159 = vadd.f32 %v1051, %v1147
        %v1160 = vadd.f32 %v1052, %v1148
        %v1161 = vadd.f32 %v1053, %v1149
        %v1162 = vadd.f32 %v1054, %v1150
        %v1163 = vadd.f32 %v1055, %v1151
        %v1164 = vadd.f32 %v1056, %v1152
        %v1165 = vadd.f32 %v1057, %v1153
        %v1166 = vadd.f32 %v1058, %v1154
        %v1167 = vadd.f32 %v1059, %v1155
        %v1168 = vadd.f32 %v1060, %v1156
        %v1169 = vadd.f32 %v1061, %v1157
        %v1170 = vadd.f32 %v1062, %v1158
        %1171 = vrot.lane.b32.xlu0 %v553, 113
        %v1172 = vpop.permute.xlu0 %1171
        %1173 = vrot.lane.b32.xlu0 %v559, 113
        %v1174 = vpop.permute.xlu0 %1173
        %1175 = vrot.lane.b32.xlu0 %v565, 113
        %v1176 = vpop.permute.xlu0 %1175
        %1177 = vrot.lane.b32.xlu0 %v571, 113
        %v1178 = vpop.permute.xlu0 %1177
        %1179 = vrot.lane.b32.xlu0 %v577, 113
        %v1180 = vpop.permute.xlu0 %1179
        %1181 = vrot.lane.b32.xlu0 %v583, 113
        %v1182 = vpop.permute.xlu0 %1181
        %1183 = vrot.lane.b32.xlu0 %v555, 113
        %v1184 = vpop.permute.xlu0 %1183
        %1185 = vrot.lane.b32.xlu0 %v561, 113
        %v1186 = vpop.permute.xlu0 %1185
        %1187 = vrot.lane.b32.xlu0 %v567, 113
        %v1188 = vpop.permute.xlu0 %1187
        %1189 = vrot.lane.b32.xlu0 %v573, 113
        %v1190 = vpop.permute.xlu0 %1189
        %1191 = vrot.lane.b32.xlu0 %v579, 113
        %v1192 = vpop.permute.xlu0 %1191
        %1193 = vrot.lane.b32.xlu0 %v585, 113
        %v1194 = vpop.permute.xlu0 %1193
        %vm1195 = vcmp.lt.s32.totalorder %v654, 113
        %v1196 = vsel %vm1195, %v1172, %v1184
        %v1197 = vsel %vm1195, %v1174, %v1186
        %v1198 = vsel %vm1195, %v1176, %v1188
        %v1199 = vsel %vm1195, %v1178, %v1190
        %v1200 = vsel %vm1195, %v1180, %v1192
        %v1201 = vsel %vm1195, %v1182, %v1194
        %v1202 = vsel %vm1195, %v1184, %v1172
        %v1203 = vsel %vm1195, %v1186, %v1174
        %v1204 = vsel %vm1195, %v1188, %v1176
        %v1205 = vsel %vm1195, %v1190, %v1178
        %v1206 = vsel %vm1195, %v1192, %v1180
        %v1207 = vsel %vm1195, %v1194, %v1182
        %v1209 = vlaneseq
        %v1210 = vshrl.u32 %v1209, 7
        %v1211 = vsub.s32 0, %v1210
        %v1212 = vrot.slane %v347, %v1211
        %v1213 = vlaneseq
        %v1214 = vshrl.u32 %v1213, 7
        %v1215 = vsub.s32 1, %v1214
        %v1216 = vrot.slane %v347, %v1215
        %v1219 = vmul.f32 %v1212, %v1196
        %v1220 = vmul.f32 %v1216, %v1202
        %v1221 = vmul.f32 %v1212, %v1197
        %v1222 = vmul.f32 %v1216, %v1203
        %v1223 = vmul.f32 %v1212, %v1198
        %v1224 = vmul.f32 %v1216, %v1204
        %v1225 = vmul.f32 %v1212, %v1199
        %v1226 = vmul.f32 %v1216, %v1205
        %v1227 = vmul.f32 %v1212, %v1200
        %v1228 = vmul.f32 %v1216, %v1206
        %v1229 = vmul.f32 %v1212, %v1201
        %v1230 = vmul.f32 %v1216, %v1207
        %1231 = vset.pattern.permute.xlu0 6
        %1232 = vperm.xlu0 %1231, %v362
        %v1233 = vpop.permute.xlu0 %1232
        %1235 = vset.pattern.permute.xlu0 6
        %1236 = vperm.xlu0 %1235, %v363
        %v1237 = vpop.permute.xlu0 %1236
        %1239 = vset.pattern.permute.xlu0 6
        %1240 = vperm.xlu0 %1239, %v364
        %v1241 = vpop.permute.xlu0 %1240
        %1243 = vset.pattern.permute.xlu0 6
        %1244 = vperm.xlu0 %1243, %v365
        %v1245 = vpop.permute.xlu0 %1244
        %1247 = vset.pattern.permute.xlu0 6
        %1248 = vperm.xlu0 %1247, %v366
        %v1249 = vpop.permute.xlu0 %1248
        %1251 = vset.pattern.permute.xlu0 6
        %1252 = vperm.xlu0 %1251, %v367
        %v1253 = vpop.permute.xlu0 %1252
        %v1255 = vmul.f32 %v1233, %v1219
        %v1256 = vmul.f32 %v1233, %v1220
        %v1257 = vmul.f32 %v1237, %v1221
        %v1258 = vmul.f32 %v1237, %v1222
        %v1259 = vmul.f32 %v1241, %v1223
        %v1260 = vmul.f32 %v1241, %v1224
        %v1261 = vmul.f32 %v1245, %v1225
        %v1262 = vmul.f32 %v1245, %v1226
        %v1263 = vmul.f32 %v1249, %v1227
        %v1264 = vmul.f32 %v1249, %v1228
        %v1265 = vmul.f32 %v1253, %v1229
        %v1266 = vmul.f32 %v1253, %v1230
        %v1267 = vadd.f32 %v1159, %v1255
        %v1268 = vadd.f32 %v1160, %v1256
        %v1269 = vadd.f32 %v1161, %v1257
        %v1270 = vadd.f32 %v1162, %v1258
        %v1271 = vadd.f32 %v1163, %v1259
        %v1272 = vadd.f32 %v1164, %v1260
        %v1273 = vadd.f32 %v1165, %v1261
        %v1274 = vadd.f32 %v1166, %v1262
        %v1275 = vadd.f32 %v1167, %v1263
        %v1276 = vadd.f32 %v1168, %v1264
        %v1277 = vadd.f32 %v1169, %v1265
        %v1278 = vadd.f32 %v1170, %v1266
        %1279 = vrot.lane.b32.xlu0 %v553, 112
        %v1280 = vpop.permute.xlu0 %1279
        %1281 = vrot.lane.b32.xlu0 %v559, 112
        %v1282 = vpop.permute.xlu0 %1281
        %1283 = vrot.lane.b32.xlu0 %v565, 112
        %v1284 = vpop.permute.xlu0 %1283
        %1285 = vrot.lane.b32.xlu0 %v571, 112
        %v1286 = vpop.permute.xlu0 %1285
        %1287 = vrot.lane.b32.xlu0 %v577, 112
        %v1288 = vpop.permute.xlu0 %1287
        %1289 = vrot.lane.b32.xlu0 %v583, 112
        %v1290 = vpop.permute.xlu0 %1289
        %1291 = vrot.lane.b32.xlu0 %v555, 112
        %v1292 = vpop.permute.xlu0 %1291
        %1293 = vrot.lane.b32.xlu0 %v561, 112
        %v1294 = vpop.permute.xlu0 %1293
        %1295 = vrot.lane.b32.xlu0 %v567, 112
        %v1296 = vpop.permute.xlu0 %1295
        %1297 = vrot.lane.b32.xlu0 %v573, 112
        %v1298 = vpop.permute.xlu0 %1297
        %1299 = vrot.lane.b32.xlu0 %v579, 112
        %v1300 = vpop.permute.xlu0 %1299
        %1301 = vrot.lane.b32.xlu0 %v585, 112
        %v1302 = vpop.permute.xlu0 %1301
        %vm1303 = vcmp.lt.s32.totalorder %v654, 112
        %v1304 = vsel %vm1303, %v1280, %v1292
        %v1305 = vsel %vm1303, %v1282, %v1294
        %v1306 = vsel %vm1303, %v1284, %v1296
        %v1307 = vsel %vm1303, %v1286, %v1298
        %v1308 = vsel %vm1303, %v1288, %v1300
        %v1309 = vsel %vm1303, %v1290, %v1302
        %v1310 = vsel %vm1303, %v1292, %v1280
        %v1311 = vsel %vm1303, %v1294, %v1282
        %v1312 = vsel %vm1303, %v1296, %v1284
        %v1313 = vsel %vm1303, %v1298, %v1286
        %v1314 = vsel %vm1303, %v1300, %v1288
        %v1315 = vsel %vm1303, %v1302, %v1290
        %v1317 = vlaneseq
        %v1318 = vshrl.u32 %v1317, 7
        %v1319 = vsub.s32 0, %v1318
        %v1320 = vrot.slane %v349, %v1319
        %v1321 = vlaneseq
        %v1322 = vshrl.u32 %v1321, 7
        %v1323 = vsub.s32 1, %v1322
        %v1324 = vrot.slane %v349, %v1323
        %v1327 = vmul.f32 %v1320, %v1304
        %v1328 = vmul.f32 %v1324, %v1310
        %v1329 = vmul.f32 %v1320, %v1305
        %v1330 = vmul.f32 %v1324, %v1311
        %v1331 = vmul.f32 %v1320, %v1306
        %v1332 = vmul.f32 %v1324, %v1312
        %v1333 = vmul.f32 %v1320, %v1307
        %v1334 = vmul.f32 %v1324, %v1313
        %v1335 = vmul.f32 %v1320, %v1308
        %v1336 = vmul.f32 %v1324, %v1314
        %v1337 = vmul.f32 %v1320, %v1309
        %v1338 = vmul.f32 %v1324, %v1315
        %1339 = vset.pattern.permute.xlu0 7
        %1340 = vperm.xlu0 %1339, %v362
        %v1341 = vpop.permute.xlu0 %1340
        %1343 = vset.pattern.permute.xlu0 7
        %1344 = vperm.xlu0 %1343, %v363
        %v1345 = vpop.permute.xlu0 %1344
        %1347 = vset.pattern.permute.xlu0 7
        %1348 = vperm.xlu0 %1347, %v364
        %v1349 = vpop.permute.xlu0 %1348
        %1351 = vset.pattern.permute.xlu0 7
        %1352 = vperm.xlu0 %1351, %v365
        %v1353 = vpop.permute.xlu0 %1352
        %1355 = vset.pattern.permute.xlu0 7
        %1356 = vperm.xlu0 %1355, %v366
        %v1357 = vpop.permute.xlu0 %1356
        %1359 = vset.pattern.permute.xlu0 7
        %1360 = vperm.xlu0 %1359, %v367
        %v1361 = vpop.permute.xlu0 %1360
        %v1363 = vmul.f32 %v1341, %v1327
        %v1364 = vmul.f32 %v1341, %v1328
        %v1365 = vmul.f32 %v1345, %v1329
        %v1366 = vmul.f32 %v1345, %v1330
        %v1367 = vmul.f32 %v1349, %v1331
        %v1368 = vmul.f32 %v1349, %v1332
        %v1369 = vmul.f32 %v1353, %v1333
        %v1370 = vmul.f32 %v1353, %v1334
        %v1371 = vmul.f32 %v1357, %v1335
        %v1372 = vmul.f32 %v1357, %v1336
        %v1373 = vmul.f32 %v1361, %v1337
        %v1374 = vmul.f32 %v1361, %v1338
        %v1375 = vadd.f32 %v1267, %v1363
        %v1376 = vadd.f32 %v1268, %v1364
        %v1377 = vadd.f32 %v1269, %v1365
        %v1378 = vadd.f32 %v1270, %v1366
        %v1379 = vadd.f32 %v1271, %v1367
        %v1380 = vadd.f32 %v1272, %v1368
        %v1381 = vadd.f32 %v1273, %v1369
        %v1382 = vadd.f32 %v1274, %v1370
        %v1383 = vadd.f32 %v1275, %v1371
        %v1384 = vadd.f32 %v1276, %v1372
        %v1385 = vadd.f32 %v1277, %v1373
        %v1386 = vadd.f32 %v1278, %v1374
        %1387 = vrot.lane.b32.xlu0 %v553, 111
        %v1388 = vpop.permute.xlu0 %1387
        %1389 = vrot.lane.b32.xlu0 %v559, 111
        %v1390 = vpop.permute.xlu0 %1389
        %1391 = vrot.lane.b32.xlu0 %v565, 111
        %v1392 = vpop.permute.xlu0 %1391
        %1393 = vrot.lane.b32.xlu0 %v571, 111
        %v1394 = vpop.permute.xlu0 %1393
        %1395 = vrot.lane.b32.xlu0 %v577, 111
        %v1396 = vpop.permute.xlu0 %1395
        %1397 = vrot.lane.b32.xlu0 %v583, 111
        %v1398 = vpop.permute.xlu0 %1397
        %1399 = vrot.lane.b32.xlu0 %v555, 111
        %v1400 = vpop.permute.xlu0 %1399
        %1401 = vrot.lane.b32.xlu0 %v561, 111
        %v1402 = vpop.permute.xlu0 %1401
        %1403 = vrot.lane.b32.xlu0 %v567, 111
        %v1404 = vpop.permute.xlu0 %1403
        %1405 = vrot.lane.b32.xlu0 %v573, 111
        %v1406 = vpop.permute.xlu0 %1405
        %1407 = vrot.lane.b32.xlu0 %v579, 111
        %v1408 = vpop.permute.xlu0 %1407
        %1409 = vrot.lane.b32.xlu0 %v585, 111
        %v1410 = vpop.permute.xlu0 %1409
        %vm1411 = vcmp.lt.s32.totalorder %v654, 111
        %v1412 = vsel %vm1411, %v1388, %v1400
        %v1413 = vsel %vm1411, %v1390, %v1402
        %v1414 = vsel %vm1411, %v1392, %v1404
        %v1415 = vsel %vm1411, %v1394, %v1406
        %v1416 = vsel %vm1411, %v1396, %v1408
        %v1417 = vsel %vm1411, %v1398, %v1410
        %v1418 = vsel %vm1411, %v1400, %v1388
        %v1419 = vsel %vm1411, %v1402, %v1390
        %v1420 = vsel %vm1411, %v1404, %v1392
        %v1421 = vsel %vm1411, %v1406, %v1394
        %v1422 = vsel %vm1411, %v1408, %v1396
        %v1423 = vsel %vm1411, %v1410, %v1398
        %v1425 = vlaneseq
        %v1426 = vshrl.u32 %v1425, 7
        %v1427 = vsub.s32 0, %v1426
        %v1428 = vrot.slane %v351, %v1427
        %v1429 = vlaneseq
        %v1430 = vshrl.u32 %v1429, 7
        %v1431 = vsub.s32 1, %v1430
        %v1432 = vrot.slane %v351, %v1431
        %v1435 = vmul.f32 %v1428, %v1412
        %v1436 = vmul.f32 %v1432, %v1418
        %v1437 = vmul.f32 %v1428, %v1413
        %v1438 = vmul.f32 %v1432, %v1419
        %v1439 = vmul.f32 %v1428, %v1414
        %v1440 = vmul.f32 %v1432, %v1420
        %v1441 = vmul.f32 %v1428, %v1415
        %v1442 = vmul.f32 %v1432, %v1421
        %v1443 = vmul.f32 %v1428, %v1416
        %v1444 = vmul.f32 %v1432, %v1422
        %v1445 = vmul.f32 %v1428, %v1417
        %v1446 = vmul.f32 %v1432, %v1423
        %1447 = vset.pattern.permute.xlu0 8
        %1448 = vperm.xlu0 %1447, %v362
        %v1449 = vpop.permute.xlu0 %1448
        %1451 = vset.pattern.permute.xlu0 8
        %1452 = vperm.xlu0 %1451, %v363
        %v1453 = vpop.permute.xlu0 %1452
        %1455 = vset.pattern.permute.xlu0 8
        %1456 = vperm.xlu0 %1455, %v364
        %v1457 = vpop.permute.xlu0 %1456
        %1459 = vset.pattern.permute.xlu0 8
        %1460 = vperm.xlu0 %1459, %v365
        %v1461 = vpop.permute.xlu0 %1460
        %1463 = vset.pattern.permute.xlu0 8
        %1464 = vperm.xlu0 %1463, %v366
        %v1465 = vpop.permute.xlu0 %1464
        %1467 = vset.pattern.permute.xlu0 8
        %1468 = vperm.xlu0 %1467, %v367
        %v1469 = vpop.permute.xlu0 %1468
        %v1471 = vmul.f32 %v1449, %v1435
        %v1472 = vmul.f32 %v1449, %v1436
        %v1473 = vmul.f32 %v1453, %v1437
        %v1474 = vmul.f32 %v1453, %v1438
        %v1475 = vmul.f32 %v1457, %v1439
        %v1476 = vmul.f32 %v1457, %v1440
        %v1477 = vmul.f32 %v1461, %v1441
        %v1478 = vmul.f32 %v1461, %v1442
        %v1479 = vmul.f32 %v1465, %v1443
        %v1480 = vmul.f32 %v1465, %v1444
        %v1481 = vmul.f32 %v1469, %v1445
        %v1482 = vmul.f32 %v1469, %v1446
        %v1483 = vadd.f32 %v1375, %v1471
        %v1484 = vadd.f32 %v1376, %v1472
        %v1485 = vadd.f32 %v1377, %v1473
        %v1486 = vadd.f32 %v1378, %v1474
        %v1487 = vadd.f32 %v1379, %v1475
        %v1488 = vadd.f32 %v1380, %v1476
        %v1489 = vadd.f32 %v1381, %v1477
        %v1490 = vadd.f32 %v1382, %v1478
        %v1491 = vadd.f32 %v1383, %v1479
        %v1492 = vadd.f32 %v1384, %v1480
        %v1493 = vadd.f32 %v1385, %v1481
        %v1494 = vadd.f32 %v1386, %v1482
        %v1495 = vmul.f32 %v1483, %v1483
        %v1496 = vmul.f32 %v1484, %v1484
        %v1497 = vmul.f32 %v1485, %v1485
        %v1498 = vmul.f32 %v1486, %v1486
        %v1499 = vadd.f32 %v1495, %v1496
        %1500 = vadd.xlane.f32.xlu0 %v1499
        %v1501 = vpop.xlane.xlu0 %1500
        %v1502 = vadd.f32 %v1497, %v1498
        %1503 = vadd.xlane.f32.xlu0 %v1502
        %v1504 = vpop.xlane.xlu0 %1503
        %v1505 = vmax.f32 %v1501, 1e-24
        %v1506 = vmax.f32 %v1504, 1e-24
        %v1507 = vrsqrt.pop %v1505
        %v1508 = vrsqrt.pop %v1506
        %v1509 = vmul.f32 %v1483, %v1507
        %v1510 = vmul.f32 %v1484, %v1507
        %v1511 = vmul.f32 %v1485, %v1508
        %v1512 = vmul.f32 %v1486, %v1508
        %1513 = vset.pattern.permute.xlu0 4
        %1514 = vperm.xlu0 %1513, %v352
        %v1515 = vpop.permute.xlu0 %1514
        %1517 = vset.pattern.permute.xlu0 4
        %1518 = vperm.xlu0 %1517, %v353
        %v1519 = vpop.permute.xlu0 %1518
        %v1521 = vmul.f32 %v1509, %v1515
        %v1522 = vmul.f32 %v1510, %v1515
        %v1523 = vmul.f32 %v1511, %v1519
        %v1524 = vmul.f32 %v1512, %v1519
        %v1525 = vmul.f32 %v1487, %v1487
        %v1526 = vmul.f32 %v1488, %v1488
        %v1527 = vmul.f32 %v1489, %v1489
        %v1528 = vmul.f32 %v1490, %v1490
        %v1529 = vadd.f32 %v1525, %v1526
        %1530 = vadd.xlane.f32.xlu0 %v1529
        %v1531 = vpop.xlane.xlu0 %1530
        %v1532 = vadd.f32 %v1527, %v1528
        %1533 = vadd.xlane.f32.xlu0 %v1532
        %v1534 = vpop.xlane.xlu0 %1533
        %v1535 = vmax.f32 %v1531, 1e-24
        %v1536 = vmax.f32 %v1534, 1e-24
        %v1537 = vrsqrt.pop %v1535
        %v1538 = vrsqrt.pop %v1536
        %v1539 = vmul.f32 %v1487, %v1537
        %v1540 = vmul.f32 %v1488, %v1537
        %v1541 = vmul.f32 %v1489, %v1538
        %v1542 = vmul.f32 %v1490, %v1538
        %1543 = vmatprep.subr.mxu0 %v1540
        %1544 = vmatpush1.xpose.msra.mxu0 %v1539
        %1545 = vmatprep.subr.mxu0 %v1542
        %1546 = vmatpush1.xpose.msra.mxu0 %v1541
        %1547 = vmatprep.subr.mxu0 0.0
        %1548 = vmatpush1.xpose.msra.mxu0 0.0
        %1549 = vmatprep.subr.mxu0 0.0
        %1550 = vmatpush1.xpose.msra.mxu0 0.0
        %1551 = vmatprep.subr.mxu0 0.0
        %1552 = vmatpush1.xpose.msra.mxu0 0.0
        %1553 = vmatprep.subr.mxu0 0.0
        %1554 = vmatpush1.xpose.msra.mxu0 0.0
        %1555 = vmatprep.subr.mxu0 0.0
        %1556 = vmatpush1.xpose.msra.mxu0 0.0
        %1557 = vmatprep.subr.mxu0 0.0
        %1558 = vmatpush1.xpose.msra.mxu0 0.0
        %1559 = vmatprep.subr.mxu0 0.0
        %1560 = vmatpush1.xpose.msra.mxu0 0.0
        %1561 = vmatprep.subr.mxu0 0.0
        %1562 = vmatpush1.xpose.msra.mxu0 0.0
        %1563 = vmatprep.subr.mxu0 0.0
        %1564 = vmatpush1.xpose.msra.mxu0 0.0
        %1565 = vmatprep.subr.mxu0 0.0
        %1566 = vmatpush1.xpose.msra.mxu0 0.0
        %1567 = vmatprep.subr.mxu0 0.0
        %1568 = vmatpush1.xpose.msra.mxu0 0.0
        %1569 = vmatprep.subr.mxu0 0.0
        %1570 = vmatpush1.xpose.msra.mxu0 0.0
        %1571 = vmatprep.subr.mxu0 0.0
        %1572 = vmatpush1.xpose.msra.mxu0 0.0
        %1573 = vmatprep.subr.mxu0 0.0
        %1574 = vmatpush1.xpose.msra.mxu0 0.0
        %1575 = vmatprep.subr.mxu0 0.0
        %1576 = vmatpush1.xpose.msra.mxu0 0.0
        %1577 = vmatprep.subr.mxu0 0.0
        %1578 = vmatpush1.xpose.msra.mxu0 0.0
        %1579 = vmatprep.subr.mxu0 0.0
        %1580 = vmatpush1.xpose.msra.mxu0 0.0
        %1581 = vmatprep.subr.mxu0 0.0
        %1582 = vmatpush1.xpose.msra.mxu0 0.0
        %1583 = vmatprep.subr.mxu0 0.0
        %1584 = vmatpush1.xpose.msra.mxu0 0.0
        %1585 = vmatprep.subr.mxu0 0.0
        %1586 = vmatpush1.xpose.msra.mxu0 0.0
        %1587 = vmatprep.subr.mxu0 0.0
        %1588 = vmatpush1.xpose.msra.mxu0 0.0
        %1589 = vmatprep.subr.mxu0 0.0
        %1590 = vmatpush1.xpose.msra.mxu0 0.0
        %1591 = vmatprep.subr.mxu0 0.0
        %1592 = vmatpush1.xpose.msra.mxu0 0.0
        %1593 = vmatprep.subr.mxu0 0.0
        %1594 = vmatpush1.xpose.msra.mxu0 0.0
        %1595 = vmatprep.subr.mxu0 0.0
        %1596 = vmatpush1.xpose.msra.mxu0 0.0
        %1597 = vmatprep.subr.mxu0 0.0
        %1598 = vmatpush1.xpose.msra.mxu0 0.0
        %1599 = vmatprep.subr.mxu0 0.0
        %1600 = vmatpush1.xpose.msra.mxu0 0.0
        %1601 = vmatprep.subr.mxu0 0.0
        %1602 = vmatpush1.xpose.msra.mxu0 0.0
        %1603 = vmatprep.subr.mxu0 0.0
        %1604 = vmatpush1.xpose.msra.mxu0 0.0
        %1605 = vmatprep.subr.mxu0 0.0
        %1606 = vmatpush1.xpose.msra.mxu0 0.0
        %1607 = vmatprep.mubr.f32.mxu0 %v1522
        %1608 = vmatmul.mubr.f32.gmra.mrb[0].mxu0 %v1521
        %v1609 = vpop.f32.mrb[0].mxu0
        %v1610 = vadd.f32 %v354, %v1609
        %v1611 = vpop.f32.mrb[0].mxu0
        %1612 = vmatprep.mubr.f32.mxu0 %v1524
        %1613 = vmatmul.mubr.f32.gmra.mrb[0].mxu0 %v1523
        %v1614 = vpop.f32.mrb[0].mxu0
        %v1615 = vadd.f32 %v355, %v1614
        %v1616 = vpop.f32.mrb[0].mxu0
        %1617 = vdwg.mxu0
        %v1618 = vsel %vm467, %v1610, -inf
        %1619 = vmax.xlane.f32.xlu0 %v1618
        %v1620 = vpop.xlane.xlu0 %1619
        %v1621 = vsel %vm467, %v1615, -inf
        %1622 = vmax.xlane.f32.xlu0 %v1621
        %v1623 = vpop.xlane.xlu0 %1622
        %v1624 = vsub.f32 %v1610, %v1620
        %v1625 = vsub.f32 %v1615, %v1623
        %v1626 = vmul.f32 %v1624, 1.442695
        %v1627 = vpow.pop %v1626
        %v1628 = vmul.f32 %v1625, 1.442695
        %v1629 = vpow.pop %v1628
        %v1630 = vsel %vm467, %v1627, 0.0
        %1631 = vadd.xlane.f32.xlu0 %v1630
        %v1632 = vpop.xlane.xlu0 %1631
        %v1633 = vsel %vm467, %v1629, 0.0
        %1634 = vadd.xlane.f32.xlu0 %v1633
        %v1635 = vpop.xlane.xlu0 %1634
        %v1636 = vrcp.pop %v1632
        %v1637 = vrcp.pop %v1635
        %v1638 = vmul.f32 %v1627, %v1636
        %v1639 = vmul.f32 %v1629, %v1637
        %v1641 = vsel %vm467, %v1638, 0
        %v1644 = vsel %vm467, %v1639, 0
        %1646 = vmatprep.subr.mxu0 %v1492
        %1647 = vmatpush1.msra.mxu0 %v1491
        %1648 = vmatprep.subr.mxu0 %v1494
        %1649 = vmatpush1.msra.mxu0 %v1493
        %1650 = vmatprep.subr.mxu0 0.0
        %1651 = vmatpush1.msra.mxu0 0.0
        %1652 = vmatprep.subr.mxu0 0.0
        %1653 = vmatpush1.msra.mxu0 0.0
        %1654 = vmatprep.subr.mxu0 0.0
        %1655 = vmatpush1.msra.mxu0 0.0
        %1656 = vmatprep.subr.mxu0 0.0
        %1657 = vmatpush1.msra.mxu0 0.0
        %1658 = vmatprep.subr.mxu0 0.0
        %1659 = vmatpush1.msra.mxu0 0.0
        %1660 = vmatprep.subr.mxu0 0.0
        %1661 = vmatpush1.msra.mxu0 0.0
        %1662 = vmatprep.subr.mxu0 0.0
        %1663 = vmatpush1.msra.mxu0 0.0
        %1664 = vmatprep.subr.mxu0 0.0
        %1665 = vmatpush1.msra.mxu0 0.0
        %1666 = vmatprep.subr.mxu0 0.0
        %1667 = vmatpush1.msra.mxu0 0.0
        %1668 = vmatprep.subr.mxu0 0.0
        %1669 = vmatpush1.msra.mxu0 0.0
        %1670 = vmatprep.subr.mxu0 0.0
        %1671 = vmatpush1.msra.mxu0 0.0
        %1672 = vmatprep.subr.mxu0 0.0
        %1673 = vmatpush1.msra.mxu0 0.0
        %1674 = vmatprep.subr.mxu0 0.0
        %1675 = vmatpush1.msra.mxu0 0.0
        %1676 = vmatprep.subr.mxu0 0.0
        %1677 = vmatpush1.msra.mxu0 0.0
        %1678 = vmatprep.subr.mxu0 0.0
        %1679 = vmatpush1.msra.mxu0 0.0
        %1680 = vmatprep.subr.mxu0 0.0
        %1681 = vmatpush1.msra.mxu0 0.0
        %1682 = vmatprep.subr.mxu0 0.0
        %1683 = vmatpush1.msra.mxu0 0.0
        %1684 = vmatprep.subr.mxu0 0.0
        %1685 = vmatpush1.msra.mxu0 0.0
        %1686 = vmatprep.subr.mxu0 0.0
        %1687 = vmatpush1.msra.mxu0 0.0
        %1688 = vmatprep.subr.mxu0 0.0
        %1689 = vmatpush1.msra.mxu0 0.0
        %1690 = vmatprep.subr.mxu0 0.0
        %1691 = vmatpush1.msra.mxu0 0.0
        %1692 = vmatprep.subr.mxu0 0.0
        %1693 = vmatpush1.msra.mxu0 0.0
        %1694 = vmatprep.subr.mxu0 0.0
        %1695 = vmatpush1.msra.mxu0 0.0
        %1696 = vmatprep.subr.mxu0 0.0
        %1697 = vmatpush1.msra.mxu0 0.0
        %1698 = vmatprep.subr.mxu0 0.0
        %1699 = vmatpush1.msra.mxu0 0.0
        %1700 = vmatprep.subr.mxu0 0.0
        %1701 = vmatpush1.msra.mxu0 0.0
        %1702 = vmatprep.subr.mxu0 0.0
        %1703 = vmatpush1.msra.mxu0 0.0
        %1704 = vmatprep.subr.mxu0 0.0
        %1705 = vmatpush1.msra.mxu0 0.0
        %1706 = vmatprep.subr.mxu0 0.0
        %1707 = vmatpush1.msra.mxu0 0.0
        %1708 = vmatprep.subr.mxu0 0.0
        %1709 = vmatpush1.msra.mxu0 0.0
        %1710 = vmatprep.mubr.f32.mxu0 0.0
        %1711 = vmatmul.mubr.f32.gmra.mrb[0].mxu0 %v1641
        %v1712 = vpop.f32.mrb[0].mxu0
        %v1713 = vadd.f32 0.0, %v1712
        %v1714 = vpop.f32.mrb[0].mxu0
        %v1715 = vadd.f32 0.0, %v1714
        %1716 = vmatprep.mubr.f32.mxu0 0.0
        %1717 = vmatmul.mubr.f32.gmra.mrb[0].mxu0 %v1644
        %v1718 = vpop.f32.mrb[0].mxu0
        %v1719 = vadd.f32 0.0, %v1718
        %v1720 = vpop.f32.mrb[0].mxu0
        %v1721 = vadd.f32 0.0, %v1720
        %1722 = vdwg.mxu0
        %v1724 = vsel %vm467, %v376, 0
        %v1727 = vsel %vm467, %v377, 0
        %1729 = vmatprep.subr.mxu0 %v1715
        %1730 = vmatpush1.msra.mxu0 %v1713
        %1731 = vmatprep.subr.mxu0 %v1721
        %1732 = vmatpush1.msra.mxu0 %v1719
        %1733 = vmatprep.subr.mxu0 0.0
        %1734 = vmatpush1.msra.mxu0 0.0
        %1735 = vmatprep.subr.mxu0 0.0
        %1736 = vmatpush1.msra.mxu0 0.0
        %1737 = vmatprep.subr.mxu0 0.0
        %1738 = vmatpush1.msra.mxu0 0.0
        %1739 = vmatprep.subr.mxu0 0.0
        %1740 = vmatpush1.msra.mxu0 0.0
        %1741 = vmatprep.subr.mxu0 0.0
        %1742 = vmatpush1.msra.mxu0 0.0
        %1743 = vmatprep.subr.mxu0 0.0
        %1744 = vmatpush1.msra.mxu0 0.0
        %1745 = vmatprep.subr.mxu0 0.0
        %1746 = vmatpush1.msra.mxu0 0.0
        %1747 = vmatprep.subr.mxu0 0.0
        %1748 = vmatpush1.msra.mxu0 0.0
        %1749 = vmatprep.subr.mxu0 0.0
        %1750 = vmatpush1.msra.mxu0 0.0
        %1751 = vmatprep.subr.mxu0 0.0
        %1752 = vmatpush1.msra.mxu0 0.0
        %1753 = vmatprep.subr.mxu0 0.0
        %1754 = vmatpush1.msra.mxu0 0.0
        %1755 = vmatprep.subr.mxu0 0.0
        %1756 = vmatpush1.msra.mxu0 0.0
        %1757 = vmatprep.subr.mxu0 0.0
        %1758 = vmatpush1.msra.mxu0 0.0
        %1759 = vmatprep.subr.mxu0 0.0
        %1760 = vmatpush1.msra.mxu0 0.0
        %1761 = vmatprep.subr.mxu0 0.0
        %1762 = vmatpush1.msra.mxu0 0.0
        %1763 = vmatprep.subr.mxu0 0.0
        %1764 = vmatpush1.msra.mxu0 0.0
        %1765 = vmatprep.subr.mxu0 0.0
        %1766 = vmatpush1.msra.mxu0 0.0
        %1767 = vmatprep.subr.mxu0 0.0
        %1768 = vmatpush1.msra.mxu0 0.0
        %1769 = vmatprep.subr.mxu0 0.0
        %1770 = vmatpush1.msra.mxu0 0.0
        %1771 = vmatprep.subr.mxu0 0.0
        %1772 = vmatpush1.msra.mxu0 0.0
        %1773 = vmatprep.subr.mxu0 0.0
        %1774 = vmatpush1.msra.mxu0 0.0
        %1775 = vmatprep.subr.mxu0 0.0
        %1776 = vmatpush1.msra.mxu0 0.0
        %1777 = vmatprep.subr.mxu0 0.0
        %1778 = vmatpush1.msra.mxu0 0.0
        %1779 = vmatprep.subr.mxu0 0.0
        %1780 = vmatpush1.msra.mxu0 0.0
        %1781 = vmatprep.subr.mxu0 0.0
        %1782 = vmatpush1.msra.mxu0 0.0
        %1783 = vmatprep.subr.mxu0 0.0
        %1784 = vmatpush1.msra.mxu0 0.0
        %1785 = vmatprep.subr.mxu0 0.0
        %1786 = vmatpush1.msra.mxu0 0.0
        %1787 = vmatprep.subr.mxu0 0.0
        %1788 = vmatpush1.msra.mxu0 0.0
        %1789 = vmatprep.subr.mxu0 0.0
        %1790 = vmatpush1.msra.mxu0 0.0
        %1791 = vmatprep.subr.mxu0 0.0
        %1792 = vmatpush1.msra.mxu0 0.0
        %1793 = vmatprep.mubr.f32.mxu0 0.0
        %1794 = vmatmul.mubr.f32.gmra.mrb[0].mxu0 %v1724
        %v1795 = vpop.f32.mrb[0].mxu0
        %v1796 = vadd.f32 0.0, %v1795
        %v1797 = vpop.f32.mrb[0].mxu0
        %v1798 = vadd.f32 0.0, %v1797
        %1799 = vmatprep.mubr.f32.mxu0 0.0
        %1800 = vmatmul.mubr.f32.gmra.mrb[0].mxu0 %v1727
        %v1801 = vpop.f32.mrb[0].mxu0
        %v1802 = vadd.f32 0.0, %v1801
        %v1803 = vpop.f32.mrb[0].mxu0
        %v1804 = vadd.f32 0.0, %v1803
        %1805 = vdwg.mxu0
        %v1806 = vadd.f32 %v388, %v1796
        %v1807 = vadd.f32 %v389, %v1798
        %v1808 = vadd.f32 %v390, %v1802
        %v1809 = vadd.f32 %v391, %v1804
        %v1810 = vadd.f32 %v1806, %v1808
        %v1811 = vrot.slane %v1810, 4
        %v1812 = vadd.f32 %v1810, %v1811
        %v1813 = vrot.slane %v1812, 2
        %v1814 = vadd.f32 %v1812, %v1813
        %v1815 = vrot.slane %v1814, 1
        %v1816 = vadd.f32 %v1814, %v1815
        %v1817 = vadd.f32 %v1807, %v1809
        %v1818 = vrot.slane %v1817, 4
        %v1819 = vadd.f32 %v1817, %v1818
        %v1820 = vrot.slane %v1819, 2
        %v1821 = vadd.f32 %v1819, %v1820
        %v1822 = vrot.slane %v1821, 1
        %v1823 = vadd.f32 %v1821, %v1822
        %v1824 = vmul.f32 %v1816, %v406
        %v1825 = vmul.f32 %v1823, %v406
        %v1826 = vsub.f32 %v1806, %v1824
        %v1827 = vsub.f32 %v1807, %v1825
        %v1828 = vsub.f32 %v1808, %v1824
        %v1829 = vsub.f32 %v1809, %v1825
        %v1830 = vmul.f32 %v1826, %v1826
        %v1831 = vmul.f32 %v1827, %v1827
        %v1832 = vmul.f32 %v1828, %v1828
        %v1833 = vmul.f32 %v1829, %v1829
        %v1834 = vadd.f32 %v1830, %v1832
        %v1835 = vrot.slane %v1834, 4
        %v1836 = vadd.f32 %v1834, %v1835
        %v1837 = vrot.slane %v1836, 2
        %v1838 = vadd.f32 %v1836, %v1837
        %v1839 = vrot.slane %v1838, 1
        %v1840 = vadd.f32 %v1838, %v1839
        %v1841 = vadd.f32 %v1831, %v1833
        %v1842 = vrot.slane %v1841, 4
        %v1843 = vadd.f32 %v1841, %v1842
        %v1844 = vrot.slane %v1843, 2
        %v1845 = vadd.f32 %v1843, %v1844
        %v1846 = vrot.slane %v1845, 1
        %v1847 = vadd.f32 %v1845, %v1846
        %v1848 = vmul.f32 %v1840, %v406
        %v1849 = vmul.f32 %v1847, %v406
        %v1850 = vadd.f32 %v1848, 1e-05
        %v1851 = vadd.f32 %v1849, 1e-05
        %v1852 = vrsqrt.pop %v1850
        %v1853 = vrsqrt.pop %v1851
        %v1854 = vmul.f32 %v1826, %v1852
        %v1855 = vmul.f32 %v1827, %v1853
        %v1856 = vmul.f32 %v1828, %v1852
        %v1857 = vmul.f32 %v1829, %v1853
        %1858 = vset.pattern.permute.xlu0 2
        %1859 = vperm.xlu0 %1858, %v352
        %v1860 = vpop.permute.xlu0 %1859
        %1862 = vset.pattern.permute.xlu0 2
        %1863 = vperm.xlu0 %1862, %v353
        %v1864 = vpop.permute.xlu0 %1863
        %v1866 = vmul.f32 %v1854, %v1860
        %v1867 = vmul.f32 %v1855, %v1860
        %v1868 = vmul.f32 %v1856, %v1864
        %v1869 = vmul.f32 %v1857, %v1864
        %1870 = vset.pattern.permute.xlu0 3
        %1871 = vperm.xlu0 %1870, %v352
        %v1872 = vpop.permute.xlu0 %1871
        %1874 = vset.pattern.permute.xlu0 3
        %1875 = vperm.xlu0 %1874, %v353
        %v1876 = vpop.permute.xlu0 %1875
        %v1878 = vadd.f32 %v1866, %v1872
        %v1879 = vadd.f32 %v1867, %v1872
        %v1880 = vadd.f32 %v1868, %v1876
        %v1881 = vadd.f32 %v1869, %v1876
        %v1883 = vsel %vm467, %v378, 0
        %v1886 = vsel %vm467, %v379, 0
        %v1889 = vsel %vm467, %v380, 0
        %v1892 = vsel %vm467, %v381, 0
        %v1895 = vsel %vm467, %v382, 0
        %v1898 = vsel %vm467, %v383, 0
        %v1901 = vsel %vm467, %v384, 0
        %v1904 = vsel %vm467, %v385, 0
        %1906 = vmatprep.subr.mxu0 %v1879
        %1907 = vmatpush1.msra.mxu0 %v1878
        %1908 = vmatprep.subr.mxu0 %v1881
        %1909 = vmatpush1.msra.mxu0 %v1880
        %1910 = vmatprep.subr.mxu0 0.0
        %1911 = vmatpush1.msra.mxu0 0.0
        %1912 = vmatprep.subr.mxu0 0.0
        %1913 = vmatpush1.msra.mxu0 0.0
        %1914 = vmatprep.subr.mxu0 0.0
        %1915 = vmatpush1.msra.mxu0 0.0
        %1916 = vmatprep.subr.mxu0 0.0
        %1917 = vmatpush1.msra.mxu0 0.0
        %1918 = vmatprep.subr.mxu0 0.0
        %1919 = vmatpush1.msra.mxu0 0.0
        %1920 = vmatprep.subr.mxu0 0.0
        %1921 = vmatpush1.msra.mxu0 0.0
        %1922 = vmatprep.subr.mxu0 0.0
        %1923 = vmatpush1.msra.mxu0 0.0
        %1924 = vmatprep.subr.mxu0 0.0
        %1925 = vmatpush1.msra.mxu0 0.0
        %1926 = vmatprep.subr.mxu0 0.0
        %1927 = vmatpush1.msra.mxu0 0.0
        %1928 = vmatprep.subr.mxu0 0.0
        %1929 = vmatpush1.msra.mxu0 0.0
        %1930 = vmatprep.subr.mxu0 0.0
        %1931 = vmatpush1.msra.mxu0 0.0
        %1932 = vmatprep.subr.mxu0 0.0
        %1933 = vmatpush1.msra.mxu0 0.0
        %1934 = vmatprep.subr.mxu0 0.0
        %1935 = vmatpush1.msra.mxu0 0.0
        %1936 = vmatprep.subr.mxu0 0.0
        %1937 = vmatpush1.msra.mxu0 0.0
        %1938 = vmatprep.subr.mxu0 0.0
        %1939 = vmatpush1.msra.mxu0 0.0
        %1940 = vmatprep.subr.mxu0 0.0
        %1941 = vmatpush1.msra.mxu0 0.0
        %1942 = vmatprep.subr.mxu0 0.0
        %1943 = vmatpush1.msra.mxu0 0.0
        %1944 = vmatprep.subr.mxu0 0.0
        %1945 = vmatpush1.msra.mxu0 0.0
        %1946 = vmatprep.subr.mxu0 0.0
        %1947 = vmatpush1.msra.mxu0 0.0
        %1948 = vmatprep.subr.mxu0 0.0
        %1949 = vmatpush1.msra.mxu0 0.0
        %1950 = vmatprep.subr.mxu0 0.0
        %1951 = vmatpush1.msra.mxu0 0.0
        %1952 = vmatprep.subr.mxu0 0.0
        %1953 = vmatpush1.msra.mxu0 0.0
        %1954 = vmatprep.subr.mxu0 0.0
        %1955 = vmatpush1.msra.mxu0 0.0
        %1956 = vmatprep.subr.mxu0 0.0
        %1957 = vmatpush1.msra.mxu0 0.0
        %1958 = vmatprep.subr.mxu0 0.0
        %1959 = vmatpush1.msra.mxu0 0.0
        %1960 = vmatprep.subr.mxu0 0.0
        %1961 = vmatpush1.msra.mxu0 0.0
        %1962 = vmatprep.subr.mxu0 0.0
        %1963 = vmatpush1.msra.mxu0 0.0
        %1964 = vmatprep.subr.mxu0 0.0
        %1965 = vmatpush1.msra.mxu0 0.0
        %1966 = vmatprep.subr.mxu0 0.0
        %1967 = vmatpush1.msra.mxu0 0.0
        %1968 = vmatprep.subr.mxu0 0.0
        %1969 = vmatpush1.msra.mxu0 0.0
        %1970 = vmatprep.mubr.f32.mxu0 0.0
        %1971 = vmatmul.mubr.f32.gmra.mrb[0].mxu0 %v1883
        %v1972 = vpop.f32.mrb[0].mxu0
        %v1973 = vadd.f32 0.0, %v1972
        %v1974 = vpop.f32.mrb[0].mxu0
        %v1975 = vadd.f32 0.0, %v1974
        %1976 = vmatprep.mubr.f32.mxu0 0.0
        %1977 = vmatmul.mubr.f32.gmra.mrb[0].mxu0 %v1886
        %v1978 = vpop.f32.mrb[0].mxu0
        %v1979 = vadd.f32 0.0, %v1978
        %v1980 = vpop.f32.mrb[0].mxu0
        %v1981 = vadd.f32 0.0, %v1980
        %1982 = vmatprep.mubr.f32.mxu0 0.0
        %1983 = vmatmul.mubr.f32.gmra.mrb[0].mxu0 %v1889
        %v1984 = vpop.f32.mrb[0].mxu0
        %v1985 = vadd.f32 0.0, %v1984
        %v1986 = vpop.f32.mrb[0].mxu0
        %v1987 = vadd.f32 0.0, %v1986
        %1988 = vmatprep.mubr.f32.mxu0 0.0
        %1989 = vmatmul.mubr.f32.gmra.mrb[0].mxu0 %v1892
        %v1990 = vpop.f32.mrb[0].mxu0
        %v1991 = vadd.f32 0.0, %v1990
        %v1992 = vpop.f32.mrb[0].mxu0
        %v1993 = vadd.f32 0.0, %v1992
        %1994 = vmatprep.mubr.f32.mxu0 0.0
        %1995 = vmatmul.mubr.f32.gmra.mrb[0].mxu0 %v1895
        %v1996 = vpop.f32.mrb[0].mxu0
        %v1997 = vadd.f32 0.0, %v1996
        %v1998 = vpop.f32.mrb[0].mxu0
        %v1999 = vadd.f32 0.0, %v1998
        %2000 = vmatprep.mubr.f32.mxu0 0.0
        %2001 = vmatmul.mubr.f32.gmra.mrb[0].mxu0 %v1898
        %v2002 = vpop.f32.mrb[0].mxu0
        %v2003 = vadd.f32 0.0, %v2002
        %v2004 = vpop.f32.mrb[0].mxu0
        %v2005 = vadd.f32 0.0, %v2004
        %2006 = vmatprep.mubr.f32.mxu0 0.0
        %2007 = vmatmul.mubr.f32.gmra.mrb[0].mxu0 %v1901
        %v2008 = vpop.f32.mrb[0].mxu0
        %v2009 = vadd.f32 0.0, %v2008
        %v2010 = vpop.f32.mrb[0].mxu0
        %v2011 = vadd.f32 0.0, %v2010
        %2012 = vmatprep.mubr.f32.mxu0 0.0
        %2013 = vmatmul.mubr.f32.gmra.mrb[0].mxu0 %v1904
        %v2014 = vpop.f32.mrb[0].mxu0
        %v2015 = vadd.f32 0.0, %v2014
        %v2016 = vpop.f32.mrb[0].mxu0
        %v2017 = vadd.f32 0.0, %v2016
        %2018 = vdwg.mxu0
        %2020 = vset.pattern.permute.xlu0 4
        %2021 = vperm.xlu0 %2020, %v368
        %v2022 = vpop.permute.xlu0 %2021
        %2025 = vset.pattern.permute.xlu0 4
        %2026 = vperm.xlu0 %2025, %v369
        %v2027 = vpop.permute.xlu0 %2026
        %2030 = vset.pattern.permute.xlu0 4
        %2031 = vperm.xlu0 %2030, %v370
        %v2032 = vpop.permute.xlu0 %2031
        %2035 = vset.pattern.permute.xlu0 4
        %2036 = vperm.xlu0 %2035, %v371
        %v2037 = vpop.permute.xlu0 %2036
        %2040 = vset.pattern.permute.xlu0 4
        %2041 = vperm.xlu0 %2040, %v372
        %v2042 = vpop.permute.xlu0 %2041
        %2045 = vset.pattern.permute.xlu0 4
        %2046 = vperm.xlu0 %2045, %v373
        %v2047 = vpop.permute.xlu0 %2046
        %2050 = vset.pattern.permute.xlu0 4
        %2051 = vperm.xlu0 %2050, %v374
        %v2052 = vpop.permute.xlu0 %2051
        %2055 = vset.pattern.permute.xlu0 4
        %2056 = vperm.xlu0 %2055, %v375
        %v2057 = vpop.permute.xlu0 %2056
        %v2059 = vmul.f32 %v2022, %v1973
        %v2060 = vmul.f32 %v2022, %v1975
        %v2061 = vmul.f32 %v2027, %v1979
        %v2062 = vmul.f32 %v2027, %v1981
        %v2063 = vmul.f32 %v2032, %v1985
        %v2064 = vmul.f32 %v2032, %v1987
        %v2065 = vmul.f32 %v2037, %v1991
        %v2066 = vmul.f32 %v2037, %v1993
        %v2067 = vmul.f32 %v2042, %v1997
        %v2068 = vmul.f32 %v2042, %v1999
        %v2069 = vmul.f32 %v2047, %v2003
        %v2070 = vmul.f32 %v2047, %v2005
        %v2071 = vmul.f32 %v2052, %v2009
        %v2072 = vmul.f32 %v2052, %v2011
        %v2073 = vmul.f32 %v2057, %v2015
        %v2074 = vmul.f32 %v2057, %v2017
        %2075 = vrot.lane.b32.xlu0 %v1973, 17
        %v2076 = vpop.permute.xlu0 %2075
        %2077 = vrot.lane.b32.xlu0 %v1979, 17
        %v2078 = vpop.permute.xlu0 %2077
        %2079 = vrot.lane.b32.xlu0 %v1985, 17
        %v2080 = vpop.permute.xlu0 %2079
        %2081 = vrot.lane.b32.xlu0 %v1991, 17
        %v2082 = vpop.permute.xlu0 %2081
        %2083 = vrot.lane.b32.xlu0 %v1997, 17
        %v2084 = vpop.permute.xlu0 %2083
        %2085 = vrot.lane.b32.xlu0 %v2003, 17
        %v2086 = vpop.permute.xlu0 %2085
        %2087 = vrot.lane.b32.xlu0 %v2009, 17
        %v2088 = vpop.permute.xlu0 %2087
        %2089 = vrot.lane.b32.xlu0 %v2015, 17
        %v2090 = vpop.permute.xlu0 %2089
        %2091 = vrot.lane.b32.xlu0 %v1975, 17
        %v2092 = vpop.permute.xlu0 %2091
        %2093 = vrot.lane.b32.xlu0 %v1981, 17
        %v2094 = vpop.permute.xlu0 %2093
        %2095 = vrot.lane.b32.xlu0 %v1987, 17
        %v2096 = vpop.permute.xlu0 %2095
        %2097 = vrot.lane.b32.xlu0 %v1993, 17
        %v2098 = vpop.permute.xlu0 %2097
        %2099 = vrot.lane.b32.xlu0 %v1999, 17
        %v2100 = vpop.permute.xlu0 %2099
        %2101 = vrot.lane.b32.xlu0 %v2005, 17
        %v2102 = vpop.permute.xlu0 %2101
        %2103 = vrot.lane.b32.xlu0 %v2011, 17
        %v2104 = vpop.permute.xlu0 %2103
        %2105 = vrot.lane.b32.xlu0 %v2017, 17
        %v2106 = vpop.permute.xlu0 %2105
        %v2107 = vsel %vm655, %v2076, %v2092
        %v2108 = vsel %vm655, %v2078, %v2094
        %v2109 = vsel %vm655, %v2080, %v2096
        %v2110 = vsel %vm655, %v2082, %v2098
        %v2111 = vsel %vm655, %v2084, %v2100
        %v2112 = vsel %vm655, %v2086, %v2102
        %v2113 = vsel %vm655, %v2088, %v2104
        %v2114 = vsel %vm655, %v2090, %v2106
        %v2115 = vsel %vm655, %v2092, %v2076
        %v2116 = vsel %vm655, %v2094, %v2078
        %v2117 = vsel %vm655, %v2096, %v2080
        %v2118 = vsel %vm655, %v2098, %v2082
        %v2119 = vsel %vm655, %v2100, %v2084
        %v2120 = vsel %vm655, %v2102, %v2086
        %v2121 = vsel %vm655, %v2104, %v2088
        %v2122 = vsel %vm655, %v2106, %v2090
        %v2123 = vmul.f32 %v672, %v2115
        %v2124 = vmul.f32 %v676, %v2107
        %v2125 = vmul.f32 %v672, %v2116
        %v2126 = vmul.f32 %v676, %v2108
        %v2127 = vmul.f32 %v672, %v2117
        %v2128 = vmul.f32 %v676, %v2109
        %v2129 = vmul.f32 %v672, %v2118
        %v2130 = vmul.f32 %v676, %v2110
        %v2131 = vmul.f32 %v672, %v2119
        %v2132 = vmul.f32 %v676, %v2111
        %v2133 = vmul.f32 %v672, %v2120
        %v2134 = vmul.f32 %v676, %v2112
        %v2135 = vmul.f32 %v672, %v2121
        %v2136 = vmul.f32 %v676, %v2113
        %v2137 = vmul.f32 %v672, %v2122
        %v2138 = vmul.f32 %v676, %v2114
        %2139 = vset.pattern.permute.xlu0 0
        %2140 = vperm.xlu0 %2139, %v368
        %v2141 = vpop.permute.xlu0 %2140
        %2143 = vset.pattern.permute.xlu0 0
        %2144 = vperm.xlu0 %2143, %v369
        %v2145 = vpop.permute.xlu0 %2144
        %2147 = vset.pattern.permute.xlu0 0
        %2148 = vperm.xlu0 %2147, %v370
        %v2149 = vpop.permute.xlu0 %2148
        %2151 = vset.pattern.permute.xlu0 0
        %2152 = vperm.xlu0 %2151, %v371
        %v2153 = vpop.permute.xlu0 %2152
        %2155 = vset.pattern.permute.xlu0 0
        %2156 = vperm.xlu0 %2155, %v372
        %v2157 = vpop.permute.xlu0 %2156
        %2159 = vset.pattern.permute.xlu0 0
        %2160 = vperm.xlu0 %2159, %v373
        %v2161 = vpop.permute.xlu0 %2160
        %2163 = vset.pattern.permute.xlu0 0
        %2164 = vperm.xlu0 %2163, %v374
        %v2165 = vpop.permute.xlu0 %2164
        %2167 = vset.pattern.permute.xlu0 0
        %2168 = vperm.xlu0 %2167, %v375
        %v2169 = vpop.permute.xlu0 %2168
        %v2171 = vmul.f32 %v2141, %v2123
        %v2172 = vmul.f32 %v2141, %v2124
        %v2173 = vmul.f32 %v2145, %v2125
        %v2174 = vmul.f32 %v2145, %v2126
        %v2175 = vmul.f32 %v2149, %v2127
        %v2176 = vmul.f32 %v2149, %v2128
        %v2177 = vmul.f32 %v2153, %v2129
        %v2178 = vmul.f32 %v2153, %v2130
        %v2179 = vmul.f32 %v2157, %v2131
        %v2180 = vmul.f32 %v2157, %v2132
        %v2181 = vmul.f32 %v2161, %v2133
        %v2182 = vmul.f32 %v2161, %v2134
        %v2183 = vmul.f32 %v2165, %v2135
        %v2184 = vmul.f32 %v2165, %v2136
        %v2185 = vmul.f32 %v2169, %v2137
        %v2186 = vmul.f32 %v2169, %v2138
        %v2187 = vadd.f32 %v2059, %v2171
        %v2188 = vadd.f32 %v2060, %v2172
        %v2189 = vadd.f32 %v2061, %v2173
        %v2190 = vadd.f32 %v2062, %v2174
        %v2191 = vadd.f32 %v2063, %v2175
        %v2192 = vadd.f32 %v2064, %v2176
        %v2193 = vadd.f32 %v2065, %v2177
        %v2194 = vadd.f32 %v2066, %v2178
        %v2195 = vadd.f32 %v2067, %v2179
        %v2196 = vadd.f32 %v2068, %v2180
        %v2197 = vadd.f32 %v2069, %v2181
        %v2198 = vadd.f32 %v2070, %v2182
        %v2199 = vadd.f32 %v2071, %v2183
        %v2200 = vadd.f32 %v2072, %v2184
        %v2201 = vadd.f32 %v2073, %v2185
        %v2202 = vadd.f32 %v2074, %v2186
        %2203 = vrot.lane.b32.xlu0 %v1973, 16
        %v2204 = vpop.permute.xlu0 %2203
        %2205 = vrot.lane.b32.xlu0 %v1979, 16
        %v2206 = vpop.permute.xlu0 %2205
        %2207 = vrot.lane.b32.xlu0 %v1985, 16
        %v2208 = vpop.permute.xlu0 %2207
        %2209 = vrot.lane.b32.xlu0 %v1991, 16
        %v2210 = vpop.permute.xlu0 %2209
        %2211 = vrot.lane.b32.xlu0 %v1997, 16
        %v2212 = vpop.permute.xlu0 %2211
        %2213 = vrot.lane.b32.xlu0 %v2003, 16
        %v2214 = vpop.permute.xlu0 %2213
        %2215 = vrot.lane.b32.xlu0 %v2009, 16
        %v2216 = vpop.permute.xlu0 %2215
        %2217 = vrot.lane.b32.xlu0 %v2015, 16
        %v2218 = vpop.permute.xlu0 %2217
        %2219 = vrot.lane.b32.xlu0 %v1975, 16
        %v2220 = vpop.permute.xlu0 %2219
        %2221 = vrot.lane.b32.xlu0 %v1981, 16
        %v2222 = vpop.permute.xlu0 %2221
        %2223 = vrot.lane.b32.xlu0 %v1987, 16
        %v2224 = vpop.permute.xlu0 %2223
        %2225 = vrot.lane.b32.xlu0 %v1993, 16
        %v2226 = vpop.permute.xlu0 %2225
        %2227 = vrot.lane.b32.xlu0 %v1999, 16
        %v2228 = vpop.permute.xlu0 %2227
        %2229 = vrot.lane.b32.xlu0 %v2005, 16
        %v2230 = vpop.permute.xlu0 %2229
        %2231 = vrot.lane.b32.xlu0 %v2011, 16
        %v2232 = vpop.permute.xlu0 %2231
        %2233 = vrot.lane.b32.xlu0 %v2017, 16
        %v2234 = vpop.permute.xlu0 %2233
        %v2235 = vsel %vm763, %v2204, %v2220
        %v2236 = vsel %vm763, %v2206, %v2222
        %v2237 = vsel %vm763, %v2208, %v2224
        %v2238 = vsel %vm763, %v2210, %v2226
        %v2239 = vsel %vm763, %v2212, %v2228
        %v2240 = vsel %vm763, %v2214, %v2230
        %v2241 = vsel %vm763, %v2216, %v2232
        %v2242 = vsel %vm763, %v2218, %v2234
        %v2243 = vsel %vm763, %v2220, %v2204
        %v2244 = vsel %vm763, %v2222, %v2206
        %v2245 = vsel %vm763, %v2224, %v2208
        %v2246 = vsel %vm763, %v2226, %v2210
        %v2247 = vsel %vm763, %v2228, %v2212
        %v2248 = vsel %vm763, %v2230, %v2214
        %v2249 = vsel %vm763, %v2232, %v2216
        %v2250 = vsel %vm763, %v2234, %v2218
        %v2251 = vmul.f32 %v780, %v2243
        %v2252 = vmul.f32 %v784, %v2235
        %v2253 = vmul.f32 %v780, %v2244
        %v2254 = vmul.f32 %v784, %v2236
        %v2255 = vmul.f32 %v780, %v2245
        %v2256 = vmul.f32 %v784, %v2237
        %v2257 = vmul.f32 %v780, %v2246
        %v2258 = vmul.f32 %v784, %v2238
        %v2259 = vmul.f32 %v780, %v2247
        %v2260 = vmul.f32 %v784, %v2239
        %v2261 = vmul.f32 %v780, %v2248
        %v2262 = vmul.f32 %v784, %v2240
        %v2263 = vmul.f32 %v780, %v2249
        %v2264 = vmul.f32 %v784, %v2241
        %v2265 = vmul.f32 %v780, %v2250
        %v2266 = vmul.f32 %v784, %v2242
        %2267 = vset.pattern.permute.xlu0 1
        %2268 = vperm.xlu0 %2267, %v368
        %v2269 = vpop.permute.xlu0 %2268
        %2271 = vset.pattern.permute.xlu0 1
        %2272 = vperm.xlu0 %2271, %v369
        %v2273 = vpop.permute.xlu0 %2272
        %2275 = vset.pattern.permute.xlu0 1
        %2276 = vperm.xlu0 %2275, %v370
        %v2277 = vpop.permute.xlu0 %2276
        %2279 = vset.pattern.permute.xlu0 1
        %2280 = vperm.xlu0 %2279, %v371
        %v2281 = vpop.permute.xlu0 %2280
        %2283 = vset.pattern.permute.xlu0 1
        %2284 = vperm.xlu0 %2283, %v372
        %v2285 = vpop.permute.xlu0 %2284
        %2287 = vset.pattern.permute.xlu0 1
        %2288 = vperm.xlu0 %2287, %v373
        %v2289 = vpop.permute.xlu0 %2288
        %2291 = vset.pattern.permute.xlu0 1
        %2292 = vperm.xlu0 %2291, %v374
        %v2293 = vpop.permute.xlu0 %2292
        %2295 = vset.pattern.permute.xlu0 1
        %2296 = vperm.xlu0 %2295, %v375
        %v2297 = vpop.permute.xlu0 %2296
        %v2299 = vmul.f32 %v2269, %v2251
        %v2300 = vmul.f32 %v2269, %v2252
        %v2301 = vmul.f32 %v2273, %v2253
        %v2302 = vmul.f32 %v2273, %v2254
        %v2303 = vmul.f32 %v2277, %v2255
        %v2304 = vmul.f32 %v2277, %v2256
        %v2305 = vmul.f32 %v2281, %v2257
        %v2306 = vmul.f32 %v2281, %v2258
        %v2307 = vmul.f32 %v2285, %v2259
        %v2308 = vmul.f32 %v2285, %v2260
        %v2309 = vmul.f32 %v2289, %v2261
        %v2310 = vmul.f32 %v2289, %v2262
        %v2311 = vmul.f32 %v2293, %v2263
        %v2312 = vmul.f32 %v2293, %v2264
        %v2313 = vmul.f32 %v2297, %v2265
        %v2314 = vmul.f32 %v2297, %v2266
        %v2315 = vadd.f32 %v2187, %v2299
        %v2316 = vadd.f32 %v2188, %v2300
        %v2317 = vadd.f32 %v2189, %v2301
        %v2318 = vadd.f32 %v2190, %v2302
        %v2319 = vadd.f32 %v2191, %v2303
        %v2320 = vadd.f32 %v2192, %v2304
        %v2321 = vadd.f32 %v2193, %v2305
        %v2322 = vadd.f32 %v2194, %v2306
        %v2323 = vadd.f32 %v2195, %v2307
        %v2324 = vadd.f32 %v2196, %v2308
        %v2325 = vadd.f32 %v2197, %v2309
        %v2326 = vadd.f32 %v2198, %v2310
        %v2327 = vadd.f32 %v2199, %v2311
        %v2328 = vadd.f32 %v2200, %v2312
        %v2329 = vadd.f32 %v2201, %v2313
        %v2330 = vadd.f32 %v2202, %v2314
        %2331 = vrot.lane.b32.xlu0 %v1973, 15
        %v2332 = vpop.permute.xlu0 %2331
        %2333 = vrot.lane.b32.xlu0 %v1979, 15
        %v2334 = vpop.permute.xlu0 %2333
        %2335 = vrot.lane.b32.xlu0 %v1985, 15
        %v2336 = vpop.permute.xlu0 %2335
        %2337 = vrot.lane.b32.xlu0 %v1991, 15
        %v2338 = vpop.permute.xlu0 %2337
        %2339 = vrot.lane.b32.xlu0 %v1997, 15
        %v2340 = vpop.permute.xlu0 %2339
        %2341 = vrot.lane.b32.xlu0 %v2003, 15
        %v2342 = vpop.permute.xlu0 %2341
        %2343 = vrot.lane.b32.xlu0 %v2009, 15
        %v2344 = vpop.permute.xlu0 %2343
        %2345 = vrot.lane.b32.xlu0 %v2015, 15
        %v2346 = vpop.permute.xlu0 %2345
        %2347 = vrot.lane.b32.xlu0 %v1975, 15
        %v2348 = vpop.permute.xlu0 %2347
        %2349 = vrot.lane.b32.xlu0 %v1981, 15
        %v2350 = vpop.permute.xlu0 %2349
        %2351 = vrot.lane.b32.xlu0 %v1987, 15
        %v2352 = vpop.permute.xlu0 %2351
        %2353 = vrot.lane.b32.xlu0 %v1993, 15
        %v2354 = vpop.permute.xlu0 %2353
        %2355 = vrot.lane.b32.xlu0 %v1999, 15
        %v2356 = vpop.permute.xlu0 %2355
        %2357 = vrot.lane.b32.xlu0 %v2005, 15
        %v2358 = vpop.permute.xlu0 %2357
        %2359 = vrot.lane.b32.xlu0 %v2011, 15
        %v2360 = vpop.permute.xlu0 %2359
        %2361 = vrot.lane.b32.xlu0 %v2017, 15
        %v2362 = vpop.permute.xlu0 %2361
        %v2363 = vsel %vm871, %v2332, %v2348
        %v2364 = vsel %vm871, %v2334, %v2350
        %v2365 = vsel %vm871, %v2336, %v2352
        %v2366 = vsel %vm871, %v2338, %v2354
        %v2367 = vsel %vm871, %v2340, %v2356
        %v2368 = vsel %vm871, %v2342, %v2358
        %v2369 = vsel %vm871, %v2344, %v2360
        %v2370 = vsel %vm871, %v2346, %v2362
        %v2371 = vsel %vm871, %v2348, %v2332
        %v2372 = vsel %vm871, %v2350, %v2334
        %v2373 = vsel %vm871, %v2352, %v2336
        %v2374 = vsel %vm871, %v2354, %v2338
        %v2375 = vsel %vm871, %v2356, %v2340
        %v2376 = vsel %vm871, %v2358, %v2342
        %v2377 = vsel %vm871, %v2360, %v2344
        %v2378 = vsel %vm871, %v2362, %v2346
        %v2379 = vmul.f32 %v888, %v2371
        %v2380 = vmul.f32 %v892, %v2363
        %v2381 = vmul.f32 %v888, %v2372
        %v2382 = vmul.f32 %v892, %v2364
        %v2383 = vmul.f32 %v888, %v2373
        %v2384 = vmul.f32 %v892, %v2365
        %v2385 = vmul.f32 %v888, %v2374
        %v2386 = vmul.f32 %v892, %v2366
        %v2387 = vmul.f32 %v888, %v2375
        %v2388 = vmul.f32 %v892, %v2367
        %v2389 = vmul.f32 %v888, %v2376
        %v2390 = vmul.f32 %v892, %v2368
        %v2391 = vmul.f32 %v888, %v2377
        %v2392 = vmul.f32 %v892, %v2369
        %v2393 = vmul.f32 %v888, %v2378
        %v2394 = vmul.f32 %v892, %v2370
        %2395 = vset.pattern.permute.xlu0 2
        %2396 = vperm.xlu0 %2395, %v368
        %v2397 = vpop.permute.xlu0 %2396
        %2399 = vset.pattern.permute.xlu0 2
        %2400 = vperm.xlu0 %2399, %v369
        %v2401 = vpop.permute.xlu0 %2400
        %2403 = vset.pattern.permute.xlu0 2
        %2404 = vperm.xlu0 %2403, %v370
        %v2405 = vpop.permute.xlu0 %2404
        %2407 = vset.pattern.permute.xlu0 2
        %2408 = vperm.xlu0 %2407, %v371
        %v2409 = vpop.permute.xlu0 %2408
        %2411 = vset.pattern.permute.xlu0 2
        %2412 = vperm.xlu0 %2411, %v372
        %v2413 = vpop.permute.xlu0 %2412
        %2415 = vset.pattern.permute.xlu0 2
        %2416 = vperm.xlu0 %2415, %v373
        %v2417 = vpop.permute.xlu0 %2416
        %2419 = vset.pattern.permute.xlu0 2
        %2420 = vperm.xlu0 %2419, %v374
        %v2421 = vpop.permute.xlu0 %2420
        %2423 = vset.pattern.permute.xlu0 2
        %2424 = vperm.xlu0 %2423, %v375
        %v2425 = vpop.permute.xlu0 %2424
        %v2427 = vmul.f32 %v2397, %v2379
        %v2428 = vmul.f32 %v2397, %v2380
        %v2429 = vmul.f32 %v2401, %v2381
        %v2430 = vmul.f32 %v2401, %v2382
        %v2431 = vmul.f32 %v2405, %v2383
        %v2432 = vmul.f32 %v2405, %v2384
        %v2433 = vmul.f32 %v2409, %v2385
        %v2434 = vmul.f32 %v2409, %v2386
        %v2435 = vmul.f32 %v2413, %v2387
        %v2436 = vmul.f32 %v2413, %v2388
        %v2437 = vmul.f32 %v2417, %v2389
        %v2438 = vmul.f32 %v2417, %v2390
        %v2439 = vmul.f32 %v2421, %v2391
        %v2440 = vmul.f32 %v2421, %v2392
        %v2441 = vmul.f32 %v2425, %v2393
        %v2442 = vmul.f32 %v2425, %v2394
        %v2443 = vadd.f32 %v2315, %v2427
        %v2444 = vadd.f32 %v2316, %v2428
        %v2445 = vadd.f32 %v2317, %v2429
        %v2446 = vadd.f32 %v2318, %v2430
        %v2447 = vadd.f32 %v2319, %v2431
        %v2448 = vadd.f32 %v2320, %v2432
        %v2449 = vadd.f32 %v2321, %v2433
        %v2450 = vadd.f32 %v2322, %v2434
        %v2451 = vadd.f32 %v2323, %v2435
        %v2452 = vadd.f32 %v2324, %v2436
        %v2453 = vadd.f32 %v2325, %v2437
        %v2454 = vadd.f32 %v2326, %v2438
        %v2455 = vadd.f32 %v2327, %v2439
        %v2456 = vadd.f32 %v2328, %v2440
        %v2457 = vadd.f32 %v2329, %v2441
        %v2458 = vadd.f32 %v2330, %v2442
        %2459 = vrot.lane.b32.xlu0 %v1973, 1
        %v2460 = vpop.permute.xlu0 %2459
        %2461 = vrot.lane.b32.xlu0 %v1979, 1
        %v2462 = vpop.permute.xlu0 %2461
        %2463 = vrot.lane.b32.xlu0 %v1985, 1
        %v2464 = vpop.permute.xlu0 %2463
        %2465 = vrot.lane.b32.xlu0 %v1991, 1
        %v2466 = vpop.permute.xlu0 %2465
        %2467 = vrot.lane.b32.xlu0 %v1997, 1
        %v2468 = vpop.permute.xlu0 %2467
        %2469 = vrot.lane.b32.xlu0 %v2003, 1
        %v2470 = vpop.permute.xlu0 %2469
        %2471 = vrot.lane.b32.xlu0 %v2009, 1
        %v2472 = vpop.permute.xlu0 %2471
        %2473 = vrot.lane.b32.xlu0 %v2015, 1
        %v2474 = vpop.permute.xlu0 %2473
        %2475 = vrot.lane.b32.xlu0 %v1975, 1
        %v2476 = vpop.permute.xlu0 %2475
        %2477 = vrot.lane.b32.xlu0 %v1981, 1
        %v2478 = vpop.permute.xlu0 %2477
        %2479 = vrot.lane.b32.xlu0 %v1987, 1
        %v2480 = vpop.permute.xlu0 %2479
        %2481 = vrot.lane.b32.xlu0 %v1993, 1
        %v2482 = vpop.permute.xlu0 %2481
        %2483 = vrot.lane.b32.xlu0 %v1999, 1
        %v2484 = vpop.permute.xlu0 %2483
        %2485 = vrot.lane.b32.xlu0 %v2005, 1
        %v2486 = vpop.permute.xlu0 %2485
        %2487 = vrot.lane.b32.xlu0 %v2011, 1
        %v2488 = vpop.permute.xlu0 %2487
        %2489 = vrot.lane.b32.xlu0 %v2017, 1
        %v2490 = vpop.permute.xlu0 %2489
        %v2491 = vsel %vm979, %v2460, %v2476
        %v2492 = vsel %vm979, %v2462, %v2478
        %v2493 = vsel %vm979, %v2464, %v2480
        %v2494 = vsel %vm979, %v2466, %v2482
        %v2495 = vsel %vm979, %v2468, %v2484
        %v2496 = vsel %vm979, %v2470, %v2486
        %v2497 = vsel %vm979, %v2472, %v2488
        %v2498 = vsel %vm979, %v2474, %v2490
        %v2499 = vsel %vm979, %v2476, %v2460
        %v2500 = vsel %vm979, %v2478, %v2462
        %v2501 = vsel %vm979, %v2480, %v2464
        %v2502 = vsel %vm979, %v2482, %v2466
        %v2503 = vsel %vm979, %v2484, %v2468
        %v2504 = vsel %vm979, %v2486, %v2470
        %v2505 = vsel %vm979, %v2488, %v2472
        %v2506 = vsel %vm979, %v2490, %v2474
        %v2507 = vmul.f32 %v996, %v2499
        %v2508 = vmul.f32 %v1000, %v2491
        %v2509 = vmul.f32 %v996, %v2500
        %v2510 = vmul.f32 %v1000, %v2492
        %v2511 = vmul.f32 %v996, %v2501
        %v2512 = vmul.f32 %v1000, %v2493
        %v2513 = vmul.f32 %v996, %v2502
        %v2514 = vmul.f32 %v1000, %v2494
        %v2515 = vmul.f32 %v996, %v2503
        %v2516 = vmul.f32 %v1000, %v2495
        %v2517 = vmul.f32 %v996, %v2504
        %v2518 = vmul.f32 %v1000, %v2496
        %v2519 = vmul.f32 %v996, %v2505
        %v2520 = vmul.f32 %v1000, %v2497
        %v2521 = vmul.f32 %v996, %v2506
        %v2522 = vmul.f32 %v1000, %v2498
        %2523 = vset.pattern.permute.xlu0 3
        %2524 = vperm.xlu0 %2523, %v368
        %v2525 = vpop.permute.xlu0 %2524
        %2527 = vset.pattern.permute.xlu0 3
        %2528 = vperm.xlu0 %2527, %v369
        %v2529 = vpop.permute.xlu0 %2528
        %2531 = vset.pattern.permute.xlu0 3
        %2532 = vperm.xlu0 %2531, %v370
        %v2533 = vpop.permute.xlu0 %2532
        %2535 = vset.pattern.permute.xlu0 3
        %2536 = vperm.xlu0 %2535, %v371
        %v2537 = vpop.permute.xlu0 %2536
        %2539 = vset.pattern.permute.xlu0 3
        %2540 = vperm.xlu0 %2539, %v372
        %v2541 = vpop.permute.xlu0 %2540
        %2543 = vset.pattern.permute.xlu0 3
        %2544 = vperm.xlu0 %2543, %v373
        %v2545 = vpop.permute.xlu0 %2544
        %2547 = vset.pattern.permute.xlu0 3
        %2548 = vperm.xlu0 %2547, %v374
        %v2549 = vpop.permute.xlu0 %2548
        %2551 = vset.pattern.permute.xlu0 3
        %2552 = vperm.xlu0 %2551, %v375
        %v2553 = vpop.permute.xlu0 %2552
        %v2555 = vmul.f32 %v2525, %v2507
        %v2556 = vmul.f32 %v2525, %v2508
        %v2557 = vmul.f32 %v2529, %v2509
        %v2558 = vmul.f32 %v2529, %v2510
        %v2559 = vmul.f32 %v2533, %v2511
        %v2560 = vmul.f32 %v2533, %v2512
        %v2561 = vmul.f32 %v2537, %v2513
        %v2562 = vmul.f32 %v2537, %v2514
        %v2563 = vmul.f32 %v2541, %v2515
        %v2564 = vmul.f32 %v2541, %v2516
        %v2565 = vmul.f32 %v2545, %v2517
        %v2566 = vmul.f32 %v2545, %v2518
        %v2567 = vmul.f32 %v2549, %v2519
        %v2568 = vmul.f32 %v2549, %v2520
        %v2569 = vmul.f32 %v2553, %v2521
        %v2570 = vmul.f32 %v2553, %v2522
        %v2571 = vadd.f32 %v2443, %v2555
        %v2572 = vadd.f32 %v2444, %v2556
        %v2573 = vadd.f32 %v2445, %v2557
        %v2574 = vadd.f32 %v2446, %v2558
        %v2575 = vadd.f32 %v2447, %v2559
        %v2576 = vadd.f32 %v2448, %v2560
        %v2577 = vadd.f32 %v2449, %v2561
        %v2578 = vadd.f32 %v2450, %v2562
        %v2579 = vadd.f32 %v2451, %v2563
        %v2580 = vadd.f32 %v2452, %v2564
        %v2581 = vadd.f32 %v2453, %v2565
        %v2582 = vadd.f32 %v2454, %v2566
        %v2583 = vadd.f32 %v2455, %v2567
        %v2584 = vadd.f32 %v2456, %v2568
        %v2585 = vadd.f32 %v2457, %v2569
        %v2586 = vadd.f32 %v2458, %v2570
        %2587 = vrot.lane.b32.xlu0 %v1973, 127
        %v2588 = vpop.permute.xlu0 %2587
        %2589 = vrot.lane.b32.xlu0 %v1979, 127
        %v2590 = vpop.permute.xlu0 %2589
        %2591 = vrot.lane.b32.xlu0 %v1985, 127
        %v2592 = vpop.permute.xlu0 %2591
        %2593 = vrot.lane.b32.xlu0 %v1991, 127
        %v2594 = vpop.permute.xlu0 %2593
        %2595 = vrot.lane.b32.xlu0 %v1997, 127
        %v2596 = vpop.permute.xlu0 %2595
        %2597 = vrot.lane.b32.xlu0 %v2003, 127
        %v2598 = vpop.permute.xlu0 %2597
        %2599 = vrot.lane.b32.xlu0 %v2009, 127
        %v2600 = vpop.permute.xlu0 %2599
        %2601 = vrot.lane.b32.xlu0 %v2015, 127
        %v2602 = vpop.permute.xlu0 %2601
        %2603 = vrot.lane.b32.xlu0 %v1975, 127
        %v2604 = vpop.permute.xlu0 %2603
        %2605 = vrot.lane.b32.xlu0 %v1981, 127
        %v2606 = vpop.permute.xlu0 %2605
        %2607 = vrot.lane.b32.xlu0 %v1987, 127
        %v2608 = vpop.permute.xlu0 %2607
        %2609 = vrot.lane.b32.xlu0 %v1993, 127
        %v2610 = vpop.permute.xlu0 %2609
        %2611 = vrot.lane.b32.xlu0 %v1999, 127
        %v2612 = vpop.permute.xlu0 %2611
        %2613 = vrot.lane.b32.xlu0 %v2005, 127
        %v2614 = vpop.permute.xlu0 %2613
        %2615 = vrot.lane.b32.xlu0 %v2011, 127
        %v2616 = vpop.permute.xlu0 %2615
        %2617 = vrot.lane.b32.xlu0 %v2017, 127
        %v2618 = vpop.permute.xlu0 %2617
        %v2619 = vsel %vm1087, %v2588, %v2604
        %v2620 = vsel %vm1087, %v2590, %v2606
        %v2621 = vsel %vm1087, %v2592, %v2608
        %v2622 = vsel %vm1087, %v2594, %v2610
        %v2623 = vsel %vm1087, %v2596, %v2612
        %v2624 = vsel %vm1087, %v2598, %v2614
        %v2625 = vsel %vm1087, %v2600, %v2616
        %v2626 = vsel %vm1087, %v2602, %v2618
        %v2627 = vsel %vm1087, %v2604, %v2588
        %v2628 = vsel %vm1087, %v2606, %v2590
        %v2629 = vsel %vm1087, %v2608, %v2592
        %v2630 = vsel %vm1087, %v2610, %v2594
        %v2631 = vsel %vm1087, %v2612, %v2596
        %v2632 = vsel %vm1087, %v2614, %v2598
        %v2633 = vsel %vm1087, %v2616, %v2600
        %v2634 = vsel %vm1087, %v2618, %v2602
        %v2635 = vmul.f32 %v1104, %v2619
        %v2636 = vmul.f32 %v1108, %v2627
        %v2637 = vmul.f32 %v1104, %v2620
        %v2638 = vmul.f32 %v1108, %v2628
        %v2639 = vmul.f32 %v1104, %v2621
        %v2640 = vmul.f32 %v1108, %v2629
        %v2641 = vmul.f32 %v1104, %v2622
        %v2642 = vmul.f32 %v1108, %v2630
        %v2643 = vmul.f32 %v1104, %v2623
        %v2644 = vmul.f32 %v1108, %v2631
        %v2645 = vmul.f32 %v1104, %v2624
        %v2646 = vmul.f32 %v1108, %v2632
        %v2647 = vmul.f32 %v1104, %v2625
        %v2648 = vmul.f32 %v1108, %v2633
        %v2649 = vmul.f32 %v1104, %v2626
        %v2650 = vmul.f32 %v1108, %v2634
        %2651 = vset.pattern.permute.xlu0 5
        %2652 = vperm.xlu0 %2651, %v368
        %v2653 = vpop.permute.xlu0 %2652
        %2655 = vset.pattern.permute.xlu0 5
        %2656 = vperm.xlu0 %2655, %v369
        %v2657 = vpop.permute.xlu0 %2656
        %2659 = vset.pattern.permute.xlu0 5
        %2660 = vperm.xlu0 %2659, %v370
        %v2661 = vpop.permute.xlu0 %2660
        %2663 = vset.pattern.permute.xlu0 5
        %2664 = vperm.xlu0 %2663, %v371
        %v2665 = vpop.permute.xlu0 %2664
        %2667 = vset.pattern.permute.xlu0 5
        %2668 = vperm.xlu0 %2667, %v372
        %v2669 = vpop.permute.xlu0 %2668
        %2671 = vset.pattern.permute.xlu0 5
        %2672 = vperm.xlu0 %2671, %v373
        %v2673 = vpop.permute.xlu0 %2672
        %2675 = vset.pattern.permute.xlu0 5
        %2676 = vperm.xlu0 %2675, %v374
        %v2677 = vpop.permute.xlu0 %2676
        %2679 = vset.pattern.permute.xlu0 5
        %2680 = vperm.xlu0 %2679, %v375
        %v2681 = vpop.permute.xlu0 %2680
        %v2683 = vmul.f32 %v2653, %v2635
        %v2684 = vmul.f32 %v2653, %v2636
        %v2685 = vmul.f32 %v2657, %v2637
        %v2686 = vmul.f32 %v2657, %v2638
        %v2687 = vmul.f32 %v2661, %v2639
        %v2688 = vmul.f32 %v2661, %v2640
        %v2689 = vmul.f32 %v2665, %v2641
        %v2690 = vmul.f32 %v2665, %v2642
        %v2691 = vmul.f32 %v2669, %v2643
        %v2692 = vmul.f32 %v2669, %v2644
        %v2693 = vmul.f32 %v2673, %v2645
        %v2694 = vmul.f32 %v2673, %v2646
        %v2695 = vmul.f32 %v2677, %v2647
        %v2696 = vmul.f32 %v2677, %v2648
        %v2697 = vmul.f32 %v2681, %v2649
        %v2698 = vmul.f32 %v2681, %v2650
        %v2699 = vadd.f32 %v2571, %v2683
        %v2700 = vadd.f32 %v2572, %v2684
        %v2701 = vadd.f32 %v2573, %v2685
        %v2702 = vadd.f32 %v2574, %v2686
        %v2703 = vadd.f32 %v2575, %v2687
        %v2704 = vadd.f32 %v2576, %v2688
        %v2705 = vadd.f32 %v2577, %v2689
        %v2706 = vadd.f32 %v2578, %v2690
        %v2707 = vadd.f32 %v2579, %v2691
        %v2708 = vadd.f32 %v2580, %v2692
        %v2709 = vadd.f32 %v2581, %v2693
        %v2710 = vadd.f32 %v2582, %v2694
        %v2711 = vadd.f32 %v2583, %v2695
        %v2712 = vadd.f32 %v2584, %v2696
        %v2713 = vadd.f32 %v2585, %v2697
        %v2714 = vadd.f32 %v2586, %v2698
        %2715 = vrot.lane.b32.xlu0 %v1973, 113
        %v2716 = vpop.permute.xlu0 %2715
        %2717 = vrot.lane.b32.xlu0 %v1979, 113
        %v2718 = vpop.permute.xlu0 %2717
        %2719 = vrot.lane.b32.xlu0 %v1985, 113
        %v2720 = vpop.permute.xlu0 %2719
        %2721 = vrot.lane.b32.xlu0 %v1991, 113
        %v2722 = vpop.permute.xlu0 %2721
        %2723 = vrot.lane.b32.xlu0 %v1997, 113
        %v2724 = vpop.permute.xlu0 %2723
        %2725 = vrot.lane.b32.xlu0 %v2003, 113
        %v2726 = vpop.permute.xlu0 %2725
        %2727 = vrot.lane.b32.xlu0 %v2009, 113
        %v2728 = vpop.permute.xlu0 %2727
        %2729 = vrot.lane.b32.xlu0 %v2015, 113
        %v2730 = vpop.permute.xlu0 %2729
        %2731 = vrot.lane.b32.xlu0 %v1975, 113
        %v2732 = vpop.permute.xlu0 %2731
        %2733 = vrot.lane.b32.xlu0 %v1981, 113
        %v2734 = vpop.permute.xlu0 %2733
        %2735 = vrot.lane.b32.xlu0 %v1987, 113
        %v2736 = vpop.permute.xlu0 %2735
        %2737 = vrot.lane.b32.xlu0 %v1993, 113
        %v2738 = vpop.permute.xlu0 %2737
        %2739 = vrot.lane.b32.xlu0 %v1999, 113
        %v2740 = vpop.permute.xlu0 %2739
        %2741 = vrot.lane.b32.xlu0 %v2005, 113
        %v2742 = vpop.permute.xlu0 %2741
        %2743 = vrot.lane.b32.xlu0 %v2011, 113
        %v2744 = vpop.permute.xlu0 %2743
        %2745 = vrot.lane.b32.xlu0 %v2017, 113
        %v2746 = vpop.permute.xlu0 %2745
        %v2747 = vsel %vm1195, %v2716, %v2732
        %v2748 = vsel %vm1195, %v2718, %v2734
        %v2749 = vsel %vm1195, %v2720, %v2736
        %v2750 = vsel %vm1195, %v2722, %v2738
        %v2751 = vsel %vm1195, %v2724, %v2740
        %v2752 = vsel %vm1195, %v2726, %v2742
        %v2753 = vsel %vm1195, %v2728, %v2744
        %v2754 = vsel %vm1195, %v2730, %v2746
        %v2755 = vsel %vm1195, %v2732, %v2716
        %v2756 = vsel %vm1195, %v2734, %v2718
        %v2757 = vsel %vm1195, %v2736, %v2720
        %v2758 = vsel %vm1195, %v2738, %v2722
        %v2759 = vsel %vm1195, %v2740, %v2724
        %v2760 = vsel %vm1195, %v2742, %v2726
        %v2761 = vsel %vm1195, %v2744, %v2728
        %v2762 = vsel %vm1195, %v2746, %v2730
        %v2763 = vmul.f32 %v1212, %v2747
        %v2764 = vmul.f32 %v1216, %v2755
        %v2765 = vmul.f32 %v1212, %v2748
        %v2766 = vmul.f32 %v1216, %v2756
        %v2767 = vmul.f32 %v1212, %v2749
        %v2768 = vmul.f32 %v1216, %v2757
        %v2769 = vmul.f32 %v1212, %v2750
        %v2770 = vmul.f32 %v1216, %v2758
        %v2771 = vmul.f32 %v1212, %v2751
        %v2772 = vmul.f32 %v1216, %v2759
        %v2773 = vmul.f32 %v1212, %v2752
        %v2774 = vmul.f32 %v1216, %v2760
        %v2775 = vmul.f32 %v1212, %v2753
        %v2776 = vmul.f32 %v1216, %v2761
        %v2777 = vmul.f32 %v1212, %v2754
        %v2778 = vmul.f32 %v1216, %v2762
        %2779 = vset.pattern.permute.xlu0 6
        %2780 = vperm.xlu0 %2779, %v368
        %v2781 = vpop.permute.xlu0 %2780
        %2783 = vset.pattern.permute.xlu0 6
        %2784 = vperm.xlu0 %2783, %v369
        %v2785 = vpop.permute.xlu0 %2784
        %2787 = vset.pattern.permute.xlu0 6
        %2788 = vperm.xlu0 %2787, %v370
        %v2789 = vpop.permute.xlu0 %2788
        %2791 = vset.pattern.permute.xlu0 6
        %2792 = vperm.xlu0 %2791, %v371
        %v2793 = vpop.permute.xlu0 %2792
        %2795 = vset.pattern.permute.xlu0 6
        %2796 = vperm.xlu0 %2795, %v372
        %v2797 = vpop.permute.xlu0 %2796
        %2799 = vset.pattern.permute.xlu0 6
        %2800 = vperm.xlu0 %2799, %v373
        %v2801 = vpop.permute.xlu0 %2800
        %2803 = vset.pattern.permute.xlu0 6
        %2804 = vperm.xlu0 %2803, %v374
        %v2805 = vpop.permute.xlu0 %2804
        %2807 = vset.pattern.permute.xlu0 6
        %2808 = vperm.xlu0 %2807, %v375
        %v2809 = vpop.permute.xlu0 %2808
        %v2811 = vmul.f32 %v2781, %v2763
        %v2812 = vmul.f32 %v2781, %v2764
        %v2813 = vmul.f32 %v2785, %v2765
        %v2814 = vmul.f32 %v2785, %v2766
        %v2815 = vmul.f32 %v2789, %v2767
        %v2816 = vmul.f32 %v2789, %v2768
        %v2817 = vmul.f32 %v2793, %v2769
        %v2818 = vmul.f32 %v2793, %v2770
        %v2819 = vmul.f32 %v2797, %v2771
        %v2820 = vmul.f32 %v2797, %v2772
        %v2821 = vmul.f32 %v2801, %v2773
        %v2822 = vmul.f32 %v2801, %v2774
        %v2823 = vmul.f32 %v2805, %v2775
        %v2824 = vmul.f32 %v2805, %v2776
        %v2825 = vmul.f32 %v2809, %v2777
        %v2826 = vmul.f32 %v2809, %v2778
        %v2827 = vadd.f32 %v2699, %v2811
        %v2828 = vadd.f32 %v2700, %v2812
        %v2829 = vadd.f32 %v2701, %v2813
        %v2830 = vadd.f32 %v2702, %v2814
        %v2831 = vadd.f32 %v2703, %v2815
        %v2832 = vadd.f32 %v2704, %v2816
        %v2833 = vadd.f32 %v2705, %v2817
        %v2834 = vadd.f32 %v2706, %v2818
        %v2835 = vadd.f32 %v2707, %v2819
        %v2836 = vadd.f32 %v2708, %v2820
        %v2837 = vadd.f32 %v2709, %v2821
        %v2838 = vadd.f32 %v2710, %v2822
        %v2839 = vadd.f32 %v2711, %v2823
        %v2840 = vadd.f32 %v2712, %v2824
        %v2841 = vadd.f32 %v2713, %v2825
        %v2842 = vadd.f32 %v2714, %v2826
        %2843 = vrot.lane.b32.xlu0 %v1973, 112
        %v2844 = vpop.permute.xlu0 %2843
        %2845 = vrot.lane.b32.xlu0 %v1979, 112
        %v2846 = vpop.permute.xlu0 %2845
        %2847 = vrot.lane.b32.xlu0 %v1985, 112
        %v2848 = vpop.permute.xlu0 %2847
        %2849 = vrot.lane.b32.xlu0 %v1991, 112
        %v2850 = vpop.permute.xlu0 %2849
        %2851 = vrot.lane.b32.xlu0 %v1997, 112
        %v2852 = vpop.permute.xlu0 %2851
        %2853 = vrot.lane.b32.xlu0 %v2003, 112
        %v2854 = vpop.permute.xlu0 %2853
        %2855 = vrot.lane.b32.xlu0 %v2009, 112
        %v2856 = vpop.permute.xlu0 %2855
        %2857 = vrot.lane.b32.xlu0 %v2015, 112
        %v2858 = vpop.permute.xlu0 %2857
        %2859 = vrot.lane.b32.xlu0 %v1975, 112
        %v2860 = vpop.permute.xlu0 %2859
        %2861 = vrot.lane.b32.xlu0 %v1981, 112
        %v2862 = vpop.permute.xlu0 %2861
        %2863 = vrot.lane.b32.xlu0 %v1987, 112
        %v2864 = vpop.permute.xlu0 %2863
        %2865 = vrot.lane.b32.xlu0 %v1993, 112
        %v2866 = vpop.permute.xlu0 %2865
        %2867 = vrot.lane.b32.xlu0 %v1999, 112
        %v2868 = vpop.permute.xlu0 %2867
        %2869 = vrot.lane.b32.xlu0 %v2005, 112
        %v2870 = vpop.permute.xlu0 %2869
        %2871 = vrot.lane.b32.xlu0 %v2011, 112
        %v2872 = vpop.permute.xlu0 %2871
        %2873 = vrot.lane.b32.xlu0 %v2017, 112
        %v2874 = vpop.permute.xlu0 %2873
        %v2875 = vsel %vm1303, %v2844, %v2860
        %v2876 = vsel %vm1303, %v2846, %v2862
        %v2877 = vsel %vm1303, %v2848, %v2864
        %v2878 = vsel %vm1303, %v2850, %v2866
        %v2879 = vsel %vm1303, %v2852, %v2868
        %v2880 = vsel %vm1303, %v2854, %v2870
        %v2881 = vsel %vm1303, %v2856, %v2872
        %v2882 = vsel %vm1303, %v2858, %v2874
        %v2883 = vsel %vm1303, %v2860, %v2844
        %v2884 = vsel %vm1303, %v2862, %v2846
        %v2885 = vsel %vm1303, %v2864, %v2848
        %v2886 = vsel %vm1303, %v2866, %v2850
        %v2887 = vsel %vm1303, %v2868, %v2852
        %v2888 = vsel %vm1303, %v2870, %v2854
        %v2889 = vsel %vm1303, %v2872, %v2856
        %v2890 = vsel %vm1303, %v2874, %v2858
        %v2891 = vmul.f32 %v1320, %v2875
        %v2892 = vmul.f32 %v1324, %v2883
        %v2893 = vmul.f32 %v1320, %v2876
        %v2894 = vmul.f32 %v1324, %v2884
        %v2895 = vmul.f32 %v1320, %v2877
        %v2896 = vmul.f32 %v1324, %v2885
        %v2897 = vmul.f32 %v1320, %v2878
        %v2898 = vmul.f32 %v1324, %v2886
        %v2899 = vmul.f32 %v1320, %v2879
        %v2900 = vmul.f32 %v1324, %v2887
        %v2901 = vmul.f32 %v1320, %v2880
        %v2902 = vmul.f32 %v1324, %v2888
        %v2903 = vmul.f32 %v1320, %v2881
        %v2904 = vmul.f32 %v1324, %v2889
        %v2905 = vmul.f32 %v1320, %v2882
        %v2906 = vmul.f32 %v1324, %v2890
        %2907 = vset.pattern.permute.xlu0 7
        %2908 = vperm.xlu0 %2907, %v368
        %v2909 = vpop.permute.xlu0 %2908
        %2911 = vset.pattern.permute.xlu0 7
        %2912 = vperm.xlu0 %2911, %v369
        %v2913 = vpop.permute.xlu0 %2912
        %2915 = vset.pattern.permute.xlu0 7
        %2916 = vperm.xlu0 %2915, %v370
        %v2917 = vpop.permute.xlu0 %2916
        %2919 = vset.pattern.permute.xlu0 7
        %2920 = vperm.xlu0 %2919, %v371
        %v2921 = vpop.permute.xlu0 %2920
        %2923 = vset.pattern.permute.xlu0 7
        %2924 = vperm.xlu0 %2923, %v372
        %v2925 = vpop.permute.xlu0 %2924
        %2927 = vset.pattern.permute.xlu0 7
        %2928 = vperm.xlu0 %2927, %v373
        %v2929 = vpop.permute.xlu0 %2928
        %2931 = vset.pattern.permute.xlu0 7
        %2932 = vperm.xlu0 %2931, %v374
        %v2933 = vpop.permute.xlu0 %2932
        %2935 = vset.pattern.permute.xlu0 7
        %2936 = vperm.xlu0 %2935, %v375
        %v2937 = vpop.permute.xlu0 %2936
        %v2939 = vmul.f32 %v2909, %v2891
        %v2940 = vmul.f32 %v2909, %v2892
        %v2941 = vmul.f32 %v2913, %v2893
        %v2942 = vmul.f32 %v2913, %v2894
        %v2943 = vmul.f32 %v2917, %v2895
        %v2944 = vmul.f32 %v2917, %v2896
        %v2945 = vmul.f32 %v2921, %v2897
        %v2946 = vmul.f32 %v2921, %v2898
        %v2947 = vmul.f32 %v2925, %v2899
        %v2948 = vmul.f32 %v2925, %v2900
        %v2949 = vmul.f32 %v2929, %v2901
        %v2950 = vmul.f32 %v2929, %v2902
        %v2951 = vmul.f32 %v2933, %v2903
        %v2952 = vmul.f32 %v2933, %v2904
        %v2953 = vmul.f32 %v2937, %v2905
        %v2954 = vmul.f32 %v2937, %v2906
        %v2955 = vadd.f32 %v2827, %v2939
        %v2956 = vadd.f32 %v2828, %v2940
        %v2957 = vadd.f32 %v2829, %v2941
        %v2958 = vadd.f32 %v2830, %v2942
        %v2959 = vadd.f32 %v2831, %v2943
        %v2960 = vadd.f32 %v2832, %v2944
        %v2961 = vadd.f32 %v2833, %v2945
        %v2962 = vadd.f32 %v2834, %v2946
        %v2963 = vadd.f32 %v2835, %v2947
        %v2964 = vadd.f32 %v2836, %v2948
        %v2965 = vadd.f32 %v2837, %v2949
        %v2966 = vadd.f32 %v2838, %v2950
        %v2967 = vadd.f32 %v2839, %v2951
        %v2968 = vadd.f32 %v2840, %v2952
        %v2969 = vadd.f32 %v2841, %v2953
        %v2970 = vadd.f32 %v2842, %v2954
        %2971 = vrot.lane.b32.xlu0 %v1973, 111
        %v2972 = vpop.permute.xlu0 %2971
        %2973 = vrot.lane.b32.xlu0 %v1979, 111
        %v2974 = vpop.permute.xlu0 %2973
        %2975 = vrot.lane.b32.xlu0 %v1985, 111
        %v2976 = vpop.permute.xlu0 %2975
        %2977 = vrot.lane.b32.xlu0 %v1991, 111
        %v2978 = vpop.permute.xlu0 %2977
        %2979 = vrot.lane.b32.xlu0 %v1997, 111
        %v2980 = vpop.permute.xlu0 %2979
        %2981 = vrot.lane.b32.xlu0 %v2003, 111
        %v2982 = vpop.permute.xlu0 %2981
        %2983 = vrot.lane.b32.xlu0 %v2009, 111
        %v2984 = vpop.permute.xlu0 %2983
        %2985 = vrot.lane.b32.xlu0 %v2015, 111
        %v2986 = vpop.permute.xlu0 %2985
        %2987 = vrot.lane.b32.xlu0 %v1975, 111
        %v2988 = vpop.permute.xlu0 %2987
        %2989 = vrot.lane.b32.xlu0 %v1981, 111
        %v2990 = vpop.permute.xlu0 %2989
        %2991 = vrot.lane.b32.xlu0 %v1987, 111
        %v2992 = vpop.permute.xlu0 %2991
        %2993 = vrot.lane.b32.xlu0 %v1993, 111
        %v2994 = vpop.permute.xlu0 %2993
        %2995 = vrot.lane.b32.xlu0 %v1999, 111
        %v2996 = vpop.permute.xlu0 %2995
        %2997 = vrot.lane.b32.xlu0 %v2005, 111
        %v2998 = vpop.permute.xlu0 %2997
        %2999 = vrot.lane.b32.xlu0 %v2011, 111
        %v3000 = vpop.permute.xlu0 %2999
        %3001 = vrot.lane.b32.xlu0 %v2017, 111
        %v3002 = vpop.permute.xlu0 %3001
        %v3003 = vsel %vm1411, %v2972, %v2988
        %v3004 = vsel %vm1411, %v2974, %v2990
        %v3005 = vsel %vm1411, %v2976, %v2992
        %v3006 = vsel %vm1411, %v2978, %v2994
        %v3007 = vsel %vm1411, %v2980, %v2996
        %v3008 = vsel %vm1411, %v2982, %v2998
        %v3009 = vsel %vm1411, %v2984, %v3000
        %v3010 = vsel %vm1411, %v2986, %v3002
        %v3011 = vsel %vm1411, %v2988, %v2972
        %v3012 = vsel %vm1411, %v2990, %v2974
        %v3013 = vsel %vm1411, %v2992, %v2976
        %v3014 = vsel %vm1411, %v2994, %v2978
        %v3015 = vsel %vm1411, %v2996, %v2980
        %v3016 = vsel %vm1411, %v2998, %v2982
        %v3017 = vsel %vm1411, %v3000, %v2984
        %v3018 = vsel %vm1411, %v3002, %v2986
        %v3019 = vmul.f32 %v1428, %v3003
        %v3020 = vmul.f32 %v1432, %v3011
        %v3021 = vmul.f32 %v1428, %v3004
        %v3022 = vmul.f32 %v1432, %v3012
        %v3023 = vmul.f32 %v1428, %v3005
        %v3024 = vmul.f32 %v1432, %v3013
        %v3025 = vmul.f32 %v1428, %v3006
        %v3026 = vmul.f32 %v1432, %v3014
        %v3027 = vmul.f32 %v1428, %v3007
        %v3028 = vmul.f32 %v1432, %v3015
        %v3029 = vmul.f32 %v1428, %v3008
        %v3030 = vmul.f32 %v1432, %v3016
        %v3031 = vmul.f32 %v1428, %v3009
        %v3032 = vmul.f32 %v1432, %v3017
        %v3033 = vmul.f32 %v1428, %v3010
        %v3034 = vmul.f32 %v1432, %v3018
        %3035 = vset.pattern.permute.xlu0 8
        %3036 = vperm.xlu0 %3035, %v368
        %v3037 = vpop.permute.xlu0 %3036
        %3039 = vset.pattern.permute.xlu0 8
        %3040 = vperm.xlu0 %3039, %v369
        %v3041 = vpop.permute.xlu0 %3040
        %3043 = vset.pattern.permute.xlu0 8
        %3044 = vperm.xlu0 %3043, %v370
        %v3045 = vpop.permute.xlu0 %3044
        %3047 = vset.pattern.permute.xlu0 8
        %3048 = vperm.xlu0 %3047, %v371
        %v3049 = vpop.permute.xlu0 %3048
        %3051 = vset.pattern.permute.xlu0 8
        %3052 = vperm.xlu0 %3051, %v372
        %v3053 = vpop.permute.xlu0 %3052
        %3055 = vset.pattern.permute.xlu0 8
        %3056 = vperm.xlu0 %3055, %v373
        %v3057 = vpop.permute.xlu0 %3056
        %3059 = vset.pattern.permute.xlu0 8
        %3060 = vperm.xlu0 %3059, %v374
        %v3061 = vpop.permute.xlu0 %3060
        %3063 = vset.pattern.permute.xlu0 8
        %3064 = vperm.xlu0 %3063, %v375
        %v3065 = vpop.permute.xlu0 %3064
        %v3067 = vmul.f32 %v3037, %v3019
        %v3068 = vmul.f32 %v3037, %v3020
        %v3069 = vmul.f32 %v3041, %v3021
        %v3070 = vmul.f32 %v3041, %v3022
        %v3071 = vmul.f32 %v3045, %v3023
        %v3072 = vmul.f32 %v3045, %v3024
        %v3073 = vmul.f32 %v3049, %v3025
        %v3074 = vmul.f32 %v3049, %v3026
        %v3075 = vmul.f32 %v3053, %v3027
        %v3076 = vmul.f32 %v3053, %v3028
        %v3077 = vmul.f32 %v3057, %v3029
        %v3078 = vmul.f32 %v3057, %v3030
        %v3079 = vmul.f32 %v3061, %v3031
        %v3080 = vmul.f32 %v3061, %v3032
        %v3081 = vmul.f32 %v3065, %v3033
        %v3082 = vmul.f32 %v3065, %v3034
        %v3083 = vadd.f32 %v2955, %v3067
        %v3084 = vadd.f32 %v2956, %v3068
        %v3085 = vadd.f32 %v2957, %v3069
        %v3086 = vadd.f32 %v2958, %v3070
        %v3087 = vadd.f32 %v2959, %v3071
        %v3088 = vadd.f32 %v2960, %v3072
        %v3089 = vadd.f32 %v2961, %v3073
        %v3090 = vadd.f32 %v2962, %v3074
        %v3091 = vadd.f32 %v2963, %v3075
        %v3092 = vadd.f32 %v2964, %v3076
        %v3093 = vadd.f32 %v2965, %v3077
        %v3094 = vadd.f32 %v2966, %v3078
        %v3095 = vadd.f32 %v2967, %v3079
        %v3096 = vadd.f32 %v2968, %v3080
        %v3097 = vadd.f32 %v2969, %v3081
        %v3098 = vadd.f32 %v2970, %v3082
        %v3099 = vmul.f32 %v3083, %v3083
        %v3100 = vmul.f32 %v3084, %v3084
        %v3101 = vmul.f32 %v3085, %v3085
        %v3102 = vmul.f32 %v3086, %v3086
        %v3103 = vmul.f32 %v3087, %v3087
        %v3104 = vmul.f32 %v3088, %v3088
        %v3105 = vmul.f32 %v3089, %v3089
        %v3106 = vmul.f32 %v3090, %v3090
        %v3107 = vmul.f32 %v3083, %v3099
        %v3108 = vmul.f32 %v3084, %v3100
        %v3109 = vmul.f32 %v3085, %v3101
        %v3110 = vmul.f32 %v3086, %v3102
        %v3111 = vmul.f32 %v3087, %v3103
        %v3112 = vmul.f32 %v3088, %v3104
        %v3113 = vmul.f32 %v3089, %v3105
        %v3114 = vmul.f32 %v3090, %v3106
        %v3115 = vmul.f32 %v3107, 0.044715
        %v3116 = vmul.f32 %v3108, 0.044715
        %v3117 = vmul.f32 %v3109, 0.044715
        %v3118 = vmul.f32 %v3110, 0.044715
        %v3119 = vmul.f32 %v3111, 0.044715
        %v3120 = vmul.f32 %v3112, 0.044715
        %v3121 = vmul.f32 %v3113, 0.044715
        %v3122 = vmul.f32 %v3114, 0.044715
        %v3123 = vadd.f32 %v3083, %v3115
        %v3124 = vadd.f32 %v3084, %v3116
        %v3125 = vadd.f32 %v3085, %v3117
        %v3126 = vadd.f32 %v3086, %v3118
        %v3127 = vadd.f32 %v3087, %v3119
        %v3128 = vadd.f32 %v3088, %v3120
        %v3129 = vadd.f32 %v3089, %v3121
        %v3130 = vadd.f32 %v3090, %v3122
        %v3131 = vmul.f32 %v3123, 0.7978846
        %v3132 = vmul.f32 %v3124, 0.7978846
        %v3133 = vmul.f32 %v3125, 0.7978846
        %v3134 = vmul.f32 %v3126, 0.7978846
        %v3135 = vmul.f32 %v3127, 0.7978846
        %v3136 = vmul.f32 %v3128, 0.7978846
        %v3137 = vmul.f32 %v3129, 0.7978846
        %v3138 = vmul.f32 %v3130, 0.7978846
        %v3139 = vtanh.pop %v3131
        %v3140 = vtanh.pop %v3132
        %v3141 = vtanh.pop %v3133
        %v3142 = vtanh.pop %v3134
        %v3143 = vtanh.pop %v3135
        %v3144 = vtanh.pop %v3136
        %v3145 = vtanh.pop %v3137
        %v3146 = vtanh.pop %v3138
        %v3147 = vadd.f32 %v3139, 1.0
        %v3148 = vadd.f32 %v3140, 1.0
        %v3149 = vadd.f32 %v3141, 1.0
        %v3150 = vadd.f32 %v3142, 1.0
        %v3151 = vadd.f32 %v3143, 1.0
        %v3152 = vadd.f32 %v3144, 1.0
        %v3153 = vadd.f32 %v3145, 1.0
        %v3154 = vadd.f32 %v3146, 1.0
        %v3155 = vmul.f32 %v3147, 0.5
        %v3156 = vmul.f32 %v3148, 0.5
        %v3157 = vmul.f32 %v3149, 0.5
        %v3158 = vmul.f32 %v3150, 0.5
        %v3159 = vmul.f32 %v3151, 0.5
        %v3160 = vmul.f32 %v3152, 0.5
        %v3161 = vmul.f32 %v3153, 0.5
        %v3162 = vmul.f32 %v3154, 0.5
        %v3163 = vmul.f32 %v3083, %v3155
        %v3164 = vmul.f32 %v3084, %v3156
        %v3165 = vmul.f32 %v3085, %v3157
        %v3166 = vmul.f32 %v3086, %v3158
        %v3167 = vmul.f32 %v3087, %v3159
        %v3168 = vmul.f32 %v3088, %v3160
        %v3169 = vmul.f32 %v3089, %v3161
        %v3170 = vmul.f32 %v3090, %v3162
        %v3171 = vmul.f32 %v3163, %v3091
        %v3172 = vmul.f32 %v3164, %v3092
        %v3173 = vmul.f32 %v3165, %v3093
        %v3174 = vmul.f32 %v3166, %v3094
        %v3175 = vmul.f32 %v3167, %v3095
        %v3176 = vmul.f32 %v3168, %v3096
        %v3177 = vmul.f32 %v3169, %v3097
        %v3178 = vmul.f32 %v3170, %v3098
        %vm3179 = vcmask 261120
        %v3181 = vsel %vm3179, %v386, 0
        %v3184 = vsel %vm3179, %v387, 0
        %3186 = vmatprep.subr.mxu0 %v3172
        %3187 = vmatpush1.msra.mxu0 %v3171
        %3188 = vmatprep.subr.mxu0 %v3174
        %3189 = vmatpush1.msra.mxu0 %v3173
        %3190 = vmatprep.subr.mxu0 %v3176
        %3191 = vmatpush1.msra.mxu0 %v3175
        %3192 = vmatprep.subr.mxu0 %v3178
        %3193 = vmatpush1.msra.mxu0 %v3177
        %3194 = vmatprep.subr.mxu0 0.0
        %3195 = vmatpush1.msra.mxu0 0.0
        %3196 = vmatprep.subr.mxu0 0.0
        %3197 = vmatpush1.msra.mxu0 0.0
        %3198 = vmatprep.subr.mxu0 0.0
        %3199 = vmatpush1.msra.mxu0 0.0
        %3200 = vmatprep.subr.mxu0 0.0
        %3201 = vmatpush1.msra.mxu0 0.0
        %3202 = vmatprep.subr.mxu0 0.0
        %3203 = vmatpush1.msra.mxu0 0.0
        %3204 = vmatprep.subr.mxu0 0.0
        %3205 = vmatpush1.msra.mxu0 0.0
        %3206 = vmatprep.subr.mxu0 0.0
        %3207 = vmatpush1.msra.mxu0 0.0
        %3208 = vmatprep.subr.mxu0 0.0
        %3209 = vmatpush1.msra.mxu0 0.0
        %3210 = vmatprep.subr.mxu0 0.0
        %3211 = vmatpush1.msra.mxu0 0.0
        %3212 = vmatprep.subr.mxu0 0.0
        %3213 = vmatpush1.msra.mxu0 0.0
        %3214 = vmatprep.subr.mxu0 0.0
        %3215 = vmatpush1.msra.mxu0 0.0
        %3216 = vmatprep.subr.mxu0 0.0
        %3217 = vmatpush1.msra.mxu0 0.0
        %3218 = vmatprep.subr.mxu0 0.0
        %3219 = vmatpush1.msra.mxu0 0.0
        %3220 = vmatprep.subr.mxu0 0.0
        %3221 = vmatpush1.msra.mxu0 0.0
        %3222 = vmatprep.subr.mxu0 0.0
        %3223 = vmatpush1.msra.mxu0 0.0
        %3224 = vmatprep.subr.mxu0 0.0
        %3225 = vmatpush1.msra.mxu0 0.0
        %3226 = vmatprep.subr.mxu0 0.0
        %3227 = vmatpush1.msra.mxu0 0.0
        %3228 = vmatprep.subr.mxu0 0.0
        %3229 = vmatpush1.msra.mxu0 0.0
        %3230 = vmatprep.subr.mxu0 0.0
        %3231 = vmatpush1.msra.mxu0 0.0
        %3232 = vmatprep.subr.mxu0 0.0
        %3233 = vmatpush1.msra.mxu0 0.0
        %3234 = vmatprep.subr.mxu0 0.0
        %3235 = vmatpush1.msra.mxu0 0.0
        %3236 = vmatprep.subr.mxu0 0.0
        %3237 = vmatpush1.msra.mxu0 0.0
        %3238 = vmatprep.subr.mxu0 0.0
        %3239 = vmatpush1.msra.mxu0 0.0
        %3240 = vmatprep.subr.mxu0 0.0
        %3241 = vmatpush1.msra.mxu0 0.0
        %3242 = vmatprep.subr.mxu0 0.0
        %3243 = vmatpush1.msra.mxu0 0.0
        %3244 = vmatprep.subr.mxu0 0.0
        %3245 = vmatpush1.msra.mxu0 0.0
        %3246 = vmatprep.subr.mxu0 0.0
        %3247 = vmatpush1.msra.mxu0 0.0
        %3248 = vmatprep.subr.mxu0 0.0
        %3249 = vmatpush1.msra.mxu0 0.0
        %3250 = vmatprep.mubr.f32.mxu0 0.0
        %3251 = vmatmul.mubr.f32.gmra.mrb[0].mxu0 %v3181
        %v3252 = vpop.f32.mrb[0].mxu0
        %v3253 = vadd.f32 0.0, %v3252
        %v3254 = vpop.f32.mrb[0].mxu0
        %v3255 = vadd.f32 0.0, %v3254
        %3256 = vmatprep.mubr.f32.mxu0 0.0
        %3257 = vmatmul.mubr.f32.gmra.mrb[0].mxu0 %v3184
        %v3258 = vpop.f32.mrb[0].mxu0
        %v3259 = vadd.f32 0.0, %v3258
        %v3260 = vpop.f32.mrb[0].mxu0
        %v3261 = vadd.f32 0.0, %v3260
        %3262 = vdwg.mxu0
        %v3263 = vadd.f32 %v1806, %v3253
        %v3264 = vadd.f32 %v1807, %v3255
        %v3265 = vadd.f32 %v1808, %v3259
        %v3266 = vadd.f32 %v1809, %v3261
        %3267 = vst [vmem:[%s328] sm:$0xff] %v3263
        %3268 = vst [vmem:[%s328 + $0x8] sm:$0xff] %v3264
        %3269 = vst [vmem:[%s328 + $0x10] sm:$0xff] %v3265
        %3270 = vst [vmem:[%s328 + $0x18] sm:$0xff] %v3266
        %s3271 = scalar_lea.vmem %s334, 32
        %v3272 = vld [vmem:[%s3271] sm:$0xff]
        %v3273 = vld [vmem:[%s3271 + $0x8] sm:$0xff]
        %v3274 = vld [vmem:[%s3271 + $0x10] sm:$0xff]
        %v3275 = vld [vmem:[%s3271 + $0x18] sm:$0xff]
        %v3276 = vadd.f32 %v3272, %v3274
        %v3277 = vrot.slane %v3276, 4
        %v3278 = vadd.f32 %v3276, %v3277
        %v3279 = vrot.slane %v3278, 2
        %v3280 = vadd.f32 %v3278, %v3279
        %v3281 = vrot.slane %v3280, 1
        %v3282 = vadd.f32 %v3280, %v3281
        %v3283 = vadd.f32 %v3273, %v3275
        %v3284 = vrot.slane %v3283, 4
        %v3285 = vadd.f32 %v3283, %v3284
        %v3286 = vrot.slane %v3285, 2
        %v3287 = vadd.f32 %v3285, %v3286
        %v3288 = vrot.slane %v3287, 1
        %v3289 = vadd.f32 %v3287, %v3288
        %v3290 = vmul.f32 %v3282, %v406
        %v3291 = vmul.f32 %v3289, %v406
        %v3292 = vsub.f32 %v3272, %v3290
        %v3293 = vsub.f32 %v3273, %v3291
        %v3294 = vsub.f32 %v3274, %v3290
        %v3295 = vsub.f32 %v3275, %v3291
        %v3296 = vmul.f32 %v3292, %v3292
        %v3297 = vmul.f32 %v3293, %v3293
        %v3298 = vmul.f32 %v3294, %v3294
        %v3299 = vmul.f32 %v3295, %v3295
        %v3300 = vadd.f32 %v3296, %v3298
        %v3301 = vrot.slane %v3300, 4
        %v3302 = vadd.f32 %v3300, %v3301
        %v3303 = vrot.slane %v3302, 2
        %v3304 = vadd.f32 %v3302, %v3303
        %v3305 = vrot.slane %v3304, 1
        %v3306 = vadd.f32 %v3304, %v3305
        %v3307 = vadd.f32 %v3297, %v3299
        %v3308 = vrot.slane %v3307, 4
        %v3309 = vadd.f32 %v3307, %v3308
        %v3310 = vrot.slane %v3309, 2
        %v3311 = vadd.f32 %v3309, %v3310
        %v3312 = vrot.slane %v3311, 1
        %v3313 = vadd.f32 %v3311, %v3312
        %v3314 = vmul.f32 %v3306, %v406
        %v3315 = vmul.f32 %v3313, %v406
        %v3316 = vadd.f32 %v3314, 1e-05
        %v3317 = vadd.f32 %v3315, 1e-05
        %v3318 = vrsqrt.pop %v3316
        %v3319 = vrsqrt.pop %v3317
        %v3320 = vmul.f32 %v3292, %v3318
        %v3321 = vmul.f32 %v3293, %v3319
        %v3322 = vmul.f32 %v3294, %v3318
        %v3323 = vmul.f32 %v3295, %v3319
        %v3324 = vmul.f32 %v3320, %v444
        %v3325 = vmul.f32 %v3321, %v444
        %v3326 = vmul.f32 %v3322, %v449
        %v3327 = vmul.f32 %v3323, %v449
        %v3328 = vadd.f32 %v3324, %v457
        %v3329 = vadd.f32 %v3325, %v457
        %v3330 = vadd.f32 %v3326, %v461
        %v3331 = vadd.f32 %v3327, %v461
        %3332 = vmatprep.subr.mxu0 %v3329
        %3333 = vmatpush1.msra.mxu0 %v3328
        %3334 = vmatprep.subr.mxu0 %v3331
        %3335 = vmatpush1.msra.mxu0 %v3330
        %3336 = vmatprep.subr.mxu0 0.0
        %3337 = vmatpush1.msra.mxu0 0.0
        %3338 = vmatprep.subr.mxu0 0.0
        %3339 = vmatpush1.msra.mxu0 0.0
        %3340 = vmatprep.subr.mxu0 0.0
        %3341 = vmatpush1.msra.mxu0 0.0
        %3342 = vmatprep.subr.mxu0 0.0
        %3343 = vmatpush1.msra.mxu0 0.0
        %3344 = vmatprep.subr.mxu0 0.0
        %3345 = vmatpush1.msra.mxu0 0.0
        %3346 = vmatprep.subr.mxu0 0.0
        %3347 = vmatpush1.msra.mxu0 0.0
        %3348 = vmatprep.subr.mxu0 0.0
        %3349 = vmatpush1.msra.mxu0 0.0
        %3350 = vmatprep.subr.mxu0 0.0
        %3351 = vmatpush1.msra.mxu0 0.0
        %3352 = vmatprep.subr.mxu0 0.0
        %3353 = vmatpush1.msra.mxu0 0.0
        %3354 = vmatprep.subr.mxu0 0.0
        %3355 = vmatpush1.msra.mxu0 0.0
        %3356 = vmatprep.subr.mxu0 0.0
        %3357 = vmatpush1.msra.mxu0 0.0
        %3358 = vmatprep.subr.mxu0 0.0
        %3359 = vmatpush1.msra.mxu0 0.0
        %3360 = vmatprep.subr.mxu0 0.0
        %3361 = vmatpush1.msra.mxu0 0.0
        %3362 = vmatprep.subr.mxu0 0.0
        %3363 = vmatpush1.msra.mxu0 0.0
        %3364 = vmatprep.subr.mxu0 0.0
        %3365 = vmatpush1.msra.mxu0 0.0
        %3366 = vmatprep.subr.mxu0 0.0
        %3367 = vmatpush1.msra.mxu0 0.0
        %3368 = vmatprep.subr.mxu0 0.0
        %3369 = vmatpush1.msra.mxu0 0.0
        %3370 = vmatprep.subr.mxu0 0.0
        %3371 = vmatpush1.msra.mxu0 0.0
        %3372 = vmatprep.subr.mxu0 0.0
        %3373 = vmatpush1.msra.mxu0 0.0
        %3374 = vmatprep.subr.mxu0 0.0
        %3375 = vmatpush1.msra.mxu0 0.0
        %3376 = vmatprep.subr.mxu0 0.0
        %3377 = vmatpush1.msra.mxu0 0.0
        %3378 = vmatprep.subr.mxu0 0.0
        %3379 = vmatpush1.msra.mxu0 0.0
        %3380 = vmatprep.subr.mxu0 0.0
        %3381 = vmatpush1.msra.mxu0 0.0
        %3382 = vmatprep.subr.mxu0 0.0
        %3383 = vmatpush1.msra.mxu0 0.0
        %3384 = vmatprep.subr.mxu0 0.0
        %3385 = vmatpush1.msra.mxu0 0.0
        %3386 = vmatprep.subr.mxu0 0.0
        %3387 = vmatpush1.msra.mxu0 0.0
        %3388 = vmatprep.subr.mxu0 0.0
        %3389 = vmatpush1.msra.mxu0 0.0
        %3390 = vmatprep.subr.mxu0 0.0
        %3391 = vmatpush1.msra.mxu0 0.0
        %3392 = vmatprep.subr.mxu0 0.0
        %3393 = vmatpush1.msra.mxu0 0.0
        %3394 = vmatprep.subr.mxu0 0.0
        %3395 = vmatpush1.msra.mxu0 0.0
        %3396 = vmatprep.mubr.f32.mxu0 0.0
        %3397 = vmatmul.mubr.f32.gmra.mrb[0].mxu0 %v469
        %v3398 = vpop.f32.mrb[0].mxu0
        %v3399 = vadd.f32 0.0, %v3398
        %v3400 = vpop.f32.mrb[0].mxu0
        %v3401 = vadd.f32 0.0, %v3400
        %3402 = vmatprep.mubr.f32.mxu0 0.0
        %3403 = vmatmul.mubr.f32.gmra.mrb[0].mxu0 %v472
        %v3404 = vpop.f32.mrb[0].mxu0
        %v3405 = vadd.f32 0.0, %v3404
        %v3406 = vpop.f32.mrb[0].mxu0
        %v3407 = vadd.f32 0.0, %v3406
        %3408 = vmatprep.mubr.f32.mxu0 0.0
        %3409 = vmatmul.mubr.f32.gmra.mrb[0].mxu0 %v475
        %v3410 = vpop.f32.mrb[0].mxu0
        %v3411 = vadd.f32 0.0, %v3410
        %v3412 = vpop.f32.mrb[0].mxu0
        %v3413 = vadd.f32 0.0, %v3412
        %3414 = vmatprep.mubr.f32.mxu0 0.0
        %3415 = vmatmul.mubr.f32.gmra.mrb[0].mxu0 %v478
        %v3416 = vpop.f32.mrb[0].mxu0
        %v3417 = vadd.f32 0.0, %v3416
        %v3418 = vpop.f32.mrb[0].mxu0
        %v3419 = vadd.f32 0.0, %v3418
        %3420 = vmatprep.mubr.f32.mxu0 0.0
        %3421 = vmatmul.mubr.f32.gmra.mrb[0].mxu0 %v481
        %v3422 = vpop.f32.mrb[0].mxu0
        %v3423 = vadd.f32 0.0, %v3422
        %v3424 = vpop.f32.mrb[0].mxu0
        %v3425 = vadd.f32 0.0, %v3424
        %3426 = vmatprep.mubr.f32.mxu0 0.0
        %3427 = vmatmul.mubr.f32.gmra.mrb[0].mxu0 %v484
        %v3428 = vpop.f32.mrb[0].mxu0
        %v3429 = vadd.f32 0.0, %v3428
        %v3430 = vpop.f32.mrb[0].mxu0
        %v3431 = vadd.f32 0.0, %v3430
        %3432 = vdwg.mxu0
        %v3433 = vmul.f32 %v590, %v3399
        %v3434 = vmul.f32 %v590, %v3401
        %v3435 = vmul.f32 %v595, %v3405
        %v3436 = vmul.f32 %v595, %v3407
        %v3437 = vmul.f32 %v600, %v3411
        %v3438 = vmul.f32 %v600, %v3413
        %v3439 = vmul.f32 %v605, %v3417
        %v3440 = vmul.f32 %v605, %v3419
        %v3441 = vmul.f32 %v610, %v3423
        %v3442 = vmul.f32 %v610, %v3425
        %v3443 = vmul.f32 %v615, %v3429
        %v3444 = vmul.f32 %v615, %v3431
        %3445 = vrot.lane.b32.xlu0 %v3399, 17
        %v3446 = vpop.permute.xlu0 %3445
        %3447 = vrot.lane.b32.xlu0 %v3405, 17
        %v3448 = vpop.permute.xlu0 %3447
        %3449 = vrot.lane.b32.xlu0 %v3411, 17
        %v3450 = vpop.permute.xlu0 %3449
        %3451 = vrot.lane.b32.xlu0 %v3417, 17
        %v3452 = vpop.permute.xlu0 %3451
        %3453 = vrot.lane.b32.xlu0 %v3423, 17
        %v3454 = vpop.permute.xlu0 %3453
        %3455 = vrot.lane.b32.xlu0 %v3429, 17
        %v3456 = vpop.permute.xlu0 %3455
        %3457 = vrot.lane.b32.xlu0 %v3401, 17
        %v3458 = vpop.permute.xlu0 %3457
        %3459 = vrot.lane.b32.xlu0 %v3407, 17
        %v3460 = vpop.permute.xlu0 %3459
        %3461 = vrot.lane.b32.xlu0 %v3413, 17
        %v3462 = vpop.permute.xlu0 %3461
        %3463 = vrot.lane.b32.xlu0 %v3419, 17
        %v3464 = vpop.permute.xlu0 %3463
        %3465 = vrot.lane.b32.xlu0 %v3425, 17
        %v3466 = vpop.permute.xlu0 %3465
        %3467 = vrot.lane.b32.xlu0 %v3431, 17
        %v3468 = vpop.permute.xlu0 %3467
        %v3469 = vsel %vm655, %v3446, %v3458
        %v3470 = vsel %vm655, %v3448, %v3460
        %v3471 = vsel %vm655, %v3450, %v3462
        %v3472 = vsel %vm655, %v3452, %v3464
        %v3473 = vsel %vm655, %v3454, %v3466
        %v3474 = vsel %vm655, %v3456, %v3468
        %v3475 = vsel %vm655, %v3458, %v3446
        %v3476 = vsel %vm655, %v3460, %v3448
        %v3477 = vsel %vm655, %v3462, %v3450
        %v3478 = vsel %vm655, %v3464, %v3452
        %v3479 = vsel %vm655, %v3466, %v3454
        %v3480 = vsel %vm655, %v3468, %v3456
        %v3481 = vmul.f32 %v672, %v3475
        %v3482 = vmul.f32 %v676, %v3469
        %v3483 = vmul.f32 %v672, %v3476
        %v3484 = vmul.f32 %v676, %v3470
        %v3485 = vmul.f32 %v672, %v3477
        %v3486 = vmul.f32 %v676, %v3471
        %v3487 = vmul.f32 %v672, %v3478
        %v3488 = vmul.f32 %v676, %v3472
        %v3489 = vmul.f32 %v672, %v3479
        %v3490 = vmul.f32 %v676, %v3473
        %v3491 = vmul.f32 %v672, %v3480
        %v3492 = vmul.f32 %v676, %v3474
        %v3493 = vmul.f32 %v693, %v3481
        %v3494 = vmul.f32 %v693, %v3482
        %v3495 = vmul.f32 %v697, %v3483
        %v3496 = vmul.f32 %v697, %v3484
        %v3497 = vmul.f32 %v701, %v3485
        %v3498 = vmul.f32 %v701, %v3486
        %v3499 = vmul.f32 %v705, %v3487
        %v3500 = vmul.f32 %v705, %v3488
        %v3501 = vmul.f32 %v709, %v3489
        %v3502 = vmul.f32 %v709, %v3490
        %v3503 = vmul.f32 %v713, %v3491
        %v3504 = vmul.f32 %v713, %v3492
        %v3505 = vadd.f32 %v3433, %v3493
        %v3506 = vadd.f32 %v3434, %v3494
        %v3507 = vadd.f32 %v3435, %v3495
        %v3508 = vadd.f32 %v3436, %v3496
        %v3509 = vadd.f32 %v3437, %v3497
        %v3510 = vadd.f32 %v3438, %v3498
        %v3511 = vadd.f32 %v3439, %v3499
        %v3512 = vadd.f32 %v3440, %v3500
        %v3513 = vadd.f32 %v3441, %v3501
        %v3514 = vadd.f32 %v3442, %v3502
        %v3515 = vadd.f32 %v3443, %v3503
        %v3516 = vadd.f32 %v3444, %v3504
        %3517 = vrot.lane.b32.xlu0 %v3399, 16
        %v3518 = vpop.permute.xlu0 %3517
        %3519 = vrot.lane.b32.xlu0 %v3405, 16
        %v3520 = vpop.permute.xlu0 %3519
        %3521 = vrot.lane.b32.xlu0 %v3411, 16
        %v3522 = vpop.permute.xlu0 %3521
        %3523 = vrot.lane.b32.xlu0 %v3417, 16
        %v3524 = vpop.permute.xlu0 %3523
        %3525 = vrot.lane.b32.xlu0 %v3423, 16
        %v3526 = vpop.permute.xlu0 %3525
        %3527 = vrot.lane.b32.xlu0 %v3429, 16
        %v3528 = vpop.permute.xlu0 %3527
        %3529 = vrot.lane.b32.xlu0 %v3401, 16
        %v3530 = vpop.permute.xlu0 %3529
        %3531 = vrot.lane.b32.xlu0 %v3407, 16
        %v3532 = vpop.permute.xlu0 %3531
        %3533 = vrot.lane.b32.xlu0 %v3413, 16
        %v3534 = vpop.permute.xlu0 %3533
        %3535 = vrot.lane.b32.xlu0 %v3419, 16
        %v3536 = vpop.permute.xlu0 %3535
        %3537 = vrot.lane.b32.xlu0 %v3425, 16
        %v3538 = vpop.permute.xlu0 %3537
        %3539 = vrot.lane.b32.xlu0 %v3431, 16
        %v3540 = vpop.permute.xlu0 %3539
        %v3541 = vsel %vm763, %v3518, %v3530
        %v3542 = vsel %vm763, %v3520, %v3532
        %v3543 = vsel %vm763, %v3522, %v3534
        %v3544 = vsel %vm763, %v3524, %v3536
        %v3545 = vsel %vm763, %v3526, %v3538
        %v3546 = vsel %vm763, %v3528, %v3540
        %v3547 = vsel %vm763, %v3530, %v3518
        %v3548 = vsel %vm763, %v3532, %v3520
        %v3549 = vsel %vm763, %v3534, %v3522
        %v3550 = vsel %vm763, %v3536, %v3524
        %v3551 = vsel %vm763, %v3538, %v3526
        %v3552 = vsel %vm763, %v3540, %v3528
        %v3553 = vmul.f32 %v780, %v3547
        %v3554 = vmul.f32 %v784, %v3541
        %v3555 = vmul.f32 %v780, %v3548
        %v3556 = vmul.f32 %v784, %v3542
        %v3557 = vmul.f32 %v780, %v3549
        %v3558 = vmul.f32 %v784, %v3543
        %v3559 = vmul.f32 %v780, %v3550
        %v3560 = vmul.f32 %v784, %v3544
        %v3561 = vmul.f32 %v780, %v3551
        %v3562 = vmul.f32 %v784, %v3545
        %v3563 = vmul.f32 %v780, %v3552
        %v3564 = vmul.f32 %v784, %v3546
        %v3565 = vmul.f32 %v801, %v3553
        %v3566 = vmul.f32 %v801, %v3554
        %v3567 = vmul.f32 %v805, %v3555
        %v3568 = vmul.f32 %v805, %v3556
        %v3569 = vmul.f32 %v809, %v3557
        %v3570 = vmul.f32 %v809, %v3558
        %v3571 = vmul.f32 %v813, %v3559
        %v3572 = vmul.f32 %v813, %v3560
        %v3573 = vmul.f32 %v817, %v3561
        %v3574 = vmul.f32 %v817, %v3562
        %v3575 = vmul.f32 %v821, %v3563
        %v3576 = vmul.f32 %v821, %v3564
        %v3577 = vadd.f32 %v3505, %v3565
        %v3578 = vadd.f32 %v3506, %v3566
        %v3579 = vadd.f32 %v3507, %v3567
        %v3580 = vadd.f32 %v3508, %v3568
        %v3581 = vadd.f32 %v3509, %v3569
        %v3582 = vadd.f32 %v3510, %v3570
        %v3583 = vadd.f32 %v3511, %v3571
        %v3584 = vadd.f32 %v3512, %v3572
        %v3585 = vadd.f32 %v3513, %v3573
        %v3586 = vadd.f32 %v3514, %v3574
        %v3587 = vadd.f32 %v3515, %v3575
        %v3588 = vadd.f32 %v3516, %v3576
        %3589 = vrot.lane.b32.xlu0 %v3399, 15
        %v3590 = vpop.permute.xlu0 %3589
        %3591 = vrot.lane.b32.xlu0 %v3405, 15
        %v3592 = vpop.permute.xlu0 %3591
        %3593 = vrot.lane.b32.xlu0 %v3411, 15
        %v3594 = vpop.permute.xlu0 %3593
        %3595 = vrot.lane.b32.xlu0 %v3417, 15
        %v3596 = vpop.permute.xlu0 %3595
        %3597 = vrot.lane.b32.xlu0 %v3423, 15
        %v3598 = vpop.permute.xlu0 %3597
        %3599 = vrot.lane.b32.xlu0 %v3429, 15
        %v3600 = vpop.permute.xlu0 %3599
        %3601 = vrot.lane.b32.xlu0 %v3401, 15
        %v3602 = vpop.permute.xlu0 %3601
        %3603 = vrot.lane.b32.xlu0 %v3407, 15
        %v3604 = vpop.permute.xlu0 %3603
        %3605 = vrot.lane.b32.xlu0 %v3413, 15
        %v3606 = vpop.permute.xlu0 %3605
        %3607 = vrot.lane.b32.xlu0 %v3419, 15
        %v3608 = vpop.permute.xlu0 %3607
        %3609 = vrot.lane.b32.xlu0 %v3425, 15
        %v3610 = vpop.permute.xlu0 %3609
        %3611 = vrot.lane.b32.xlu0 %v3431, 15
        %v3612 = vpop.permute.xlu0 %3611
        %v3613 = vsel %vm871, %v3590, %v3602
        %v3614 = vsel %vm871, %v3592, %v3604
        %v3615 = vsel %vm871, %v3594, %v3606
        %v3616 = vsel %vm871, %v3596, %v3608
        %v3617 = vsel %vm871, %v3598, %v3610
        %v3618 = vsel %vm871, %v3600, %v3612
        %v3619 = vsel %vm871, %v3602, %v3590
        %v3620 = vsel %vm871, %v3604, %v3592
        %v3621 = vsel %vm871, %v3606, %v3594
        %v3622 = vsel %vm871, %v3608, %v3596
        %v3623 = vsel %vm871, %v3610, %v3598
        %v3624 = vsel %vm871, %v3612, %v3600
        %v3625 = vmul.f32 %v888, %v3619
        %v3626 = vmul.f32 %v892, %v3613
        %v3627 = vmul.f32 %v888, %v3620
        %v3628 = vmul.f32 %v892, %v3614
        %v3629 = vmul.f32 %v888, %v3621
        %v3630 = vmul.f32 %v892, %v3615
        %v3631 = vmul.f32 %v888, %v3622
        %v3632 = vmul.f32 %v892, %v3616
        %v3633 = vmul.f32 %v888, %v3623
        %v3634 = vmul.f32 %v892, %v3617
        %v3635 = vmul.f32 %v888, %v3624
        %v3636 = vmul.f32 %v892, %v3618
        %v3637 = vmul.f32 %v909, %v3625
        %v3638 = vmul.f32 %v909, %v3626
        %v3639 = vmul.f32 %v913, %v3627
        %v3640 = vmul.f32 %v913, %v3628
        %v3641 = vmul.f32 %v917, %v3629
        %v3642 = vmul.f32 %v917, %v3630
        %v3643 = vmul.f32 %v921, %v3631
        %v3644 = vmul.f32 %v921, %v3632
        %v3645 = vmul.f32 %v925, %v3633
        %v3646 = vmul.f32 %v925, %v3634
        %v3647 = vmul.f32 %v929, %v3635
        %v3648 = vmul.f32 %v929, %v3636
        %v3649 = vadd.f32 %v3577, %v3637
        %v3650 = vadd.f32 %v3578, %v3638
        %v3651 = vadd.f32 %v3579, %v3639
        %v3652 = vadd.f32 %v3580, %v3640
        %v3653 = vadd.f32 %v3581, %v3641
        %v3654 = vadd.f32 %v3582, %v3642
        %v3655 = vadd.f32 %v3583, %v3643
        %v3656 = vadd.f32 %v3584, %v3644
        %v3657 = vadd.f32 %v3585, %v3645
        %v3658 = vadd.f32 %v3586, %v3646
        %v3659 = vadd.f32 %v3587, %v3647
        %v3660 = vadd.f32 %v3588, %v3648
        %3661 = vrot.lane.b32.xlu0 %v3399, 1
        %v3662 = vpop.permute.xlu0 %3661
        %3663 = vrot.lane.b32.xlu0 %v3405, 1
        %v3664 = vpop.permute.xlu0 %3663
        %3665 = vrot.lane.b32.xlu0 %v3411, 1
        %v3666 = vpop.permute.xlu0 %3665
        %3667 = vrot.lane.b32.xlu0 %v3417, 1
        %v3668 = vpop.permute.xlu0 %3667
        %3669 = vrot.lane.b32.xlu0 %v3423, 1
        %v3670 = vpop.permute.xlu0 %3669
        %3671 = vrot.lane.b32.xlu0 %v3429, 1
        %v3672 = vpop.permute.xlu0 %3671
        %3673 = vrot.lane.b32.xlu0 %v3401, 1
        %v3674 = vpop.permute.xlu0 %3673
        %3675 = vrot.lane.b32.xlu0 %v3407, 1
        %v3676 = vpop.permute.xlu0 %3675
        %3677 = vrot.lane.b32.xlu0 %v3413, 1
        %v3678 = vpop.permute.xlu0 %3677
        %3679 = vrot.lane.b32.xlu0 %v3419, 1
        %v3680 = vpop.permute.xlu0 %3679
        %3681 = vrot.lane.b32.xlu0 %v3425, 1
        %v3682 = vpop.permute.xlu0 %3681
        %3683 = vrot.lane.b32.xlu0 %v3431, 1
        %v3684 = vpop.permute.xlu0 %3683
        %v3685 = vsel %vm979, %v3662, %v3674
        %v3686 = vsel %vm979, %v3664, %v3676
        %v3687 = vsel %vm979, %v3666, %v3678
        %v3688 = vsel %vm979, %v3668, %v3680
        %v3689 = vsel %vm979, %v3670, %v3682
        %v3690 = vsel %vm979, %v3672, %v3684
        %v3691 = vsel %vm979, %v3674, %v3662
        %v3692 = vsel %vm979, %v3676, %v3664
        %v3693 = vsel %vm979, %v3678, %v3666
        %v3694 = vsel %vm979, %v3680, %v3668
        %v3695 = vsel %vm979, %v3682, %v3670
        %v3696 = vsel %vm979, %v3684, %v3672
        %v3697 = vmul.f32 %v996, %v3691
        %v3698 = vmul.f32 %v1000, %v3685
        %v3699 = vmul.f32 %v996, %v3692
        %v3700 = vmul.f32 %v1000, %v3686
        %v3701 = vmul.f32 %v996, %v3693
        %v3702 = vmul.f32 %v1000, %v3687
        %v3703 = vmul.f32 %v996, %v3694
        %v3704 = vmul.f32 %v1000, %v3688
        %v3705 = vmul.f32 %v996, %v3695
        %v3706 = vmul.f32 %v1000, %v3689
        %v3707 = vmul.f32 %v996, %v3696
        %v3708 = vmul.f32 %v1000, %v3690
        %v3709 = vmul.f32 %v1017, %v3697
        %v3710 = vmul.f32 %v1017, %v3698
        %v3711 = vmul.f32 %v1021, %v3699
        %v3712 = vmul.f32 %v1021, %v3700
        %v3713 = vmul.f32 %v1025, %v3701
        %v3714 = vmul.f32 %v1025, %v3702
        %v3715 = vmul.f32 %v1029, %v3703
        %v3716 = vmul.f32 %v1029, %v3704
        %v3717 = vmul.f32 %v1033, %v3705
        %v3718 = vmul.f32 %v1033, %v3706
        %v3719 = vmul.f32 %v1037, %v3707
        %v3720 = vmul.f32 %v1037, %v3708
        %v3721 = vadd.f32 %v3649, %v3709
        %v3722 = vadd.f32 %v3650, %v3710
        %v3723 = vadd.f32 %v3651, %v3711
        %v3724 = vadd.f32 %v3652, %v3712
        %v3725 = vadd.f32 %v3653, %v3713
        %v3726 = vadd.f32 %v3654, %v3714
        %v3727 = vadd.f32 %v3655, %v3715
        %v3728 = vadd.f32 %v3656, %v3716
        %v3729 = vadd.f32 %v3657, %v3717
        %v3730 = vadd.f32 %v3658, %v3718
        %v3731 = vadd.f32 %v3659, %v3719
        %v3732 = vadd.f32 %v3660, %v3720
        %3733 = vrot.lane.b32.xlu0 %v3399, 127
        %v3734 = vpop.permute.xlu0 %3733
        %3735 = vrot.lane.b32.xlu0 %v3405, 127
        %v3736 = vpop.permute.xlu0 %3735
        %3737 = vrot.lane.b32.xlu0 %v3411, 127
        %v3738 = vpop.permute.xlu0 %3737
        %3739 = vrot.lane.b32.xlu0 %v3417, 127
        %v3740 = vpop.permute.xlu0 %3739
        %3741 = vrot.lane.b32.xlu0 %v3423, 127
        %v3742 = vpop.permute.xlu0 %3741
        %3743 = vrot.lane.b32.xlu0 %v3429, 127
        %v3744 = vpop.permute.xlu0 %3743
        %3745 = vrot.lane.b32.xlu0 %v3401, 127
        %v3746 = vpop.permute.xlu0 %3745
        %3747 = vrot.lane.b32.xlu0 %v3407, 127
        %v3748 = vpop.permute.xlu0 %3747
        %3749 = vrot.lane.b32.xlu0 %v3413, 127
        %v3750 = vpop.permute.xlu0 %3749
        %3751 = vrot.lane.b32.xlu0 %v3419, 127
        %v3752 = vpop.permute.xlu0 %3751
        %3753 = vrot.lane.b32.xlu0 %v3425, 127
        %v3754 = vpop.permute.xlu0 %3753
        %3755 = vrot.lane.b32.xlu0 %v3431, 127
        %v3756 = vpop.permute.xlu0 %3755
        %v3757 = vsel %vm1087, %v3734, %v3746
        %v3758 = vsel %vm1087, %v3736, %v3748
        %v3759 = vsel %vm1087, %v3738, %v3750
        %v3760 = vsel %vm1087, %v3740, %v3752
        %v3761 = vsel %vm1087, %v3742, %v3754
        %v3762 = vsel %vm1087, %v3744, %v3756
        %v3763 = vsel %vm1087, %v3746, %v3734
        %v3764 = vsel %vm1087, %v3748, %v3736
        %v3765 = vsel %vm1087, %v3750, %v3738
        %v3766 = vsel %vm1087, %v3752, %v3740
        %v3767 = vsel %vm1087, %v3754, %v3742
        %v3768 = vsel %vm1087, %v3756, %v3744
        %v3769 = vmul.f32 %v1104, %v3757
        %v3770 = vmul.f32 %v1108, %v3763
        %v3771 = vmul.f32 %v1104, %v3758
        %v3772 = vmul.f32 %v1108, %v3764
        %v3773 = vmul.f32 %v1104, %v3759
        %v3774 = vmul.f32 %v1108, %v3765
        %v3775 = vmul.f32 %v1104, %v3760
        %v3776 = vmul.f32 %v1108, %v3766
        %v3777 = vmul.f32 %v1104, %v3761
        %v3778 = vmul.f32 %v1108, %v3767
        %v3779 = vmul.f32 %v1104, %v3762
        %v3780 = vmul.f32 %v1108, %v3768
        %v3781 = vmul.f32 %v1125, %v3769
        %v3782 = vmul.f32 %v1125, %v3770
        %v3783 = vmul.f32 %v1129, %v3771
        %v3784 = vmul.f32 %v1129, %v3772
        %v3785 = vmul.f32 %v1133, %v3773
        %v3786 = vmul.f32 %v1133, %v3774
        %v3787 = vmul.f32 %v1137, %v3775
        %v3788 = vmul.f32 %v1137, %v3776
        %v3789 = vmul.f32 %v1141, %v3777
        %v3790 = vmul.f32 %v1141, %v3778
        %v3791 = vmul.f32 %v1145, %v3779
        %v3792 = vmul.f32 %v1145, %v3780
        %v3793 = vadd.f32 %v3721, %v3781
        %v3794 = vadd.f32 %v3722, %v3782
        %v3795 = vadd.f32 %v3723, %v3783
        %v3796 = vadd.f32 %v3724, %v3784
        %v3797 = vadd.f32 %v3725, %v3785
        %v3798 = vadd.f32 %v3726, %v3786
        %v3799 = vadd.f32 %v3727, %v3787
        %v3800 = vadd.f32 %v3728, %v3788
        %v3801 = vadd.f32 %v3729, %v3789
        %v3802 = vadd.f32 %v3730, %v3790
        %v3803 = vadd.f32 %v3731, %v3791
        %v3804 = vadd.f32 %v3732, %v3792
        %3805 = vrot.lane.b32.xlu0 %v3399, 113
        %v3806 = vpop.permute.xlu0 %3805
        %3807 = vrot.lane.b32.xlu0 %v3405, 113
        %v3808 = vpop.permute.xlu0 %3807
        %3809 = vrot.lane.b32.xlu0 %v3411, 113
        %v3810 = vpop.permute.xlu0 %3809
        %3811 = vrot.lane.b32.xlu0 %v3417, 113
        %v3812 = vpop.permute.xlu0 %3811
        %3813 = vrot.lane.b32.xlu0 %v3423, 113
        %v3814 = vpop.permute.xlu0 %3813
        %3815 = vrot.lane.b32.xlu0 %v3429, 113
        %v3816 = vpop.permute.xlu0 %3815
        %3817 = vrot.lane.b32.xlu0 %v3401, 113
        %v3818 = vpop.permute.xlu0 %3817
        %3819 = vrot.lane.b32.xlu0 %v3407, 113
        %v3820 = vpop.permute.xlu0 %3819
        %3821 = vrot.lane.b32.xlu0 %v3413, 113
        %v3822 = vpop.permute.xlu0 %3821
        %3823 = vrot.lane.b32.xlu0 %v3419, 113
        %v3824 = vpop.permute.xlu0 %3823
        %3825 = vrot.lane.b32.xlu0 %v3425, 113
        %v3826 = vpop.permute.xlu0 %3825
        %3827 = vrot.lane.b32.xlu0 %v3431, 113
        %v3828 = vpop.permute.xlu0 %3827
        %v3829 = vsel %vm1195, %v3806, %v3818
        %v3830 = vsel %vm1195, %v3808, %v3820
        %v3831 = vsel %vm1195, %v3810, %v3822
        %v3832 = vsel %vm1195, %v3812, %v3824
        %v3833 = vsel %vm1195, %v3814, %v3826
        %v3834 = vsel %vm1195, %v3816, %v3828
        %v3835 = vsel %vm1195, %v3818, %v3806
        %v3836 = vsel %vm1195, %v3820, %v3808
        %v3837 = vsel %vm1195, %v3822, %v3810
        %v3838 = vsel %vm1195, %v3824, %v3812
        %v3839 = vsel %vm1195, %v3826, %v3814
        %v3840 = vsel %vm1195, %v3828, %v3816
        %v3841 = vmul.f32 %v1212, %v3829
        %v3842 = vmul.f32 %v1216, %v3835
        %v3843 = vmul.f32 %v1212, %v3830
        %v3844 = vmul.f32 %v1216, %v3836
        %v3845 = vmul.f32 %v1212, %v3831
        %v3846 = vmul.f32 %v1216, %v3837
        %v3847 = vmul.f32 %v1212, %v3832
        %v3848 = vmul.f32 %v1216, %v3838
        %v3849 = vmul.f32 %v1212, %v3833
        %v3850 = vmul.f32 %v1216, %v3839
        %v3851 = vmul.f32 %v1212, %v3834
        %v3852 = vmul.f32 %v1216, %v3840
        %v3853 = vmul.f32 %v1233, %v3841
        %v3854 = vmul.f32 %v1233, %v3842
        %v3855 = vmul.f32 %v1237, %v3843
        %v3856 = vmul.f32 %v1237, %v3844
        %v3857 = vmul.f32 %v1241, %v3845
        %v3858 = vmul.f32 %v1241, %v3846
        %v3859 = vmul.f32 %v1245, %v3847
        %v3860 = vmul.f32 %v1245, %v3848
        %v3861 = vmul.f32 %v1249, %v3849
        %v3862 = vmul.f32 %v1249, %v3850
        %v3863 = vmul.f32 %v1253, %v3851
        %v3864 = vmul.f32 %v1253, %v3852
        %v3865 = vadd.f32 %v3793, %v3853
        %v3866 = vadd.f32 %v3794, %v3854
        %v3867 = vadd.f32 %v3795, %v3855
        %v3868 = vadd.f32 %v3796, %v3856
        %v3869 = vadd.f32 %v3797, %v3857
        %v3870 = vadd.f32 %v3798, %v3858
        %v3871 = vadd.f32 %v3799, %v3859
        %v3872 = vadd.f32 %v3800, %v3860
        %v3873 = vadd.f32 %v3801, %v3861
        %v3874 = vadd.f32 %v3802, %v3862
        %v3875 = vadd.f32 %v3803, %v3863
        %v3876 = vadd.f32 %v3804, %v3864
        %3877 = vrot.lane.b32.xlu0 %v3399, 112
        %v3878 = vpop.permute.xlu0 %3877
        %3879 = vrot.lane.b32.xlu0 %v3405, 112
        %v3880 = vpop.permute.xlu0 %3879
        %3881 = vrot.lane.b32.xlu0 %v3411, 112
        %v3882 = vpop.permute.xlu0 %3881
        %3883 = vrot.lane.b32.xlu0 %v3417, 112
        %v3884 = vpop.permute.xlu0 %3883
        %3885 = vrot.lane.b32.xlu0 %v3423, 112
        %v3886 = vpop.permute.xlu0 %3885
        %3887 = vrot.lane.b32.xlu0 %v3429, 112
        %v3888 = vpop.permute.xlu0 %3887
        %3889 = vrot.lane.b32.xlu0 %v3401, 112
        %v3890 = vpop.permute.xlu0 %3889
        %3891 = vrot.lane.b32.xlu0 %v3407, 112
        %v3892 = vpop.permute.xlu0 %3891
        %3893 = vrot.lane.b32.xlu0 %v3413, 112
        %v3894 = vpop.permute.xlu0 %3893
        %3895 = vrot.lane.b32.xlu0 %v3419, 112
        %v3896 = vpop.permute.xlu0 %3895
        %3897 = vrot.lane.b32.xlu0 %v3425, 112
        %v3898 = vpop.permute.xlu0 %3897
        %3899 = vrot.lane.b32.xlu0 %v3431, 112
        %v3900 = vpop.permute.xlu0 %3899
        %v3901 = vsel %vm1303, %v3878, %v3890
        %v3902 = vsel %vm1303, %v3880, %v3892
        %v3903 = vsel %vm1303, %v3882, %v3894
        %v3904 = vsel %vm1303, %v3884, %v3896
        %v3905 = vsel %vm1303, %v3886, %v3898
        %v3906 = vsel %vm1303, %v3888, %v3900
        %v3907 = vsel %vm1303, %v3890, %v3878
        %v3908 = vsel %vm1303, %v3892, %v3880
        %v3909 = vsel %vm1303, %v3894, %v3882
        %v3910 = vsel %vm1303, %v3896, %v3884
        %v3911 = vsel %vm1303, %v3898, %v3886
        %v3912 = vsel %vm1303, %v3900, %v3888
        %v3913 = vmul.f32 %v1320, %v3901
        %v3914 = vmul.f32 %v1324, %v3907
        %v3915 = vmul.f32 %v1320, %v3902
        %v3916 = vmul.f32 %v1324, %v3908
        %v3917 = vmul.f32 %v1320, %v3903
        %v3918 = vmul.f32 %v1324, %v3909
        %v3919 = vmul.f32 %v1320, %v3904
        %v3920 = vmul.f32 %v1324, %v3910
        %v3921 = vmul.f32 %v1320, %v3905
        %v3922 = vmul.f32 %v1324, %v3911
        %v3923 = vmul.f32 %v1320, %v3906
        %v3924 = vmul.f32 %v1324, %v3912
        %v3925 = vmul.f32 %v1341, %v3913
        %v3926 = vmul.f32 %v1341, %v3914
        %v3927 = vmul.f32 %v1345, %v3915
        %v3928 = vmul.f32 %v1345, %v3916
        %v3929 = vmul.f32 %v1349, %v3917
        %v3930 = vmul.f32 %v1349, %v3918
        %v3931 = vmul.f32 %v1353, %v3919
        %v3932 = vmul.f32 %v1353, %v3920
        %v3933 = vmul.f32 %v1357, %v3921
        %v3934 = vmul.f32 %v1357, %v3922
        %v3935 = vmul.f32 %v1361, %v3923
        %v3936 = vmul.f32 %v1361, %v3924
        %v3937 = vadd.f32 %v3865, %v3925
        %v3938 = vadd.f32 %v3866, %v3926
        %v3939 = vadd.f32 %v3867, %v3927
        %v3940 = vadd.f32 %v3868, %v3928
        %v3941 = vadd.f32 %v3869, %v3929
        %v3942 = vadd.f32 %v3870, %v3930
        %v3943 = vadd.f32 %v3871, %v3931
        %v3944 = vadd.f32 %v3872, %v3932
        %v3945 = vadd.f32 %v3873, %v3933
        %v3946 = vadd.f32 %v3874, %v3934
        %v3947 = vadd.f32 %v3875, %v3935
        %v3948 = vadd.f32 %v3876, %v3936
        %3949 = vrot.lane.b32.xlu0 %v3399, 111
        %v3950 = vpop.permute.xlu0 %3949
        %3951 = vrot.lane.b32.xlu0 %v3405, 111
        %v3952 = vpop.permute.xlu0 %3951
        %3953 = vrot.lane.b32.xlu0 %v3411, 111
        %v3954 = vpop.permute.xlu0 %3953
        %3955 = vrot.lane.b32.xlu0 %v3417, 111
        %v3956 = vpop.permute.xlu0 %3955
        %3957 = vrot.lane.b32.xlu0 %v3423, 111
        %v3958 = vpop.permute.xlu0 %3957
        %3959 = vrot.lane.b32.xlu0 %v3429, 111
        %v3960 = vpop.permute.xlu0 %3959
        %3961 = vrot.lane.b32.xlu0 %v3401, 111
        %v3962 = vpop.permute.xlu0 %3961
        %3963 = vrot.lane.b32.xlu0 %v3407, 111
        %v3964 = vpop.permute.xlu0 %3963
        %3965 = vrot.lane.b32.xlu0 %v3413, 111
        %v3966 = vpop.permute.xlu0 %3965
        %3967 = vrot.lane.b32.xlu0 %v3419, 111
        %v3968 = vpop.permute.xlu0 %3967
        %3969 = vrot.lane.b32.xlu0 %v3425, 111
        %v3970 = vpop.permute.xlu0 %3969
        %3971 = vrot.lane.b32.xlu0 %v3431, 111
        %v3972 = vpop.permute.xlu0 %3971
        %v3973 = vsel %vm1411, %v3950, %v3962
        %v3974 = vsel %vm1411, %v3952, %v3964
        %v3975 = vsel %vm1411, %v3954, %v3966
        %v3976 = vsel %vm1411, %v3956, %v3968
        %v3977 = vsel %vm1411, %v3958, %v3970
        %v3978 = vsel %vm1411, %v3960, %v3972
        %v3979 = vsel %vm1411, %v3962, %v3950
        %v3980 = vsel %vm1411, %v3964, %v3952
        %v3981 = vsel %vm1411, %v3966, %v3954
        %v3982 = vsel %vm1411, %v3968, %v3956
        %v3983 = vsel %vm1411, %v3970, %v3958
        %v3984 = vsel %vm1411, %v3972, %v3960
        %v3985 = vmul.f32 %v1428, %v3973
        %v3986 = vmul.f32 %v1432, %v3979
        %v3987 = vmul.f32 %v1428, %v3974
        %v3988 = vmul.f32 %v1432, %v3980
        %v3989 = vmul.f32 %v1428, %v3975
        %v3990 = vmul.f32 %v1432, %v3981
        %v3991 = vmul.f32 %v1428, %v3976
        %v3992 = vmul.f32 %v1432, %v3982
        %v3993 = vmul.f32 %v1428, %v3977
        %v3994 = vmul.f32 %v1432, %v3983
        %v3995 = vmul.f32 %v1428, %v3978
        %v3996 = vmul.f32 %v1432, %v3984
        %v3997 = vmul.f32 %v1449, %v3985
        %v3998 = vmul.f32 %v1449, %v3986
        %v3999 = vmul.f32 %v1453, %v3987
        %v4000 = vmul.f32 %v1453, %v3988
        %v4001 = vmul.f32 %v1457, %v3989
        %v4002 = vmul.f32 %v1457, %v3990
        %v4003 = vmul.f32 %v1461, %v3991
        %v4004 = vmul.f32 %v1461, %v3992
        %v4005 = vmul.f32 %v1465, %v3993
        %v4006 = vmul.f32 %v1465, %v3994
        %v4007 = vmul.f32 %v1469, %v3995
        %v4008 = vmul.f32 %v1469, %v3996
        %v4009 = vadd.f32 %v3937, %v3997
        %v4010 = vadd.f32 %v3938, %v3998
        %v4011 = vadd.f32 %v3939, %v3999
        %v4012 = vadd.f32 %v3940, %v4000
        %v4013 = vadd.f32 %v3941, %v4001
        %v4014 = vadd.f32 %v3942, %v4002
        %v4015 = vadd.f32 %v3943, %v4003
        %v4016 = vadd.f32 %v3944, %v4004
        %v4017 = vadd.f32 %v3945, %v4005
        %v4018 = vadd.f32 %v3946, %v4006
        %v4019 = vadd.f32 %v3947, %v4007
        %v4020 = vadd.f32 %v3948, %v4008
        %v4021 = vmul.f32 %v4009, %v4009
        %v4022 = vmul.f32 %v4010, %v4010
        %v4023 = vmul.f32 %v4011, %v4011
        %v4024 = vmul.f32 %v4012, %v4012
        %v4025 = vadd.f32 %v4021, %v4022
        %4026 = vadd.xlane.f32.xlu0 %v4025
        %v4027 = vpop.xlane.xlu0 %4026
        %v4028 = vadd.f32 %v4023, %v4024
        %4029 = vadd.xlane.f32.xlu0 %v4028
        %v4030 = vpop.xlane.xlu0 %4029
        %v4031 = vmax.f32 %v4027, 1e-24
        %v4032 = vmax.f32 %v4030, 1e-24
        %v4033 = vrsqrt.pop %v4031
        %v4034 = vrsqrt.pop %v4032
        %v4035 = vmul.f32 %v4009, %v4033
        %v4036 = vmul.f32 %v4010, %v4033
        %v4037 = vmul.f32 %v4011, %v4034
        %v4038 = vmul.f32 %v4012, %v4034
        %v4039 = vmul.f32 %v4035, %v1515
        %v4040 = vmul.f32 %v4036, %v1515
        %v4041 = vmul.f32 %v4037, %v1519
        %v4042 = vmul.f32 %v4038, %v1519
        %v4043 = vmul.f32 %v4013, %v4013
        %v4044 = vmul.f32 %v4014, %v4014
        %v4045 = vmul.f32 %v4015, %v4015
        %v4046 = vmul.f32 %v4016, %v4016
        %v4047 = vadd.f32 %v4043, %v4044
        %4048 = vadd.xlane.f32.xlu0 %v4047
        %v4049 = vpop.xlane.xlu0 %4048
        %v4050 = vadd.f32 %v4045, %v4046
        %4051 = vadd.xlane.f32.xlu0 %v4050
        %v4052 = vpop.xlane.xlu0 %4051
        %v4053 = vmax.f32 %v4049, 1e-24
        %v4054 = vmax.f32 %v4052, 1e-24
        %v4055 = vrsqrt.pop %v4053
        %v4056 = vrsqrt.pop %v4054
        %v4057 = vmul.f32 %v4013, %v4055
        %v4058 = vmul.f32 %v4014, %v4055
        %v4059 = vmul.f32 %v4015, %v4056
        %v4060 = vmul.f32 %v4016, %v4056
        %4061 = vmatprep.subr.mxu0 %v4058
        %4062 = vmatpush1.xpose.msra.mxu0 %v4057
        %4063 = vmatprep.subr.mxu0 %v4060
        %4064 = vmatpush1.xpose.msra.mxu0 %v4059
        %4065 = vmatprep.subr.mxu0 0.0
        %4066 = vmatpush1.xpose.msra.mxu0 0.0
        %4067 = vmatprep.subr.mxu0 0.0
        %4068 = vmatpush1.xpose.msra.mxu0 0.0
        %4069 = vmatprep.subr.mxu0 0.0
        %4070 = vmatpush1.xpose.msra.mxu0 0.0
        %4071 = vmatprep.subr.mxu0 0.0
        %4072 = vmatpush1.xpose.msra.mxu0 0.0
        %4073 = vmatprep.subr.mxu0 0.0
        %4074 = vmatpush1.xpose.msra.mxu0 0.0
        %4075 = vmatprep.subr.mxu0 0.0
        %4076 = vmatpush1.xpose.msra.mxu0 0.0
        %4077 = vmatprep.subr.mxu0 0.0
        %4078 = vmatpush1.xpose.msra.mxu0 0.0
        %4079 = vmatprep.subr.mxu0 0.0
        %4080 = vmatpush1.xpose.msra.mxu0 0.0
        %4081 = vmatprep.subr.mxu0 0.0
        %4082 = vmatpush1.xpose.msra.mxu0 0.0
        %4083 = vmatprep.subr.mxu0 0.0
        %4084 = vmatpush1.xpose.msra.mxu0 0.0
        %4085 = vmatprep.subr.mxu0 0.0
        %4086 = vmatpush1.xpose.msra.mxu0 0.0
        %4087 = vmatprep.subr.mxu0 0.0
        %4088 = vmatpush1.xpose.msra.mxu0 0.0
        %4089 = vmatprep.subr.mxu0 0.0
        %4090 = vmatpush1.xpose.msra.mxu0 0.0
        %4091 = vmatprep.subr.mxu0 0.0
        %4092 = vmatpush1.xpose.msra.mxu0 0.0
        %4093 = vmatprep.subr.mxu0 0.0
        %4094 = vmatpush1.xpose.msra.mxu0 0.0
        %4095 = vmatprep.subr.mxu0 0.0
        %4096 = vmatpush1.xpose.msra.mxu0 0.0
        %4097 = vmatprep.subr.mxu0 0.0
        %4098 = vmatpush1.xpose.msra.mxu0 0.0
        %4099 = vmatprep.subr.mxu0 0.0
        %4100 = vmatpush1.xpose.msra.mxu0 0.0
        %4101 = vmatprep.subr.mxu0 0.0
        %4102 = vmatpush1.xpose.msra.mxu0 0.0
        %4103 = vmatprep.subr.mxu0 0.0
        %4104 = vmatpush1.xpose.msra.mxu0 0.0
        %4105 = vmatprep.subr.mxu0 0.0
        %4106 = vmatpush1.xpose.msra.mxu0 0.0
        %4107 = vmatprep.subr.mxu0 0.0
        %4108 = vmatpush1.xpose.msra.mxu0 0.0
        %4109 = vmatprep.subr.mxu0 0.0
        %4110 = vmatpush1.xpose.msra.mxu0 0.0
        %4111 = vmatprep.subr.mxu0 0.0
        %4112 = vmatpush1.xpose.msra.mxu0 0.0
        %4113 = vmatprep.subr.mxu0 0.0
        %4114 = vmatpush1.xpose.msra.mxu0 0.0
        %4115 = vmatprep.subr.mxu0 0.0
        %4116 = vmatpush1.xpose.msra.mxu0 0.0
        %4117 = vmatprep.subr.mxu0 0.0
        %4118 = vmatpush1.xpose.msra.mxu0 0.0
        %4119 = vmatprep.subr.mxu0 0.0
        %4120 = vmatpush1.xpose.msra.mxu0 0.0
        %4121 = vmatprep.subr.mxu0 0.0
        %4122 = vmatpush1.xpose.msra.mxu0 0.0
        %4123 = vmatprep.subr.mxu0 0.0
        %4124 = vmatpush1.xpose.msra.mxu0 0.0
        %4125 = vmatprep.mubr.f32.mxu0 %v4040
        %4126 = vmatmul.mubr.f32.gmra.mrb[0].mxu0 %v4039
        %v4127 = vpop.f32.mrb[0].mxu0
        %v4128 = vadd.f32 %v354, %v4127
        %v4129 = vpop.f32.mrb[0].mxu0
        %4130 = vmatprep.mubr.f32.mxu0 %v4042
        %4131 = vmatmul.mubr.f32.gmra.mrb[0].mxu0 %v4041
        %v4132 = vpop.f32.mrb[0].mxu0
        %v4133 = vadd.f32 %v355, %v4132
        %v4134 = vpop.f32.mrb[0].mxu0
        %4135 = vdwg.mxu0
        %v4136 = vsel %vm467, %v4128, -inf
        %4137 = vmax.xlane.f32.xlu0 %v4136
        %v4138 = vpop.xlane.xlu0 %4137
        %v4139 = vsel %vm467, %v4133, -inf
        %4140 = vmax.xlane.f32.xlu0 %v4139
        %v4141 = vpop.xlane.xlu0 %4140
        %v4142 = vsub.f32 %v4128, %v4138
        %v4143 = vsub.f32 %v4133, %v4141
        %v4144 = vmul.f32 %v4142, 1.442695
        %v4145 = vpow.pop %v4144
        %v4146 = vmul.f32 %v4143, 1.442695
        %v4147 = vpow.pop %v4146
        %v4148 = vsel %vm467, %v4145, 0.0
        %4149 = vadd.xlane.f32.xlu0 %v4148
        %v4150 = vpop.xlane.xlu0 %4149
        %v4151 = vsel %vm467, %v4147, 0.0
        %4152 = vadd.xlane.f32.xlu0 %v4151
        %v4153 = vpop.xlane.xlu0 %4152
        %v4154 = vrcp.pop %v4150
        %v4155 = vrcp.pop %v4153
        %v4156 = vmul.f32 %v4145, %v4154
        %v4157 = vmul.f32 %v4147, %v4155
        %v4159 = vsel %vm467, %v4156, 0
        %v4162 = vsel %vm467, %v4157, 0
        %4164 = vmatprep.subr.mxu0 %v4018
        %4165 = vmatpush1.msra.mxu0 %v4017
        %4166 = vmatprep.subr.mxu0 %v4020
        %4167 = vmatpush1.msra.mxu0 %v4019
        %4168 = vmatprep.subr.mxu0 0.0
        %4169 = vmatpush1.msra.mxu0 0.0
        %4170 = vmatprep.subr.mxu0 0.0
        %4171 = vmatpush1.msra.mxu0 0.0
        %4172 = vmatprep.subr.mxu0 0.0
        %4173 = vmatpush1.msra.mxu0 0.0
        %4174 = vmatprep.subr.mxu0 0.0
        %4175 = vmatpush1.msra.mxu0 0.0
        %4176 = vmatprep.subr.mxu0 0.0
        %4177 = vmatpush1.msra.mxu0 0.0
        %4178 = vmatprep.subr.mxu0 0.0
        %4179 = vmatpush1.msra.mxu0 0.0
        %4180 = vmatprep.subr.mxu0 0.0
        %4181 = vmatpush1.msra.mxu0 0.0
        %4182 = vmatprep.subr.mxu0 0.0
        %4183 = vmatpush1.msra.mxu0 0.0
        %4184 = vmatprep.subr.mxu0 0.0
        %4185 = vmatpush1.msra.mxu0 0.0
        %4186 = vmatprep.subr.mxu0 0.0
        %4187 = vmatpush1.msra.mxu0 0.0
        %4188 = vmatprep.subr.mxu0 0.0
        %4189 = vmatpush1.msra.mxu0 0.0
        %4190 = vmatprep.subr.mxu0 0.0
        %4191 = vmatpush1.msra.mxu0 0.0
        %4192 = vmatprep.subr.mxu0 0.0
        %4193 = vmatpush1.msra.mxu0 0.0
        %4194 = vmatprep.subr.mxu0 0.0
        %4195 = vmatpush1.msra.mxu0 0.0
        %4196 = vmatprep.subr.mxu0 0.0
        %4197 = vmatpush1.msra.mxu0 0.0
        %4198 = vmatprep.subr.mxu0 0.0
        %4199 = vmatpush1.msra.mxu0 0.0
        %4200 = vmatprep.subr.mxu0 0.0
        %4201 = vmatpush1.msra.mxu0 0.0
        %4202 = vmatprep.subr.mxu0 0.0
        %4203 = vmatpush1.msra.mxu0 0.0
        %4204 = vmatprep.subr.mxu0 0.0
        %4205 = vmatpush1.msra.mxu0 0.0
        %4206 = vmatprep.subr.mxu0 0.0
        %4207 = vmatpush1.msra.mxu0 0.0
        %4208 = vmatprep.subr.mxu0 0.0
        %4209 = vmatpush1.msra.mxu0 0.0
        %4210 = vmatprep.subr.mxu0 0.0
        %4211 = vmatpush1.msra.mxu0 0.0
        %4212 = vmatprep.subr.mxu0 0.0
        %4213 = vmatpush1.msra.mxu0 0.0
        %4214 = vmatprep.subr.mxu0 0.0
        %4215 = vmatpush1.msra.mxu0 0.0
        %4216 = vmatprep.subr.mxu0 0.0
        %4217 = vmatpush1.msra.mxu0 0.0
        %4218 = vmatprep.subr.mxu0 0.0
        %4219 = vmatpush1.msra.mxu0 0.0
        %4220 = vmatprep.subr.mxu0 0.0
        %4221 = vmatpush1.msra.mxu0 0.0
        %4222 = vmatprep.subr.mxu0 0.0
        %4223 = vmatpush1.msra.mxu0 0.0
        %4224 = vmatprep.subr.mxu0 0.0
        %4225 = vmatpush1.msra.mxu0 0.0
        %4226 = vmatprep.subr.mxu0 0.0
        %4227 = vmatpush1.msra.mxu0 0.0
        %4228 = vmatprep.mubr.f32.mxu0 0.0
        %4229 = vmatmul.mubr.f32.gmra.mrb[0].mxu0 %v4159
        %v4230 = vpop.f32.mrb[0].mxu0
        %v4231 = vadd.f32 0.0, %v4230
        %v4232 = vpop.f32.mrb[0].mxu0
        %v4233 = vadd.f32 0.0, %v4232
        %4234 = vmatprep.mubr.f32.mxu0 0.0
        %4235 = vmatmul.mubr.f32.gmra.mrb[0].mxu0 %v4162
        %v4236 = vpop.f32.mrb[0].mxu0
        %v4237 = vadd.f32 0.0, %v4236
        %v4238 = vpop.f32.mrb[0].mxu0
        %v4239 = vadd.f32 0.0, %v4238
        %4240 = vdwg.mxu0
        %4241 = vmatprep.subr.mxu0 %v4233
        %4242 = vmatpush1.msra.mxu0 %v4231
        %4243 = vmatprep.subr.mxu0 %v4239
        %4244 = vmatpush1.msra.mxu0 %v4237
        %4245 = vmatprep.subr.mxu0 0.0
        %4246 = vmatpush1.msra.mxu0 0.0
        %4247 = vmatprep.subr.mxu0 0.0
        %4248 = vmatpush1.msra.mxu0 0.0
        %4249 = vmatprep.subr.mxu0 0.0
        %4250 = vmatpush1.msra.mxu0 0.0
        %4251 = vmatprep.subr.mxu0 0.0
        %4252 = vmatpush1.msra.mxu0 0.0
        %4253 = vmatprep.subr.mxu0 0.0
        %4254 = vmatpush1.msra.mxu0 0.0
        %4255 = vmatprep.subr.mxu0 0.0
        %4256 = vmatpush1.msra.mxu0 0.0
        %4257 = vmatprep.subr.mxu0 0.0
        %4258 = vmatpush1.msra.mxu0 0.0
        %4259 = vmatprep.subr.mxu0 0.0
        %4260 = vmatpush1.msra.mxu0 0.0
        %4261 = vmatprep.subr.mxu0 0.0
        %4262 = vmatpush1.msra.mxu0 0.0
        %4263 = vmatprep.subr.mxu0 0.0
        %4264 = vmatpush1.msra.mxu0 0.0
        %4265 = vmatprep.subr.mxu0 0.0
        %4266 = vmatpush1.msra.mxu0 0.0
        %4267 = vmatprep.subr.mxu0 0.0
        %4268 = vmatpush1.msra.mxu0 0.0
        %4269 = vmatprep.subr.mxu0 0.0
        %4270 = vmatpush1.msra.mxu0 0.0
        %4271 = vmatprep.subr.mxu0 0.0
        %4272 = vmatpush1.msra.mxu0 0.0
        %4273 = vmatprep.subr.mxu0 0.0
        %4274 = vmatpush1.msra.mxu0 0.0
        %4275 = vmatprep.subr.mxu0 0.0
        %4276 = vmatpush1.msra.mxu0 0.0
        %4277 = vmatprep.subr.mxu0 0.0
        %4278 = vmatpush1.msra.mxu0 0.0
        %4279 = vmatprep.subr.mxu0 0.0
        %4280 = vmatpush1.msra.mxu0 0.0
        %4281 = vmatprep.subr.mxu0 0.0
        %4282 = vmatpush1.msra.mxu0 0.0
        %4283 = vmatprep.subr.mxu0 0.0
        %4284 = vmatpush1.msra.mxu0 0.0
        %4285 = vmatprep.subr.mxu0 0.0
        %4286 = vmatpush1.msra.mxu0 0.0
        %4287 = vmatprep.subr.mxu0 0.0
        %4288 = vmatpush1.msra.mxu0 0.0
        %4289 = vmatprep.subr.mxu0 0.0
        %4290 = vmatpush1.msra.mxu0 0.0
        %4291 = vmatprep.subr.mxu0 0.0
        %4292 = vmatpush1.msra.mxu0 0.0
        %4293 = vmatprep.subr.mxu0 0.0
        %4294 = vmatpush1.msra.mxu0 0.0
        %4295 = vmatprep.subr.mxu0 0.0
        %4296 = vmatpush1.msra.mxu0 0.0
        %4297 = vmatprep.subr.mxu0 0.0
        %4298 = vmatpush1.msra.mxu0 0.0
        %4299 = vmatprep.subr.mxu0 0.0
        %4300 = vmatpush1.msra.mxu0 0.0
        %4301 = vmatprep.subr.mxu0 0.0
        %4302 = vmatpush1.msra.mxu0 0.0
        %4303 = vmatprep.subr.mxu0 0.0
        %4304 = vmatpush1.msra.mxu0 0.0
        %4305 = vmatprep.mubr.f32.mxu0 0.0
        %4306 = vmatmul.mubr.f32.gmra.mrb[0].mxu0 %v1724
        %v4307 = vpop.f32.mrb[0].mxu0
        %v4308 = vadd.f32 0.0, %v4307
        %v4309 = vpop.f32.mrb[0].mxu0
        %v4310 = vadd.f32 0.0, %v4309
        %4311 = vmatprep.mubr.f32.mxu0 0.0
        %4312 = vmatmul.mubr.f32.gmra.mrb[0].mxu0 %v1727
        %v4313 = vpop.f32.mrb[0].mxu0
        %v4314 = vadd.f32 0.0, %v4313
        %v4315 = vpop.f32.mrb[0].mxu0
        %v4316 = vadd.f32 0.0, %v4315
        %4317 = vdwg.mxu0
        %v4318 = vadd.f32 %v3272, %v4308
        %v4319 = vadd.f32 %v3273, %v4310
        %v4320 = vadd.f32 %v3274, %v4314
        %v4321 = vadd.f32 %v3275, %v4316
        %v4322 = vadd.f32 %v4318, %v4320
        %v4323 = vrot.slane %v4322, 4
        %v4324 = vadd.f32 %v4322, %v4323
        %v4325 = vrot.slane %v4324, 2
        %v4326 = vadd.f32 %v4324, %v4325
        %v4327 = vrot.slane %v4326, 1
        %v4328 = vadd.f32 %v4326, %v4327
        %v4329 = vadd.f32 %v4319, %v4321
        %v4330 = vrot.slane %v4329, 4
        %v4331 = vadd.f32 %v4329, %v4330
        %v4332 = vrot.slane %v4331, 2
        %v4333 = vadd.f32 %v4331, %v4332
        %v4334 = vrot.slane %v4333, 1
        %v4335 = vadd.f32 %v4333, %v4334
        %v4336 = vmul.f32 %v4328, %v406
        %v4337 = vmul.f32 %v4335, %v406
        %v4338 = vsub.f32 %v4318, %v4336
        %v4339 = vsub.f32 %v4319, %v4337
        %v4340 = vsub.f32 %v4320, %v4336
        %v4341 = vsub.f32 %v4321, %v4337
        %v4342 = vmul.f32 %v4338, %v4338
        %v4343 = vmul.f32 %v4339, %v4339
        %v4344 = vmul.f32 %v4340, %v4340
        %v4345 = vmul.f32 %v4341, %v4341
        %v4346 = vadd.f32 %v4342, %v4344
        %v4347 = vrot.slane %v4346, 4
        %v4348 = vadd.f32 %v4346, %v4347
        %v4349 = vrot.slane %v4348, 2
        %v4350 = vadd.f32 %v4348, %v4349
        %v4351 = vrot.slane %v4350, 1
        %v4352 = vadd.f32 %v4350, %v4351
        %v4353 = vadd.f32 %v4343, %v4345
        %v4354 = vrot.slane %v4353, 4
        %v4355 = vadd.f32 %v4353, %v4354
        %v4356 = vrot.slane %v4355, 2
        %v4357 = vadd.f32 %v4355, %v4356
        %v4358 = vrot.slane %v4357, 1
        %v4359 = vadd.f32 %v4357, %v4358
        %v4360 = vmul.f32 %v4352, %v406
        %v4361 = vmul.f32 %v4359, %v406
        %v4362 = vadd.f32 %v4360, 1e-05
        %v4363 = vadd.f32 %v4361, 1e-05
        %v4364 = vrsqrt.pop %v4362
        %v4365 = vrsqrt.pop %v4363
        %v4366 = vmul.f32 %v4338, %v4364
        %v4367 = vmul.f32 %v4339, %v4365
        %v4368 = vmul.f32 %v4340, %v4364
        %v4369 = vmul.f32 %v4341, %v4365
        %v4370 = vmul.f32 %v4366, %v1860
        %v4371 = vmul.f32 %v4367, %v1860
        %v4372 = vmul.f32 %v4368, %v1864
        %v4373 = vmul.f32 %v4369, %v1864
        %v4374 = vadd.f32 %v4370, %v1872
        %v4375 = vadd.f32 %v4371, %v1872
        %v4376 = vadd.f32 %v4372, %v1876
        %v4377 = vadd.f32 %v4373, %v1876
        %4378 = vmatprep.subr.mxu0 %v4375
        %4379 = vmatpush1.msra.mxu0 %v4374
        %4380 = vmatprep.subr.mxu0 %v4377
        %4381 = vmatpush1.msra.mxu0 %v4376
        %4382 = vmatprep.subr.mxu0 0.0
        %4383 = vmatpush1.msra.mxu0 0.0
        %4384 = vmatprep.subr.mxu0 0.0
        %4385 = vmatpush1.msra.mxu0 0.0
        %4386 = vmatprep.subr.mxu0 0.0
        %4387 = vmatpush1.msra.mxu0 0.0
        %4388 = vmatprep.subr.mxu0 0.0
        %4389 = vmatpush1.msra.mxu0 0.0
        %4390 = vmatprep.subr.mxu0 0.0
        %4391 = vmatpush1.msra.mxu0 0.0
        %4392 = vmatprep.subr.mxu0 0.0
        %4393 = vmatpush1.msra.mxu0 0.0
        %4394 = vmatprep.subr.mxu0 0.0
        %4395 = vmatpush1.msra.mxu0 0.0
        %4396 = vmatprep.subr.mxu0 0.0
        %4397 = vmatpush1.msra.mxu0 0.0
        %4398 = vmatprep.subr.mxu0 0.0
        %4399 = vmatpush1.msra.mxu0 0.0
        %4400 = vmatprep.subr.mxu0 0.0
        %4401 = vmatpush1.msra.mxu0 0.0
        %4402 = vmatprep.subr.mxu0 0.0
        %4403 = vmatpush1.msra.mxu0 0.0
        %4404 = vmatprep.subr.mxu0 0.0
        %4405 = vmatpush1.msra.mxu0 0.0
        %4406 = vmatprep.subr.mxu0 0.0
        %4407 = vmatpush1.msra.mxu0 0.0
        %4408 = vmatprep.subr.mxu0 0.0
        %4409 = vmatpush1.msra.mxu0 0.0
        %4410 = vmatprep.subr.mxu0 0.0
        %4411 = vmatpush1.msra.mxu0 0.0
        %4412 = vmatprep.subr.mxu0 0.0
        %4413 = vmatpush1.msra.mxu0 0.0
        %4414 = vmatprep.subr.mxu0 0.0
        %4415 = vmatpush1.msra.mxu0 0.0
        %4416 = vmatprep.subr.mxu0 0.0
        %4417 = vmatpush1.msra.mxu0 0.0
        %4418 = vmatprep.subr.mxu0 0.0
        %4419 = vmatpush1.msra.mxu0 0.0
        %4420 = vmatprep.subr.mxu0 0.0
        %4421 = vmatpush1.msra.mxu0 0.0
        %4422 = vmatprep.subr.mxu0 0.0
        %4423 = vmatpush1.msra.mxu0 0.0
        %4424 = vmatprep.subr.mxu0 0.0
        %4425 = vmatpush1.msra.mxu0 0.0
        %4426 = vmatprep.subr.mxu0 0.0
        %4427 = vmatpush1.msra.mxu0 0.0
        %4428 = vmatprep.subr.mxu0 0.0
        %4429 = vmatpush1.msra.mxu0 0.0
        %4430 = vmatprep.subr.mxu0 0.0
        %4431 = vmatpush1.msra.mxu0 0.0
        %4432 = vmatprep.subr.mxu0 0.0
        %4433 = vmatpush1.msra.mxu0 0.0
        %4434 = vmatprep.subr.mxu0 0.0
        %4435 = vmatpush1.msra.mxu0 0.0
        %4436 = vmatprep.subr.mxu0 0.0
        %4437 = vmatpush1.msra.mxu0 0.0
        %4438 = vmatprep.subr.mxu0 0.0
        %4439 = vmatpush1.msra.mxu0 0.0
        %4440 = vmatprep.subr.mxu0 0.0
        %4441 = vmatpush1.msra.mxu0 0.0
        %4442 = vmatprep.mubr.f32.mxu0 0.0
        %4443 = vmatmul.mubr.f32.gmra.mrb[0].mxu0 %v1883
        %v4444 = vpop.f32.mrb[0].mxu0
        %v4445 = vadd.f32 0.0, %v4444
        %v4446 = vpop.f32.mrb[0].mxu0
        %v4447 = vadd.f32 0.0, %v4446
        %4448 = vmatprep.mubr.f32.mxu0 0.0
        %4449 = vmatmul.mubr.f32.gmra.mrb[0].mxu0 %v1886
        %v4450 = vpop.f32.mrb[0].mxu0
        %v4451 = vadd.f32 0.0, %v4450
        %v4452 = vpop.f32.mrb[0].mxu0
        %v4453 = vadd.f32 0.0, %v4452
        %4454 = vmatprep.mubr.f32.mxu0 0.0
        %4455 = vmatmul.mubr.f32.gmra.mrb[0].mxu0 %v1889
        %v4456 = vpop.f32.mrb[0].mxu0
        %v4457 = vadd.f32 0.0, %v4456
        %v4458 = vpop.f32.mrb[0].mxu0
        %v4459 = vadd.f32 0.0, %v4458
        %4460 = vmatprep.mubr.f32.mxu0 0.0
        %4461 = vmatmul.mubr.f32.gmra.mrb[0].mxu0 %v1892
        %v4462 = vpop.f32.mrb[0].mxu0
        %v4463 = vadd.f32 0.0, %v4462
        %v4464 = vpop.f32.mrb[0].mxu0
        %v4465 = vadd.f32 0.0, %v4464
        %4466 = vmatprep.mubr.f32.mxu0 0.0
        %4467 = vmatmul.mubr.f32.gmra.mrb[0].mxu0 %v1895
        %v4468 = vpop.f32.mrb[0].mxu0
        %v4469 = vadd.f32 0.0, %v4468
        %v4470 = vpop.f32.mrb[0].mxu0
        %v4471 = vadd.f32 0.0, %v4470
        %4472 = vmatprep.mubr.f32.mxu0 0.0
        %4473 = vmatmul.mubr.f32.gmra.mrb[0].mxu0 %v1898
        %v4474 = vpop.f32.mrb[0].mxu0
        %v4475 = vadd.f32 0.0, %v4474
        %v4476 = vpop.f32.mrb[0].mxu0
        %v4477 = vadd.f32 0.0, %v4476
        %4478 = vmatprep.mubr.f32.mxu0 0.0
        %4479 = vmatmul.mubr.f32.gmra.mrb[0].mxu0 %v1901
        %v4480 = vpop.f32.mrb[0].mxu0
        %v4481 = vadd.f32 0.0, %v4480
        %v4482 = vpop.f32.mrb[0].mxu0
        %v4483 = vadd.f32 0.0, %v4482
        %4484 = vmatprep.mubr.f32.mxu0 0.0
        %4485 = vmatmul.mubr.f32.gmra.mrb[0].mxu0 %v1904
        %v4486 = vpop.f32.mrb[0].mxu0
        %v4487 = vadd.f32 0.0, %v4486
        %v4488 = vpop.f32.mrb[0].mxu0
        %v4489 = vadd.f32 0.0, %v4488
        %4490 = vdwg.mxu0
        %v4491 = vmul.f32 %v2022, %v4445
        %v4492 = vmul.f32 %v2022, %v4447
        %v4493 = vmul.f32 %v2027, %v4451
        %v4494 = vmul.f32 %v2027, %v4453
        %v4495 = vmul.f32 %v2032, %v4457
        %v4496 = vmul.f32 %v2032, %v4459
        %v4497 = vmul.f32 %v2037, %v4463
        %v4498 = vmul.f32 %v2037, %v4465
        %v4499 = vmul.f32 %v2042, %v4469
        %v4500 = vmul.f32 %v2042, %v4471
        %v4501 = vmul.f32 %v2047, %v4475
        %v4502 = vmul.f32 %v2047, %v4477
        %v4503 = vmul.f32 %v2052, %v4481
        %v4504 = vmul.f32 %v2052, %v4483
        %v4505 = vmul.f32 %v2057, %v4487
        %v4506 = vmul.f32 %v2057, %v4489
        %4507 = vrot.lane.b32.xlu0 %v4445, 17
        %v4508 = vpop.permute.xlu0 %4507
        %4509 = vrot.lane.b32.xlu0 %v4451, 17
        %v4510 = vpop.permute.xlu0 %4509
        %4511 = vrot.lane.b32.xlu0 %v4457, 17
        %v4512 = vpop.permute.xlu0 %4511
        %4513 = vrot.lane.b32.xlu0 %v4463, 17
        %v4514 = vpop.permute.xlu0 %4513
        %4515 = vrot.lane.b32.xlu0 %v4469, 17
        %v4516 = vpop.permute.xlu0 %4515
        %4517 = vrot.lane.b32.xlu0 %v4475, 17
        %v4518 = vpop.permute.xlu0 %4517
        %4519 = vrot.lane.b32.xlu0 %v4481, 17
        %v4520 = vpop.permute.xlu0 %4519
        %4521 = vrot.lane.b32.xlu0 %v4487, 17
        %v4522 = vpop.permute.xlu0 %4521
        %4523 = vrot.lane.b32.xlu0 %v4447, 17
        %v4524 = vpop.permute.xlu0 %4523
        %4525 = vrot.lane.b32.xlu0 %v4453, 17
        %v4526 = vpop.permute.xlu0 %4525
        %4527 = vrot.lane.b32.xlu0 %v4459, 17
        %v4528 = vpop.permute.xlu0 %4527
        %4529 = vrot.lane.b32.xlu0 %v4465, 17
        %v4530 = vpop.permute.xlu0 %4529
        %4531 = vrot.lane.b32.xlu0 %v4471, 17
        %v4532 = vpop.permute.xlu0 %4531
        %4533 = vrot.lane.b32.xlu0 %v4477, 17
        %v4534 = vpop.permute.xlu0 %4533
        %4535 = vrot.lane.b32.xlu0 %v4483, 17
        %v4536 = vpop.permute.xlu0 %4535
        %4537 = vrot.lane.b32.xlu0 %v4489, 17
        %v4538 = vpop.permute.xlu0 %4537
        %v4539 = vsel %vm655, %v4508, %v4524
        %v4540 = vsel %vm655, %v4510, %v4526
        %v4541 = vsel %vm655, %v4512, %v4528
        %v4542 = vsel %vm655, %v4514, %v4530
        %v4543 = vsel %vm655, %v4516, %v4532
        %v4544 = vsel %vm655, %v4518, %v4534
        %v4545 = vsel %vm655, %v4520, %v4536
        %v4546 = vsel %vm655, %v4522, %v4538
        %v4547 = vsel %vm655, %v4524, %v4508
        %v4548 = vsel %vm655, %v4526, %v4510
        %v4549 = vsel %vm655, %v4528, %v4512
        %v4550 = vsel %vm655, %v4530, %v4514
        %v4551 = vsel %vm655, %v4532, %v4516
        %v4552 = vsel %vm655, %v4534, %v4518
        %v4553 = vsel %vm655, %v4536, %v4520
        %v4554 = vsel %vm655, %v4538, %v4522
        %v4555 = vmul.f32 %v672, %v4547
        %v4556 = vmul.f32 %v676, %v4539
        %v4557 = vmul.f32 %v672, %v4548
        %v4558 = vmul.f32 %v676, %v4540
        %v4559 = vmul.f32 %v672, %v4549
        %v4560 = vmul.f32 %v676, %v4541
        %v4561 = vmul.f32 %v672, %v4550
        %v4562 = vmul.f32 %v676, %v4542
        %v4563 = vmul.f32 %v672, %v4551
        %v4564 = vmul.f32 %v676, %v4543
        %v4565 = vmul.f32 %v672, %v4552
        %v4566 = vmul.f32 %v676, %v4544
        %v4567 = vmul.f32 %v672, %v4553
        %v4568 = vmul.f32 %v676, %v4545
        %v4569 = vmul.f32 %v672, %v4554
        %v4570 = vmul.f32 %v676, %v4546
        %v4571 = vmul.f32 %v2141, %v4555
        %v4572 = vmul.f32 %v2141, %v4556
        %v4573 = vmul.f32 %v2145, %v4557
        %v4574 = vmul.f32 %v2145, %v4558
        %v4575 = vmul.f32 %v2149, %v4559
        %v4576 = vmul.f32 %v2149, %v4560
        %v4577 = vmul.f32 %v2153, %v4561
        %v4578 = vmul.f32 %v2153, %v4562
        %v4579 = vmul.f32 %v2157, %v4563
        %v4580 = vmul.f32 %v2157, %v4564
        %v4581 = vmul.f32 %v2161, %v4565
        %v4582 = vmul.f32 %v2161, %v4566
        %v4583 = vmul.f32 %v2165, %v4567
        %v4584 = vmul.f32 %v2165, %v4568
        %v4585 = vmul.f32 %v2169, %v4569
        %v4586 = vmul.f32 %v2169, %v4570
        %v4587 = vadd.f32 %v4491, %v4571
        %v4588 = vadd.f32 %v4492, %v4572
        %v4589 = vadd.f32 %v4493, %v4573
        %v4590 = vadd.f32 %v4494, %v4574
        %v4591 = vadd.f32 %v4495, %v4575
        %v4592 = vadd.f32 %v4496, %v4576
        %v4593 = vadd.f32 %v4497, %v4577
        %v4594 = vadd.f32 %v4498, %v4578
        %v4595 = vadd.f32 %v4499, %v4579
        %v4596 = vadd.f32 %v4500, %v4580
        %v4597 = vadd.f32 %v4501, %v4581
        %v4598 = vadd.f32 %v4502, %v4582
        %v4599 = vadd.f32 %v4503, %v4583
        %v4600 = vadd.f32 %v4504, %v4584
        %v4601 = vadd.f32 %v4505, %v4585
        %v4602 = vadd.f32 %v4506, %v4586
        %4603 = vrot.lane.b32.xlu0 %v4445, 16
        %v4604 = vpop.permute.xlu0 %4603
        %4605 = vrot.lane.b32.xlu0 %v4451, 16
        %v4606 = vpop.permute.xlu0 %4605
        %4607 = vrot.lane.b32.xlu0 %v4457, 16
        %v4608 = vpop.permute.xlu0 %4607
        %4609 = vrot.lane.b32.xlu0 %v4463, 16
        %v4610 = vpop.permute.xlu0 %4609
        %4611 = vrot.lane.b32.xlu0 %v4469, 16
        %v4612 = vpop.permute.xlu0 %4611
        %4613 = vrot.lane.b32.xlu0 %v4475, 16
        %v4614 = vpop.permute.xlu0 %4613
        %4615 = vrot.lane.b32.xlu0 %v4481, 16
        %v4616 = vpop.permute.xlu0 %4615
        %4617 = vrot.lane.b32.xlu0 %v4487, 16
        %v4618 = vpop.permute.xlu0 %4617
        %4619 = vrot.lane.b32.xlu0 %v4447, 16
        %v4620 = vpop.permute.xlu0 %4619
        %4621 = vrot.lane.b32.xlu0 %v4453, 16
        %v4622 = vpop.permute.xlu0 %4621
        %4623 = vrot.lane.b32.xlu0 %v4459, 16
        %v4624 = vpop.permute.xlu0 %4623
        %4625 = vrot.lane.b32.xlu0 %v4465, 16
        %v4626 = vpop.permute.xlu0 %4625
        %4627 = vrot.lane.b32.xlu0 %v4471, 16
        %v4628 = vpop.permute.xlu0 %4627
        %4629 = vrot.lane.b32.xlu0 %v4477, 16
        %v4630 = vpop.permute.xlu0 %4629
        %4631 = vrot.lane.b32.xlu0 %v4483, 16
        %v4632 = vpop.permute.xlu0 %4631
        %4633 = vrot.lane.b32.xlu0 %v4489, 16
        %v4634 = vpop.permute.xlu0 %4633
        %v4635 = vsel %vm763, %v4604, %v4620
        %v4636 = vsel %vm763, %v4606, %v4622
        %v4637 = vsel %vm763, %v4608, %v4624
        %v4638 = vsel %vm763, %v4610, %v4626
        %v4639 = vsel %vm763, %v4612, %v4628
        %v4640 = vsel %vm763, %v4614, %v4630
        %v4641 = vsel %vm763, %v4616, %v4632
        %v4642 = vsel %vm763, %v4618, %v4634
        %v4643 = vsel %vm763, %v4620, %v4604
        %v4644 = vsel %vm763, %v4622, %v4606
        %v4645 = vsel %vm763, %v4624, %v4608
        %v4646 = vsel %vm763, %v4626, %v4610
        %v4647 = vsel %vm763, %v4628, %v4612
        %v4648 = vsel %vm763, %v4630, %v4614
        %v4649 = vsel %vm763, %v4632, %v4616
        %v4650 = vsel %vm763, %v4634, %v4618
        %v4651 = vmul.f32 %v780, %v4643
        %v4652 = vmul.f32 %v784, %v4635
        %v4653 = vmul.f32 %v780, %v4644
        %v4654 = vmul.f32 %v784, %v4636
        %v4655 = vmul.f32 %v780, %v4645
        %v4656 = vmul.f32 %v784, %v4637
        %v4657 = vmul.f32 %v780, %v4646
        %v4658 = vmul.f32 %v784, %v4638
        %v4659 = vmul.f32 %v780, %v4647
        %v4660 = vmul.f32 %v784, %v4639
        %v4661 = vmul.f32 %v780, %v4648
        %v4662 = vmul.f32 %v784, %v4640
        %v4663 = vmul.f32 %v780, %v4649
        %v4664 = vmul.f32 %v784, %v4641
        %v4665 = vmul.f32 %v780, %v4650
        %v4666 = vmul.f32 %v784, %v4642
        %v4667 = vmul.f32 %v2269, %v4651
        %v4668 = vmul.f32 %v2269, %v4652
        %v4669 = vmul.f32 %v2273, %v4653
        %v4670 = vmul.f32 %v2273, %v4654
        %v4671 = vmul.f32 %v2277, %v4655
        %v4672 = vmul.f32 %v2277, %v4656
        %v4673 = vmul.f32 %v2281, %v4657
        %v4674 = vmul.f32 %v2281, %v4658
        %v4675 = vmul.f32 %v2285, %v4659
        %v4676 = vmul.f32 %v2285, %v4660
        %v4677 = vmul.f32 %v2289, %v4661
        %v4678 = vmul.f32 %v2289, %v4662
        %v4679 = vmul.f32 %v2293, %v4663
        %v4680 = vmul.f32 %v2293, %v4664
        %v4681 = vmul.f32 %v2297, %v4665
        %v4682 = vmul.f32 %v2297, %v4666
        %v4683 = vadd.f32 %v4587, %v4667
        %v4684 = vadd.f32 %v4588, %v4668
        %v4685 = vadd.f32 %v4589, %v4669
        %v4686 = vadd.f32 %v4590, %v4670
        %v4687 = vadd.f32 %v4591, %v4671
        %v4688 = vadd.f32 %v4592, %v4672
        %v4689 = vadd.f32 %v4593, %v4673
        %v4690 = vadd.f32 %v4594, %v4674
        %v4691 = vadd.f32 %v4595, %v4675
        %v4692 = vadd.f32 %v4596, %v4676
        %v4693 = vadd.f32 %v4597, %v4677
        %v4694 = vadd.f32 %v4598, %v4678
        %v4695 = vadd.f32 %v4599, %v4679
        %v4696 = vadd.f32 %v4600, %v4680
        %v4697 = vadd.f32 %v4601, %v4681
        %v4698 = vadd.f32 %v4602, %v4682
        %4699 = vrot.lane.b32.xlu0 %v4445, 15
        %v4700 = vpop.permute.xlu0 %4699
        %4701 = vrot.lane.b32.xlu0 %v4451, 15
        %v4702 = vpop.permute.xlu0 %4701
        %4703 = vrot.lane.b32.xlu0 %v4457, 15
        %v4704 = vpop.permute.xlu0 %4703
        %4705 = vrot.lane.b32.xlu0 %v4463, 15
        %v4706 = vpop.permute.xlu0 %4705
        %4707 = vrot.lane.b32.xlu0 %v4469, 15
        %v4708 = vpop.permute.xlu0 %4707
        %4709 = vrot.lane.b32.xlu0 %v4475, 15
        %v4710 = vpop.permute.xlu0 %4709
        %4711 = vrot.lane.b32.xlu0 %v4481, 15
        %v4712 = vpop.permute.xlu0 %4711
        %4713 = vrot.lane.b32.xlu0 %v4487, 15
        %v4714 = vpop.permute.xlu0 %4713
        %4715 = vrot.lane.b32.xlu0 %v4447, 15
        %v4716 = vpop.permute.xlu0 %4715
        %4717 = vrot.lane.b32.xlu0 %v4453, 15
        %v4718 = vpop.permute.xlu0 %4717
        %4719 = vrot.lane.b32.xlu0 %v4459, 15
        %v4720 = vpop.permute.xlu0 %4719
        %4721 = vrot.lane.b32.xlu0 %v4465, 15
        %v4722 = vpop.permute.xlu0 %4721
        %4723 = vrot.lane.b32.xlu0 %v4471, 15
        %v4724 = vpop.permute.xlu0 %4723
        %4725 = vrot.lane.b32.xlu0 %v4477, 15
        %v4726 = vpop.permute.xlu0 %4725
        %4727 = vrot.lane.b32.xlu0 %v4483, 15
        %v4728 = vpop.permute.xlu0 %4727
        %4729 = vrot.lane.b32.xlu0 %v4489, 15
        %v4730 = vpop.permute.xlu0 %4729
        %v4731 = vsel %vm871, %v4700, %v4716
        %v4732 = vsel %vm871, %v4702, %v4718
        %v4733 = vsel %vm871, %v4704, %v4720
        %v4734 = vsel %vm871, %v4706, %v4722
        %v4735 = vsel %vm871, %v4708, %v4724
        %v4736 = vsel %vm871, %v4710, %v4726
        %v4737 = vsel %vm871, %v4712, %v4728
        %v4738 = vsel %vm871, %v4714, %v4730
        %v4739 = vsel %vm871, %v4716, %v4700
        %v4740 = vsel %vm871, %v4718, %v4702
        %v4741 = vsel %vm871, %v4720, %v4704
        %v4742 = vsel %vm871, %v4722, %v4706
        %v4743 = vsel %vm871, %v4724, %v4708
        %v4744 = vsel %vm871, %v4726, %v4710
        %v4745 = vsel %vm871, %v4728, %v4712
        %v4746 = vsel %vm871, %v4730, %v4714
        %v4747 = vmul.f32 %v888, %v4739
        %v4748 = vmul.f32 %v892, %v4731
        %v4749 = vmul.f32 %v888, %v4740
        %v4750 = vmul.f32 %v892, %v4732
        %v4751 = vmul.f32 %v888, %v4741
        %v4752 = vmul.f32 %v892, %v4733
        %v4753 = vmul.f32 %v888, %v4742
        %v4754 = vmul.f32 %v892, %v4734
        %v4755 = vmul.f32 %v888, %v4743
        %v4756 = vmul.f32 %v892, %v4735
        %v4757 = vmul.f32 %v888, %v4744
        %v4758 = vmul.f32 %v892, %v4736
        %v4759 = vmul.f32 %v888, %v4745
        %v4760 = vmul.f32 %v892, %v4737
        %v4761 = vmul.f32 %v888, %v4746
        %v4762 = vmul.f32 %v892, %v4738
        %v4763 = vmul.f32 %v2397, %v4747
        %v4764 = vmul.f32 %v2397, %v4748
        %v4765 = vmul.f32 %v2401, %v4749
        %v4766 = vmul.f32 %v2401, %v4750
        %v4767 = vmul.f32 %v2405, %v4751
        %v4768 = vmul.f32 %v2405, %v4752
        %v4769 = vmul.f32 %v2409, %v4753
        %v4770 = vmul.f32 %v2409, %v4754
        %v4771 = vmul.f32 %v2413, %v4755
        %v4772 = vmul.f32 %v2413, %v4756
        %v4773 = vmul.f32 %v2417, %v4757
        %v4774 = vmul.f32 %v2417, %v4758
        %v4775 = vmul.f32 %v2421, %v4759
        %v4776 = vmul.f32 %v2421, %v4760
        %v4777 = vmul.f32 %v2425, %v4761
        %v4778 = vmul.f32 %v2425, %v4762
        %v4779 = vadd.f32 %v4683, %v4763
        %v4780 = vadd.f32 %v4684, %v4764
        %v4781 = vadd.f32 %v4685, %v4765
        %v4782 = vadd.f32 %v4686, %v4766
        %v4783 = vadd.f32 %v4687, %v4767
        %v4784 = vadd.f32 %v4688, %v4768
        %v4785 = vadd.f32 %v4689, %v4769
        %v4786 = vadd.f32 %v4690, %v4770
        %v4787 = vadd.f32 %v4691, %v4771
        %v4788 = vadd.f32 %v4692, %v4772
        %v4789 = vadd.f32 %v4693, %v4773
        %v4790 = vadd.f32 %v4694, %v4774
        %v4791 = vadd.f32 %v4695, %v4775
        %v4792 = vadd.f32 %v4696, %v4776
        %v4793 = vadd.f32 %v4697, %v4777
        %v4794 = vadd.f32 %v4698, %v4778
        %4795 = vrot.lane.b32.xlu0 %v4445, 1
        %v4796 = vpop.permute.xlu0 %4795
        %4797 = vrot.lane.b32.xlu0 %v4451, 1
        %v4798 = vpop.permute.xlu0 %4797
        %4799 = vrot.lane.b32.xlu0 %v4457, 1
        %v4800 = vpop.permute.xlu0 %4799
        %4801 = vrot.lane.b32.xlu0 %v4463, 1
        %v4802 = vpop.permute.xlu0 %4801
        %4803 = vrot.lane.b32.xlu0 %v4469, 1
        %v4804 = vpop.permute.xlu0 %4803
        %4805 = vrot.lane.b32.xlu0 %v4475, 1
        %v4806 = vpop.permute.xlu0 %4805
        %4807 = vrot.lane.b32.xlu0 %v4481, 1
        %v4808 = vpop.permute.xlu0 %4807
        %4809 = vrot.lane.b32.xlu0 %v4487, 1
        %v4810 = vpop.permute.xlu0 %4809
        %4811 = vrot.lane.b32.xlu0 %v4447, 1
        %v4812 = vpop.permute.xlu0 %4811
        %4813 = vrot.lane.b32.xlu0 %v4453, 1
        %v4814 = vpop.permute.xlu0 %4813
        %4815 = vrot.lane.b32.xlu0 %v4459, 1
        %v4816 = vpop.permute.xlu0 %4815
        %4817 = vrot.lane.b32.xlu0 %v4465, 1
        %v4818 = vpop.permute.xlu0 %4817
        %4819 = vrot.lane.b32.xlu0 %v4471, 1
        %v4820 = vpop.permute.xlu0 %4819
        %4821 = vrot.lane.b32.xlu0 %v4477, 1
        %v4822 = vpop.permute.xlu0 %4821
        %4823 = vrot.lane.b32.xlu0 %v4483, 1
        %v4824 = vpop.permute.xlu0 %4823
        %4825 = vrot.lane.b32.xlu0 %v4489, 1
        %v4826 = vpop.permute.xlu0 %4825
        %v4827 = vsel %vm979, %v4796, %v4812
        %v4828 = vsel %vm979, %v4798, %v4814
        %v4829 = vsel %vm979, %v4800, %v4816
        %v4830 = vsel %vm979, %v4802, %v4818
        %v4831 = vsel %vm979, %v4804, %v4820
        %v4832 = vsel %vm979, %v4806, %v4822
        %v4833 = vsel %vm979, %v4808, %v4824
        %v4834 = vsel %vm979, %v4810, %v4826
        %v4835 = vsel %vm979, %v4812, %v4796
        %v4836 = vsel %vm979, %v4814, %v4798
        %v4837 = vsel %vm979, %v4816, %v4800
        %v4838 = vsel %vm979, %v4818, %v4802
        %v4839 = vsel %vm979, %v4820, %v4804
        %v4840 = vsel %vm979, %v4822, %v4806
        %v4841 = vsel %vm979, %v4824, %v4808
        %v4842 = vsel %vm979, %v4826, %v4810
        %v4843 = vmul.f32 %v996, %v4835
        %v4844 = vmul.f32 %v1000, %v4827
        %v4845 = vmul.f32 %v996, %v4836
        %v4846 = vmul.f32 %v1000, %v4828
        %v4847 = vmul.f32 %v996, %v4837
        %v4848 = vmul.f32 %v1000, %v4829
        %v4849 = vmul.f32 %v996, %v4838
        %v4850 = vmul.f32 %v1000, %v4830
        %v4851 = vmul.f32 %v996, %v4839
        %v4852 = vmul.f32 %v1000, %v4831
        %v4853 = vmul.f32 %v996, %v4840
        %v4854 = vmul.f32 %v1000, %v4832
        %v4855 = vmul.f32 %v996, %v4841
        %v4856 = vmul.f32 %v1000, %v4833
        %v4857 = vmul.f32 %v996, %v4842
        %v4858 = vmul.f32 %v1000, %v4834
        %v4859 = vmul.f32 %v2525, %v4843
        %v4860 = vmul.f32 %v2525, %v4844
        %v4861 = vmul.f32 %v2529, %v4845
        %v4862 = vmul.f32 %v2529, %v4846
        %v4863 = vmul.f32 %v2533, %v4847
        %v4864 = vmul.f32 %v2533, %v4848
        %v4865 = vmul.f32 %v2537, %v4849
        %v4866 = vmul.f32 %v2537, %v4850
        %v4867 = vmul.f32 %v2541, %v4851
        %v4868 = vmul.f32 %v2541, %v4852
        %v4869 = vmul.f32 %v2545, %v4853
        %v4870 = vmul.f32 %v2545, %v4854
        %v4871 = vmul.f32 %v2549, %v4855
        %v4872 = vmul.f32 %v2549, %v4856
        %v4873 = vmul.f32 %v2553, %v4857
        %v4874 = vmul.f32 %v2553, %v4858
        %v4875 = vadd.f32 %v4779, %v4859
        %v4876 = vadd.f32 %v4780, %v4860
        %v4877 = vadd.f32 %v4781, %v4861
        %v4878 = vadd.f32 %v4782, %v4862
        %v4879 = vadd.f32 %v4783, %v4863
        %v4880 = vadd.f32 %v4784, %v4864
        %v4881 = vadd.f32 %v4785, %v4865
        %v4882 = vadd.f32 %v4786, %v4866
        %v4883 = vadd.f32 %v4787, %v4867
        %v4884 = vadd.f32 %v4788, %v4868
        %v4885 = vadd.f32 %v4789, %v4869
        %v4886 = vadd.f32 %v4790, %v4870
        %v4887 = vadd.f32 %v4791, %v4871
        %v4888 = vadd.f32 %v4792, %v4872
        %v4889 = vadd.f32 %v4793, %v4873
        %v4890 = vadd.f32 %v4794, %v4874
        %4891 = vrot.lane.b32.xlu0 %v4445, 127
        %v4892 = vpop.permute.xlu0 %4891
        %4893 = vrot.lane.b32.xlu0 %v4451, 127
        %v4894 = vpop.permute.xlu0 %4893
        %4895 = vrot.lane.b32.xlu0 %v4457, 127
        %v4896 = vpop.permute.xlu0 %4895
        %4897 = vrot.lane.b32.xlu0 %v4463, 127
        %v4898 = vpop.permute.xlu0 %4897
        %4899 = vrot.lane.b32.xlu0 %v4469, 127
        %v4900 = vpop.permute.xlu0 %4899
        %4901 = vrot.lane.b32.xlu0 %v4475, 127
        %v4902 = vpop.permute.xlu0 %4901
        %4903 = vrot.lane.b32.xlu0 %v4481, 127
        %v4904 = vpop.permute.xlu0 %4903
        %4905 = vrot.lane.b32.xlu0 %v4487, 127
        %v4906 = vpop.permute.xlu0 %4905
        %4907 = vrot.lane.b32.xlu0 %v4447, 127
        %v4908 = vpop.permute.xlu0 %4907
        %4909 = vrot.lane.b32.xlu0 %v4453, 127
        %v4910 = vpop.permute.xlu0 %4909
        %4911 = vrot.lane.b32.xlu0 %v4459, 127
        %v4912 = vpop.permute.xlu0 %4911
        %4913 = vrot.lane.b32.xlu0 %v4465, 127
        %v4914 = vpop.permute.xlu0 %4913
        %4915 = vrot.lane.b32.xlu0 %v4471, 127
        %v4916 = vpop.permute.xlu0 %4915
        %4917 = vrot.lane.b32.xlu0 %v4477, 127
        %v4918 = vpop.permute.xlu0 %4917
        %4919 = vrot.lane.b32.xlu0 %v4483, 127
        %v4920 = vpop.permute.xlu0 %4919
        %4921 = vrot.lane.b32.xlu0 %v4489, 127
        %v4922 = vpop.permute.xlu0 %4921
        %v4923 = vsel %vm1087, %v4892, %v4908
        %v4924 = vsel %vm1087, %v4894, %v4910
        %v4925 = vsel %vm1087, %v4896, %v4912
        %v4926 = vsel %vm1087, %v4898, %v4914
        %v4927 = vsel %vm1087, %v4900, %v4916
        %v4928 = vsel %vm1087, %v4902, %v4918
        %v4929 = vsel %vm1087, %v4904, %v4920
        %v4930 = vsel %vm1087, %v4906, %v4922
        %v4931 = vsel %vm1087, %v4908, %v4892
        %v4932 = vsel %vm1087, %v4910, %v4894
        %v4933 = vsel %vm1087, %v4912, %v4896
        %v4934 = vsel %vm1087, %v4914, %v4898
        %v4935 = vsel %vm1087, %v4916, %v4900
        %v4936 = vsel %vm1087, %v4918, %v4902
        %v4937 = vsel %vm1087, %v4920, %v4904
        %v4938 = vsel %vm1087, %v4922, %v4906
        %v4939 = vmul.f32 %v1104, %v4923
        %v4940 = vmul.f32 %v1108, %v4931
        %v4941 = vmul.f32 %v1104, %v4924
        %v4942 = vmul.f32 %v1108, %v4932
        %v4943 = vmul.f32 %v1104, %v4925
        %v4944 = vmul.f32 %v1108, %v4933
        %v4945 = vmul.f32 %v1104, %v4926
        %v4946 = vmul.f32 %v1108, %v4934
        %v4947 = vmul.f32 %v1104, %v4927
        %v4948 = vmul.f32 %v1108, %v4935
        %v4949 = vmul.f32 %v1104, %v4928
        %v4950 = vmul.f32 %v1108, %v4936
        %v4951 = vmul.f32 %v1104, %v4929
        %v4952 = vmul.f32 %v1108, %v4937
        %v4953 = vmul.f32 %v1104, %v4930
        %v4954 = vmul.f32 %v1108, %v4938
        %v4955 = vmul.f32 %v2653, %v4939
        %v4956 = vmul.f32 %v2653, %v4940
        %v4957 = vmul.f32 %v2657, %v4941
        %v4958 = vmul.f32 %v2657, %v4942
        %v4959 = vmul.f32 %v2661, %v4943
        %v4960 = vmul.f32 %v2661, %v4944
        %v4961 = vmul.f32 %v2665, %v4945
        %v4962 = vmul.f32 %v2665, %v4946
        %v4963 = vmul.f32 %v2669, %v4947
        %v4964 = vmul.f32 %v2669, %v4948
        %v4965 = vmul.f32 %v2673, %v4949
        %v4966 = vmul.f32 %v2673, %v4950
        %v4967 = vmul.f32 %v2677, %v4951
        %v4968 = vmul.f32 %v2677, %v4952
        %v4969 = vmul.f32 %v2681, %v4953
        %v4970 = vmul.f32 %v2681, %v4954
        %v4971 = vadd.f32 %v4875, %v4955
        %v4972 = vadd.f32 %v4876, %v4956
        %v4973 = vadd.f32 %v4877, %v4957
        %v4974 = vadd.f32 %v4878, %v4958
        %v4975 = vadd.f32 %v4879, %v4959
        %v4976 = vadd.f32 %v4880, %v4960
        %v4977 = vadd.f32 %v4881, %v4961
        %v4978 = vadd.f32 %v4882, %v4962
        %v4979 = vadd.f32 %v4883, %v4963
        %v4980 = vadd.f32 %v4884, %v4964
        %v4981 = vadd.f32 %v4885, %v4965
        %v4982 = vadd.f32 %v4886, %v4966
        %v4983 = vadd.f32 %v4887, %v4967
        %v4984 = vadd.f32 %v4888, %v4968
        %v4985 = vadd.f32 %v4889, %v4969
        %v4986 = vadd.f32 %v4890, %v4970
        %4987 = vrot.lane.b32.xlu0 %v4445, 113
        %v4988 = vpop.permute.xlu0 %4987
        %4989 = vrot.lane.b32.xlu0 %v4451, 113
        %v4990 = vpop.permute.xlu0 %4989
        %4991 = vrot.lane.b32.xlu0 %v4457, 113
        %v4992 = vpop.permute.xlu0 %4991
        %4993 = vrot.lane.b32.xlu0 %v4463, 113
        %v4994 = vpop.permute.xlu0 %4993
        %4995 = vrot.lane.b32.xlu0 %v4469, 113
        %v4996 = vpop.permute.xlu0 %4995
        %4997 = vrot.lane.b32.xlu0 %v4475, 113
        %v4998 = vpop.permute.xlu0 %4997
        %4999 = vrot.lane.b32.xlu0 %v4481, 113
        %v5000 = vpop.permute.xlu0 %4999
        %5001 = vrot.lane.b32.xlu0 %v4487, 113
        %v5002 = vpop.permute.xlu0 %5001
        %5003 = vrot.lane.b32.xlu0 %v4447, 113
        %v5004 = vpop.permute.xlu0 %5003
        %5005 = vrot.lane.b32.xlu0 %v4453, 113
        %v5006 = vpop.permute.xlu0 %5005
        %5007 = vrot.lane.b32.xlu0 %v4459, 113
        %v5008 = vpop.permute.xlu0 %5007
        %5009 = vrot.lane.b32.xlu0 %v4465, 113
        %v5010 = vpop.permute.xlu0 %5009
        %5011 = vrot.lane.b32.xlu0 %v4471, 113
        %v5012 = vpop.permute.xlu0 %5011
        %5013 = vrot.lane.b32.xlu0 %v4477, 113
        %v5014 = vpop.permute.xlu0 %5013
        %5015 = vrot.lane.b32.xlu0 %v4483, 113
        %v5016 = vpop.permute.xlu0 %5015
        %5017 = vrot.lane.b32.xlu0 %v4489, 113
        %v5018 = vpop.permute.xlu0 %5017
        %v5019 = vsel %vm1195, %v4988, %v5004
        %v5020 = vsel %vm1195, %v4990, %v5006
        %v5021 = vsel %vm1195, %v4992, %v5008
        %v5022 = vsel %vm1195, %v4994, %v5010
        %v5023 = vsel %vm1195, %v4996, %v5012
        %v5024 = vsel %vm1195, %v4998, %v5014
        %v5025 = vsel %vm1195, %v5000, %v5016
        %v5026 = vsel %vm1195, %v5002, %v5018
        %v5027 = vsel %vm1195, %v5004, %v4988
        %v5028 = vsel %vm1195, %v5006, %v4990
        %v5029 = vsel %vm1195, %v5008, %v4992
        %v5030 = vsel %vm1195, %v5010, %v4994
        %v5031 = vsel %vm1195, %v5012, %v4996
        %v5032 = vsel %vm1195, %v5014, %v4998
        %v5033 = vsel %vm1195, %v5016, %v5000
        %v5034 = vsel %vm1195, %v5018, %v5002
        %v5035 = vmul.f32 %v1212, %v5019
        %v5036 = vmul.f32 %v1216, %v5027
        %v5037 = vmul.f32 %v1212, %v5020
        %v5038 = vmul.f32 %v1216, %v5028
        %v5039 = vmul.f32 %v1212, %v5021
        %v5040 = vmul.f32 %v1216, %v5029
        %v5041 = vmul.f32 %v1212, %v5022
        %v5042 = vmul.f32 %v1216, %v5030
        %v5043 = vmul.f32 %v1212, %v5023
        %v5044 = vmul.f32 %v1216, %v5031
        %v5045 = vmul.f32 %v1212, %v5024
        %v5046 = vmul.f32 %v1216, %v5032
        %v5047 = vmul.f32 %v1212, %v5025
        %v5048 = vmul.f32 %v1216, %v5033
        %v5049 = vmul.f32 %v1212, %v5026
        %v5050 = vmul.f32 %v1216, %v5034
        %v5051 = vmul.f32 %v2781, %v5035
        %v5052 = vmul.f32 %v2781, %v5036
        %v5053 = vmul.f32 %v2785, %v5037
        %v5054 = vmul.f32 %v2785, %v5038
        %v5055 = vmul.f32 %v2789, %v5039
        %v5056 = vmul.f32 %v2789, %v5040
        %v5057 = vmul.f32 %v2793, %v5041
        %v5058 = vmul.f32 %v2793, %v5042
        %v5059 = vmul.f32 %v2797, %v5043
        %v5060 = vmul.f32 %v2797, %v5044
        %v5061 = vmul.f32 %v2801, %v5045
        %v5062 = vmul.f32 %v2801, %v5046
        %v5063 = vmul.f32 %v2805, %v5047
        %v5064 = vmul.f32 %v2805, %v5048
        %v5065 = vmul.f32 %v2809, %v5049
        %v5066 = vmul.f32 %v2809, %v5050
        %v5067 = vadd.f32 %v4971, %v5051
        %v5068 = vadd.f32 %v4972, %v5052
        %v5069 = vadd.f32 %v4973, %v5053
        %v5070 = vadd.f32 %v4974, %v5054
        %v5071 = vadd.f32 %v4975, %v5055
        %v5072 = vadd.f32 %v4976, %v5056
        %v5073 = vadd.f32 %v4977, %v5057
        %v5074 = vadd.f32 %v4978, %v5058
        %v5075 = vadd.f32 %v4979, %v5059
        %v5076 = vadd.f32 %v4980, %v5060
        %v5077 = vadd.f32 %v4981, %v5061
        %v5078 = vadd.f32 %v4982, %v5062
        %v5079 = vadd.f32 %v4983, %v5063
        %v5080 = vadd.f32 %v4984, %v5064
        %v5081 = vadd.f32 %v4985, %v5065
        %v5082 = vadd.f32 %v4986, %v5066
        %5083 = vrot.lane.b32.xlu0 %v4445, 112
        %v5084 = vpop.permute.xlu0 %5083
        %5085 = vrot.lane.b32.xlu0 %v4451, 112
        %v5086 = vpop.permute.xlu0 %5085
        %5087 = vrot.lane.b32.xlu0 %v4457, 112
        %v5088 = vpop.permute.xlu0 %5087
        %5089 = vrot.lane.b32.xlu0 %v4463, 112
        %v5090 = vpop.permute.xlu0 %5089
        %5091 = vrot.lane.b32.xlu0 %v4469, 112
        %v5092 = vpop.permute.xlu0 %5091
        %5093 = vrot.lane.b32.xlu0 %v4475, 112
        %v5094 = vpop.permute.xlu0 %5093
        %5095 = vrot.lane.b32.xlu0 %v4481, 112
        %v5096 = vpop.permute.xlu0 %5095
        %5097 = vrot.lane.b32.xlu0 %v4487, 112
        %v5098 = vpop.permute.xlu0 %5097
        %5099 = vrot.lane.b32.xlu0 %v4447, 112
        %v5100 = vpop.permute.xlu0 %5099
        %5101 = vrot.lane.b32.xlu0 %v4453, 112
        %v5102 = vpop.permute.xlu0 %5101
        %5103 = vrot.lane.b32.xlu0 %v4459, 112
        %v5104 = vpop.permute.xlu0 %5103
        %5105 = vrot.lane.b32.xlu0 %v4465, 112
        %v5106 = vpop.permute.xlu0 %5105
        %5107 = vrot.lane.b32.xlu0 %v4471, 112
        %v5108 = vpop.permute.xlu0 %5107
        %5109 = vrot.lane.b32.xlu0 %v4477, 112
        %v5110 = vpop.permute.xlu0 %5109
        %5111 = vrot.lane.b32.xlu0 %v4483, 112
        %v5112 = vpop.permute.xlu0 %5111
        %5113 = vrot.lane.b32.xlu0 %v4489, 112
        %v5114 = vpop.permute.xlu0 %5113
        %v5115 = vsel %vm1303, %v5084, %v5100
        %v5116 = vsel %vm1303, %v5086, %v5102
        %v5117 = vsel %vm1303, %v5088, %v5104
        %v5118 = vsel %vm1303, %v5090, %v5106
        %v5119 = vsel %vm1303, %v5092, %v5108
        %v5120 = vsel %vm1303, %v5094, %v5110
        %v5121 = vsel %vm1303, %v5096, %v5112
        %v5122 = vsel %vm1303, %v5098, %v5114
        %v5123 = vsel %vm1303, %v5100, %v5084
        %v5124 = vsel %vm1303, %v5102, %v5086
        %v5125 = vsel %vm1303, %v5104, %v5088
        %v5126 = vsel %vm1303, %v5106, %v5090
        %v5127 = vsel %vm1303, %v5108, %v5092
        %v5128 = vsel %vm1303, %v5110, %v5094
        %v5129 = vsel %vm1303, %v5112, %v5096
        %v5130 = vsel %vm1303, %v5114, %v5098
        %v5131 = vmul.f32 %v1320, %v5115
        %v5132 = vmul.f32 %v1324, %v5123
        %v5133 = vmul.f32 %v1320, %v5116
        %v5134 = vmul.f32 %v1324, %v5124
        %v5135 = vmul.f32 %v1320, %v5117
        %v5136 = vmul.f32 %v1324, %v5125
        %v5137 = vmul.f32 %v1320, %v5118
        %v5138 = vmul.f32 %v1324, %v5126
        %v5139 = vmul.f32 %v1320, %v5119
        %v5140 = vmul.f32 %v1324, %v5127
        %v5141 = vmul.f32 %v1320, %v5120
        %v5142 = vmul.f32 %v1324, %v5128
        %v5143 = vmul.f32 %v1320, %v5121
        %v5144 = vmul.f32 %v1324, %v5129
        %v5145 = vmul.f32 %v1320, %v5122
        %v5146 = vmul.f32 %v1324, %v5130
        %v5147 = vmul.f32 %v2909, %v5131
        %v5148 = vmul.f32 %v2909, %v5132
        %v5149 = vmul.f32 %v2913, %v5133
        %v5150 = vmul.f32 %v2913, %v5134
        %v5151 = vmul.f32 %v2917, %v5135
        %v5152 = vmul.f32 %v2917, %v5136
        %v5153 = vmul.f32 %v2921, %v5137
        %v5154 = vmul.f32 %v2921, %v5138
        %v5155 = vmul.f32 %v2925, %v5139
        %v5156 = vmul.f32 %v2925, %v5140
        %v5157 = vmul.f32 %v2929, %v5141
        %v5158 = vmul.f32 %v2929, %v5142
        %v5159 = vmul.f32 %v2933, %v5143
        %v5160 = vmul.f32 %v2933, %v5144
        %v5161 = vmul.f32 %v2937, %v5145
        %v5162 = vmul.f32 %v2937, %v5146
        %v5163 = vadd.f32 %v5067, %v5147
        %v5164 = vadd.f32 %v5068, %v5148
        %v5165 = vadd.f32 %v5069, %v5149
        %v5166 = vadd.f32 %v5070, %v5150
        %v5167 = vadd.f32 %v5071, %v5151
        %v5168 = vadd.f32 %v5072, %v5152
        %v5169 = vadd.f32 %v5073, %v5153
        %v5170 = vadd.f32 %v5074, %v5154
        %v5171 = vadd.f32 %v5075, %v5155
        %v5172 = vadd.f32 %v5076, %v5156
        %v5173 = vadd.f32 %v5077, %v5157
        %v5174 = vadd.f32 %v5078, %v5158
        %v5175 = vadd.f32 %v5079, %v5159
        %v5176 = vadd.f32 %v5080, %v5160
        %v5177 = vadd.f32 %v5081, %v5161
        %v5178 = vadd.f32 %v5082, %v5162
        %5179 = vrot.lane.b32.xlu0 %v4445, 111
        %v5180 = vpop.permute.xlu0 %5179
        %5181 = vrot.lane.b32.xlu0 %v4451, 111
        %v5182 = vpop.permute.xlu0 %5181
        %5183 = vrot.lane.b32.xlu0 %v4457, 111
        %v5184 = vpop.permute.xlu0 %5183
        %5185 = vrot.lane.b32.xlu0 %v4463, 111
        %v5186 = vpop.permute.xlu0 %5185
        %5187 = vrot.lane.b32.xlu0 %v4469, 111
        %v5188 = vpop.permute.xlu0 %5187
        %5189 = vrot.lane.b32.xlu0 %v4475, 111
        %v5190 = vpop.permute.xlu0 %5189
        %5191 = vrot.lane.b32.xlu0 %v4481, 111
        %v5192 = vpop.permute.xlu0 %5191
        %5193 = vrot.lane.b32.xlu0 %v4487, 111
        %v5194 = vpop.permute.xlu0 %5193
        %5195 = vrot.lane.b32.xlu0 %v4447, 111
        %v5196 = vpop.permute.xlu0 %5195
        %5197 = vrot.lane.b32.xlu0 %v4453, 111
        %v5198 = vpop.permute.xlu0 %5197
        %5199 = vrot.lane.b32.xlu0 %v4459, 111
        %v5200 = vpop.permute.xlu0 %5199
        %5201 = vrot.lane.b32.xlu0 %v4465, 111
        %v5202 = vpop.permute.xlu0 %5201
        %5203 = vrot.lane.b32.xlu0 %v4471, 111
        %v5204 = vpop.permute.xlu0 %5203
        %5205 = vrot.lane.b32.xlu0 %v4477, 111
        %v5206 = vpop.permute.xlu0 %5205
        %5207 = vrot.lane.b32.xlu0 %v4483, 111
        %v5208 = vpop.permute.xlu0 %5207
        %5209 = vrot.lane.b32.xlu0 %v4489, 111
        %v5210 = vpop.permute.xlu0 %5209
        %v5211 = vsel %vm1411, %v5180, %v5196
        %v5212 = vsel %vm1411, %v5182, %v5198
        %v5213 = vsel %vm1411, %v5184, %v5200
        %v5214 = vsel %vm1411, %v5186, %v5202
        %v5215 = vsel %vm1411, %v5188, %v5204
        %v5216 = vsel %vm1411, %v5190, %v5206
        %v5217 = vsel %vm1411, %v5192, %v5208
        %v5218 = vsel %vm1411, %v5194, %v5210
        %v5219 = vsel %vm1411, %v5196, %v5180
        %v5220 = vsel %vm1411, %v5198, %v5182
        %v5221 = vsel %vm1411, %v5200, %v5184
        %v5222 = vsel %vm1411, %v5202, %v5186
        %v5223 = vsel %vm1411, %v5204, %v5188
        %v5224 = vsel %vm1411, %v5206, %v5190
        %v5225 = vsel %vm1411, %v5208, %v5192
        %v5226 = vsel %vm1411, %v5210, %v5194
        %v5227 = vmul.f32 %v1428, %v5211
        %v5228 = vmul.f32 %v1432, %v5219
        %v5229 = vmul.f32 %v1428, %v5212
        %v5230 = vmul.f32 %v1432, %v5220
        %v5231 = vmul.f32 %v1428, %v5213
        %v5232 = vmul.f32 %v1432, %v5221
        %v5233 = vmul.f32 %v1428, %v5214
        %v5234 = vmul.f32 %v1432, %v5222
        %v5235 = vmul.f32 %v1428, %v5215
        %v5236 = vmul.f32 %v1432, %v5223
        %v5237 = vmul.f32 %v1428, %v5216
        %v5238 = vmul.f32 %v1432, %v5224
        %v5239 = vmul.f32 %v1428, %v5217
        %v5240 = vmul.f32 %v1432, %v5225
        %v5241 = vmul.f32 %v1428, %v5218
        %v5242 = vmul.f32 %v1432, %v5226
        %v5243 = vmul.f32 %v3037, %v5227
        %v5244 = vmul.f32 %v3037, %v5228
        %v5245 = vmul.f32 %v3041, %v5229
        %v5246 = vmul.f32 %v3041, %v5230
        %v5247 = vmul.f32 %v3045, %v5231
        %v5248 = vmul.f32 %v3045, %v5232
        %v5249 = vmul.f32 %v3049, %v5233
        %v5250 = vmul.f32 %v3049, %v5234
        %v5251 = vmul.f32 %v3053, %v5235
        %v5252 = vmul.f32 %v3053, %v5236
        %v5253 = vmul.f32 %v3057, %v5237
        %v5254 = vmul.f32 %v3057, %v5238
        %v5255 = vmul.f32 %v3061, %v5239
        %v5256 = vmul.f32 %v3061, %v5240
        %v5257 = vmul.f32 %v3065, %v5241
        %v5258 = vmul.f32 %v3065, %v5242
        %v5259 = vadd.f32 %v5163, %v5243
        %v5260 = vadd.f32 %v5164, %v5244
        %v5261 = vadd.f32 %v5165, %v5245
        %v5262 = vadd.f32 %v5166, %v5246
        %v5263 = vadd.f32 %v5167, %v5247
        %v5264 = vadd.f32 %v5168, %v5248
        %v5265 = vadd.f32 %v5169, %v5249
        %v5266 = vadd.f32 %v5170, %v5250
        %v5267 = vadd.f32 %v5171, %v5251
        %v5268 = vadd.f32 %v5172, %v5252
        %v5269 = vadd.f32 %v5173, %v5253
        %v5270 = vadd.f32 %v5174, %v5254
        %v5271 = vadd.f32 %v5175, %v5255
        %v5272 = vadd.f32 %v5176, %v5256
        %v5273 = vadd.f32 %v5177, %v5257
        %v5274 = vadd.f32 %v5178, %v5258
        %v5275 = vmul.f32 %v5259, %v5259
        %v5276 = vmul.f32 %v5260, %v5260
        %v5277 = vmul.f32 %v5261, %v5261
        %v5278 = vmul.f32 %v5262, %v5262
        %v5279 = vmul.f32 %v5263, %v5263
        %v5280 = vmul.f32 %v5264, %v5264
        %v5281 = vmul.f32 %v5265, %v5265
        %v5282 = vmul.f32 %v5266, %v5266
        %v5283 = vmul.f32 %v5259, %v5275
        %v5284 = vmul.f32 %v5260, %v5276
        %v5285 = vmul.f32 %v5261, %v5277
        %v5286 = vmul.f32 %v5262, %v5278
        %v5287 = vmul.f32 %v5263, %v5279
        %v5288 = vmul.f32 %v5264, %v5280
        %v5289 = vmul.f32 %v5265, %v5281
        %v5290 = vmul.f32 %v5266, %v5282
        %v5291 = vmul.f32 %v5283, 0.044715
        %v5292 = vmul.f32 %v5284, 0.044715
        %v5293 = vmul.f32 %v5285, 0.044715
        %v5294 = vmul.f32 %v5286, 0.044715
        %v5295 = vmul.f32 %v5287, 0.044715
        %v5296 = vmul.f32 %v5288, 0.044715
        %v5297 = vmul.f32 %v5289, 0.044715
        %v5298 = vmul.f32 %v5290, 0.044715
        %v5299 = vadd.f32 %v5259, %v5291
        %v5300 = vadd.f32 %v5260, %v5292
        %v5301 = vadd.f32 %v5261, %v5293
        %v5302 = vadd.f32 %v5262, %v5294
        %v5303 = vadd.f32 %v5263, %v5295
        %v5304 = vadd.f32 %v5264, %v5296
        %v5305 = vadd.f32 %v5265, %v5297
        %v5306 = vadd.f32 %v5266, %v5298
        %v5307 = vmul.f32 %v5299, 0.7978846
        %v5308 = vmul.f32 %v5300, 0.7978846
        %v5309 = vmul.f32 %v5301, 0.7978846
        %v5310 = vmul.f32 %v5302, 0.7978846
        %v5311 = vmul.f32 %v5303, 0.7978846
        %v5312 = vmul.f32 %v5304, 0.7978846
        %v5313 = vmul.f32 %v5305, 0.7978846
        %v5314 = vmul.f32 %v5306, 0.7978846
        %v5315 = vtanh.pop %v5307
        %v5316 = vtanh.pop %v5308
        %v5317 = vtanh.pop %v5309
        %v5318 = vtanh.pop %v5310
        %v5319 = vtanh.pop %v5311
        %v5320 = vtanh.pop %v5312
        %v5321 = vtanh.pop %v5313
        %v5322 = vtanh.pop %v5314
        %v5323 = vadd.f32 %v5315, 1.0
        %v5324 = vadd.f32 %v5316, 1.0
        %v5325 = vadd.f32 %v5317, 1.0
        %v5326 = vadd.f32 %v5318, 1.0
        %v5327 = vadd.f32 %v5319, 1.0
        %v5328 = vadd.f32 %v5320, 1.0
        %v5329 = vadd.f32 %v5321, 1.0
        %v5330 = vadd.f32 %v5322, 1.0
        %v5331 = vmul.f32 %v5323, 0.5
        %v5332 = vmul.f32 %v5324, 0.5
        %v5333 = vmul.f32 %v5325, 0.5
        %v5334 = vmul.f32 %v5326, 0.5
        %v5335 = vmul.f32 %v5327, 0.5
        %v5336 = vmul.f32 %v5328, 0.5
        %v5337 = vmul.f32 %v5329, 0.5
        %v5338 = vmul.f32 %v5330, 0.5
        %v5339 = vmul.f32 %v5259, %v5331
        %v5340 = vmul.f32 %v5260, %v5332
        %v5341 = vmul.f32 %v5261, %v5333
        %v5342 = vmul.f32 %v5262, %v5334
        %v5343 = vmul.f32 %v5263, %v5335
        %v5344 = vmul.f32 %v5264, %v5336
        %v5345 = vmul.f32 %v5265, %v5337
        %v5346 = vmul.f32 %v5266, %v5338
        %v5347 = vmul.f32 %v5339, %v5267
        %v5348 = vmul.f32 %v5340, %v5268
        %v5349 = vmul.f32 %v5341, %v5269
        %v5350 = vmul.f32 %v5342, %v5270
        %v5351 = vmul.f32 %v5343, %v5271
        %v5352 = vmul.f32 %v5344, %v5272
        %v5353 = vmul.f32 %v5345, %v5273
        %v5354 = vmul.f32 %v5346, %v5274
        %5355 = vmatprep.subr.mxu0 %v5348
        %5356 = vmatpush1.msra.mxu0 %v5347
        %5357 = vmatprep.subr.mxu0 %v5350
        %5358 = vmatpush1.msra.mxu0 %v5349
        %5359 = vmatprep.subr.mxu0 %v5352
        %5360 = vmatpush1.msra.mxu0 %v5351
        %5361 = vmatprep.subr.mxu0 %v5354
        %5362 = vmatpush1.msra.mxu0 %v5353
        %5363 = vmatprep.subr.mxu0 0.0
        %5364 = vmatpush1.msra.mxu0 0.0
        %5365 = vmatprep.subr.mxu0 0.0
        %5366 = vmatpush1.msra.mxu0 0.0
        %5367 = vmatprep.subr.mxu0 0.0
        %5368 = vmatpush1.msra.mxu0 0.0
        %5369 = vmatprep.subr.mxu0 0.0
        %5370 = vmatpush1.msra.mxu0 0.0
        %5371 = vmatprep.subr.mxu0 0.0
        %5372 = vmatpush1.msra.mxu0 0.0
        %5373 = vmatprep.subr.mxu0 0.0
        %5374 = vmatpush1.msra.mxu0 0.0
        %5375 = vmatprep.subr.mxu0 0.0
        %5376 = vmatpush1.msra.mxu0 0.0
        %5377 = vmatprep.subr.mxu0 0.0
        %5378 = vmatpush1.msra.mxu0 0.0
        %5379 = vmatprep.subr.mxu0 0.0
        %5380 = vmatpush1.msra.mxu0 0.0
        %5381 = vmatprep.subr.mxu0 0.0
        %5382 = vmatpush1.msra.mxu0 0.0
        %5383 = vmatprep.subr.mxu0 0.0
        %5384 = vmatpush1.msra.mxu0 0.0
        %5385 = vmatprep.subr.mxu0 0.0
        %5386 = vmatpush1.msra.mxu0 0.0
        %5387 = vmatprep.subr.mxu0 0.0
        %5388 = vmatpush1.msra.mxu0 0.0
        %5389 = vmatprep.subr.mxu0 0.0
        %5390 = vmatpush1.msra.mxu0 0.0
        %5391 = vmatprep.subr.mxu0 0.0
        %5392 = vmatpush1.msra.mxu0 0.0
        %5393 = vmatprep.subr.mxu0 0.0
        %5394 = vmatpush1.msra.mxu0 0.0
        %5395 = vmatprep.subr.mxu0 0.0
        %5396 = vmatpush1.msra.mxu0 0.0
        %5397 = vmatprep.subr.mxu0 0.0
        %5398 = vmatpush1.msra.mxu0 0.0
        %5399 = vmatprep.subr.mxu0 0.0
        %5400 = vmatpush1.msra.mxu0 0.0
        %5401 = vmatprep.subr.mxu0 0.0
        %5402 = vmatpush1.msra.mxu0 0.0
        %5403 = vmatprep.subr.mxu0 0.0
        %5404 = vmatpush1.msra.mxu0 0.0
        %5405 = vmatprep.subr.mxu0 0.0
        %5406 = vmatpush1.msra.mxu0 0.0
        %5407 = vmatprep.subr.mxu0 0.0
        %5408 = vmatpush1.msra.mxu0 0.0
        %5409 = vmatprep.subr.mxu0 0.0
        %5410 = vmatpush1.msra.mxu0 0.0
        %5411 = vmatprep.subr.mxu0 0.0
        %5412 = vmatpush1.msra.mxu0 0.0
        %5413 = vmatprep.subr.mxu0 0.0
        %5414 = vmatpush1.msra.mxu0 0.0
        %5415 = vmatprep.subr.mxu0 0.0
        %5416 = vmatpush1.msra.mxu0 0.0
        %5417 = vmatprep.subr.mxu0 0.0
        %5418 = vmatpush1.msra.mxu0 0.0
        %5419 = vmatprep.mubr.f32.mxu0 0.0
        %5420 = vmatmul.mubr.f32.gmra.mrb[0].mxu0 %v3181
        %v5421 = vpop.f32.mrb[0].mxu0
        %v5422 = vadd.f32 0.0, %v5421
        %v5423 = vpop.f32.mrb[0].mxu0
        %v5424 = vadd.f32 0.0, %v5423
        %5425 = vmatprep.mubr.f32.mxu0 0.0
        %5426 = vmatmul.mubr.f32.gmra.mrb[0].mxu0 %v3184
        %v5427 = vpop.f32.mrb[0].mxu0
        %v5428 = vadd.f32 0.0, %v5427
        %v5429 = vpop.f32.mrb[0].mxu0
        %v5430 = vadd.f32 0.0, %v5429
        %5431 = vdwg.mxu0
        %v5432 = vadd.f32 %v4318, %v5422
        %v5433 = vadd.f32 %v4319, %v5424
        %v5434 = vadd.f32 %v4320, %v5428
        %v5435 = vadd.f32 %v4321, %v5430
        %s5436 = scalar_lea.vmem %s328, 32 [#allocation2]
        %5437 = vst [vmem:[%s5436] sm:$0xff] %v5432
        %5438 = vst [vmem:[%s5436 + $0x8] sm:$0xff] %v5433
        %5439 = vst [vmem:[%s5436 + $0x10] sm:$0xff] %v5434
        %5440 = vst [vmem:[%s5436 + $0x18] sm:$0xff] %v5435
        %s5441 = sand.u32 %s225, 1
        %s5442 = scalar_lea.sflag [#allocation3], %s5441
        %s5443 = sand.u32 %s225, 1
        %s5444 = smul.addr %s5443, 64
        %s5445 = scalar_lea.vmem [#allocation2], %s5444
        // Predicated region
        $region57: #{tpu_custom_call.1} parent=55 // pred_check
          %p5446 = pneg %p235
        $region58: #{tpu_custom_call.1} parent=55 // pred_check_branch
          %5448 = sbr.rel (%p5446) target = $region60
        $region59: #{tpu_custom_call.1} parent=55 // pred_region
          %s5449 = smul.u32 2, %s23
          %s5451 = ssub.s32 1024, 1024
          %5452 = vsyncadd %s5442, %s5451
          %s5453 = smul.addr %s5449, 4
          %s5454 = smul.addr %s5453, 128
          %s5455 = scalar_lea.hbm %s9, %s5454
          %s5456 = sshll.u32 %s5445, 4
          %s5457 = int_to_ptr.vmem [resolvable:$true] %s5456
          %5462 = dma.vmem_to_hbm [thread:$0]  %s5457, 1024, %s5455, %s5442, 256, 256, 16
        $region60: #{tpu_custom_call.1} parent=55 // pred_fallthru
          _
      $region56: #{tpu_custom_call.1} parent=5 // pred_fallthru
        _
      %p5463 = scmp.le.s32.totalorder 2, %s18
      // Predicated region
      $region61: #{tpu_custom_call.1} parent=5 // pred_check
        %p5464 = pneg %p5463
      $region62: #{tpu_custom_call.1} parent=5 // pred_check_branch
        %5466 = sbr.rel (%p5464) target = $region64
      $region63: #{tpu_custom_call.1} parent=5 // pred_region
        %s5467 = ssub.s32 %s18, 2
        // Predicated region
        $region65: #{tpu_custom_call.1} parent=63 // pred_check
          %p5468 = pneg %p241
        $region66: #{tpu_custom_call.1} parent=63 // pred_check_branch
          %5470 = sbr.rel (%p5468) target = $region68
        $region67: #{tpu_custom_call.1} parent=63 // pred_region
          %s5471 = sand.u32 %s226, 1
          %s5472 = scalar_lea.sflag [#allocation3], %s5471
          %s5473 = sand.u32 %s226, 1
          %s5474 = smul.addr %s5473, 64
          %s5475 = scalar_lea.vmem [#allocation2], %s5474
          %5476 = dma.done %s5472, 1024
        $region68: #{tpu_custom_call.1} parent=63 // pred_fallthru
          _
      $region64: #{tpu_custom_call.1} parent=5 // pred_fallthru
        _
    $region6: #{tpu_custom_call.1} parent=1 // loop_footer
      %s22 = sadd.s32 1, %s18
    $region7: #{tpu_custom_call.1} parent=1 // loop_footer_branch
      %17 = sbr.rel target = $region3
    $region8: #{tpu_custom_call.1} parent=1 // loop_exit
      _
    %5477 = vsyncpa [#allocation3], 1
    %s5478 = scalar_lea.sflag [#allocation3], 1
    %5479 = vsyncpa %s5478, 1

</llo_original>
